<compile_context>
chip_gen: v7x
topology: tpu7x:2x2x1
jax: 0.10.0
libtpu: 0.0.40
codegen_flags: <defaults>
</compile_context>

<pallas_src>
from functools import partial

import jax
import jax.numpy as jnp
import numpy as np
from jax import lax
from jax.experimental import pallas as pl
from jax.experimental.pallas import tpu as pltpu


def _pick_tile(n, max_tile):
    """Largest multiple of 128 dividing n, capped at max_tile; n itself if small/unaligned."""
    if n % 128 != 0 or n <= max_tile:
        return n
    t = (max_tile // 128) * 128
    while n % t != 0:
        t -= 128
    return t


def _device_flavor():
    """(legacy, is_v7): legacy == v5-or-older (no bf16 EUP/VPU), is_v7 == 64 MiB VMEM."""
    try:
        kind = jax.devices()[0].device_kind.lower()
    except Exception:  # pragma: no cover - defensive
        kind = ""
    legacy = any(t in kind for t in ("v2", "v3", "v4", "v5"))
    is_v7 = ("v7" in kind) or ("7x" in kind)
    return legacy, is_v7


# ----------------------------- 1x1 conv (to_qkv / to_out) --------------------

def _conv1x1_kernel(x_ref, w_ref, o_ref):
    # x_ref: (C, tn), w_ref: (O, C) -> o_ref: (O, tn); x cast to the MXU dtype in-kernel.
    o_ref[...] = jnp.dot(
        w_ref[...], x_ref[...].astype(w_ref.dtype), preferred_element_type=jnp.float32
    ).astype(o_ref.dtype)


def _conv1x1_bias_kernel(x_ref, w_ref, b_ref, o_ref):
    acc = jnp.dot(w_ref[...], x_ref[...].astype(w_ref.dtype),
                  preferred_element_type=jnp.float32)
    o_ref[...] = (acc + b_ref[...]).astype(o_ref.dtype)


def conv1x1(x, w, b=None, *, out_dtype=jnp.float32, n_tile=None,
            vmem_limit_bytes=64 * 1024 * 1024):
    """x: (B, C, N), w: (O, C) bf16, b: (O,)|None -> (B, O, N).  == nn.Conv1d(k=1)."""
    B, C, N = x.shape
    O = w.shape[0]
    tn = _pick_tile(N, 512) if n_tile is None else n_tile
    assert N % tn == 0
    grid = (B, N // tn)

    x_spec = pl.BlockSpec((None, C, tn), lambda bi, j: (bi, 0, j))
    w_spec = pl.BlockSpec((O, C), lambda bi, j: (0, 0))          # weight stays resident
    o_spec = pl.BlockSpec((None, O, tn), lambda bi, j: (bi, 0, j))

    cost = pl.CostEstimate(
        flops=2 * B * O * C * N,
        transcendentals=0,
        bytes_accessed=int(
            B * C * N * x.dtype.itemsize
            + O * C * w.dtype.itemsize
            + B * O * N * jnp.dtype(out_dtype).itemsize
        ),
    )
    cparams = pltpu.CompilerParams(
        dimension_semantics=("parallel", "parallel"),
        vmem_limit_bytes=vmem_limit_bytes,
    )
    if b is None:
        return pl.pallas_call(
            _conv1x1_kernel,
            out_shape=jax.ShapeDtypeStruct((B, O, N), out_dtype),
            grid=grid,
            in_specs=[x_spec, w_spec],
            out_specs=o_spec,
            compiler_params=cparams,
            cost_estimate=cost,
        )(x, w)
    return pl.pallas_call(
        _conv1x1_bias_kernel,
        out_shape=jax.ShapeDtypeStruct((B, O, N), out_dtype),
        grid=grid,
        in_specs=[x_spec, w_spec, pl.BlockSpec((O, 1), lambda bi, j: (0, 0))],
        out_specs=o_spec,
        compiler_params=cparams,
        cost_estimate=cost,
    )(x, w, b.reshape(O, 1).astype(jnp.float32))


# ----------------------------- K rope pre-pass (channel-major) ---------------

def _rope_channels_kernel(x_ref, cos_ref, sin_ref, o_ref, *, rh):
    # x_ref: (Dh, tn) bf16 in the split-halves basis (channels pre-permuted in glue).
    x = x_ref[...]
    c = cos_ref[...]                                  # (rh, tn) f32
    s = sin_ref[...]
    xe = x[:rh, :].astype(jnp.float32)
    xo = x[rh:2 * rh, :].astype(jnp.float32)
    o_ref[...] = jnp.concatenate(
        [(xe * c - xo * s).astype(x.dtype),
         (xe * s + xo * c).astype(x.dtype),
         x[2 * rh:, :]], axis=0)


def rope_channels(x, cos, sin, *, n_tile=None, vmem_limit_bytes=64 * 1024 * 1024):
    """Apply rope to a channel-major (BH, Dh, N) tensor; cos/sin are (rh, N) f32."""
    BH, Dh, N = x.shape
    rh = cos.shape[0]
    tn = _pick_tile(N, 512) if n_tile is None else n_tile
    assert N % tn == 0
    grid = (BH, N // tn)
    cost = pl.CostEstimate(
        flops=6 * BH * rh * N, transcendentals=0,
        bytes_accessed=int(2 * BH * Dh * N * x.dtype.itemsize + 2 * rh * N * 4))
    return pl.pallas_call(
        partial(_rope_channels_kernel, rh=rh),
        out_shape=jax.ShapeDtypeStruct(x.shape, x.dtype),
        grid=grid,
        in_specs=[pl.BlockSpec((None, Dh, tn), lambda b, j: (b, 0, j)),
                  pl.BlockSpec((rh, tn), lambda b, j: (0, j)),
                  pl.BlockSpec((rh, tn), lambda b, j: (0, j))],
        out_specs=pl.BlockSpec((None, Dh, tn), lambda b, j: (b, 0, j)),
        compiler_params=pltpu.CompilerParams(
            dimension_semantics=("parallel", "parallel"),
            vmem_limit_bytes=vmem_limit_bytes),
        cost_estimate=cost,
    )(x, cos, sin)


# ----------------------------- flash attention (channel-major state) ---------

def _flash_attn_kernel(q_ref, k_ref, v_ref, cos_ref, sin_ref, o_ref,
                       q_scr, m_scr, acc_scr, *, rh, exp_dtype):
    kv_idx = pl.program_id(2)

    @pl.when(kv_idx == 0)
    def _init():
        # RoPE on the resident q tile (channel-major split-halves basis): computed once
        # per q tile instead of every kv step, cached in a bf16 VMEM scratch.
        q = q_ref[...]                                   # (Dh, tq) bf16, scale pre-folded
        qe = q[:rh, :].astype(jnp.float32)
        qo = q[rh:2 * rh, :].astype(jnp.float32)
        cq = cos_ref[...]                                # (rh, tq) f32
        sq = sin_ref[...]
        q_scr[...] = jnp.concatenate(
            [(qe * cq - qo * sq).astype(q.dtype),
             (qe * sq + qo * cq).astype(q.dtype),
             q[2 * rh:, :]], axis=0)                     # (Dh, tq)
        m_scr[...] = jnp.full(m_scr.shape, -jnp.inf, dtype=m_scr.dtype)
        acc_scr[...] = jnp.zeros(acc_scr.shape, dtype=acc_scr.dtype)

    # Scores directly in (tk, tq) orientation: canonical MXU matmul K(tk,Dh) @ Q(Dh,tq).
    s = lax.dot_general(k_ref[...], q_scr[...], (((1,), (0,)), ((), ())),
                        preferred_element_type=jnp.float32)            # (tk, tq) f32
    m_prev = m_scr[...]                                                 # (1, tq) f32
    m_new = jnp.maximum(m_prev, jnp.max(s, axis=0, keepdims=True))
    alpha = jnp.exp(m_prev - m_new)                                     # (1, tq) f32
    p = jnp.exp((s - m_new).astype(exp_dtype))                          # bf16 exp on v6e/v7x

    # PV and the softmax row-sum in one canonical MXU matmul: V_hat carries a ones row
    # (Dh+1 rows), so row Dh of the product is sum_k p (the l increment).
    pv = lax.dot_general(v_ref[...], p.astype(v_ref.dtype), (((1,), (0,)), ((), ())),
                         preferred_element_type=jnp.float32)            # (Dh+1, tq) f32
    acc_scr[...] = alpha * acc_scr[...] + pv
    m_scr[...] = m_new

    @pl.when(kv_idx == pl.num_programs(2) - 1)
    def _fin():
        dh = o_ref.shape[0]
        acc = acc_scr[...]                               # (Dh+1, tq) f32
        inv_l = pl.reciprocal(acc[dh:dh + 1, :], approx=True)   # ~1e-3 rel err, fine for bf16
        o_ref[...] = (acc[:dh, :] * inv_l).astype(o_ref.dtype)  # lane-dense (Dh, tq) store


def sdpa(q, k, v, cos, sin, *, q_tile=None, kv_tile=None,
         exp_dtype=jnp.bfloat16, vmem_limit_bytes=64 * 1024 * 1024):
    """q: (BH, Dh, N) channel-major bf16 (scale folded in, rope channels permuted);
    k: (BH, N, Dh) bf16, already rotated; v: (BH, Dh+1, N) bf16 with ones row appended;
    cos/sin: (rh, N) f32.  Returns attention output in lane-dense (BH, Dh, N) bf16."""
    BH, Dh, N = q.shape
    Dh1 = v.shape[1]
    rh = cos.shape[0]
    assert N % 128 == 0, "sdpa requires a 128-aligned sequence length (no ragged path)"

    tq = _pick_tile(N, 512) if q_tile is None else q_tile
    tk = _pick_tile(N, 1024) if kv_tile is None else kv_tile
    assert N % tq == 0 and N % tk == 0
    grid = (BH, N // tq, N // tk)        # B*H outermost "parallel" axis (megacore split)

    kv_refetch = N // tq
    cost = pl.CostEstimate(
        flops=4 * BH * N * N * Dh,                       # QK^T + PV
        transcendentals=BH * N * N,                      # exp
        bytes_accessed=int(
            BH * N * Dh * q.dtype.itemsize               # q
            + kv_refetch * BH * N * Dh * k.dtype.itemsize    # k, refetched per q tile
            + kv_refetch * BH * N * Dh1 * v.dtype.itemsize   # v_hat, refetched per q tile
            + 2 * rh * N * 4                             # cos/sin
            + BH * N * Dh * 2                            # bf16 output
        ),
    )
    return pl.pallas_call(
        partial(_flash_attn_kernel, rh=rh, exp_dtype=exp_dtype),
        out_shape=jax.ShapeDtypeStruct((BH, Dh, N), jnp.bfloat16),
        grid=grid,
        in_specs=[
            pl.BlockSpec((None, Dh, tq), lambda b, qi, ki: (b, 0, qi)),    # q (ch-major)
            pl.BlockSpec((None, tk, Dh), lambda b, qi, ki: (b, ki, 0)),    # k (row-major, rotated)
            pl.BlockSpec((None, Dh1, tk), lambda b, qi, ki: (b, 0, ki)),   # v_hat (+ ones row)
            pl.BlockSpec((rh, tq), lambda b, qi, ki: (0, qi)),             # cos (q positions)
            pl.BlockSpec((rh, tq), lambda b, qi, ki: (0, qi)),             # sin (q positions)
        ],
        out_specs=pl.BlockSpec((None, Dh, tq), lambda b, qi, ki: (b, 0, qi)),
        scratch_shapes=[
            pltpu.VMEM((Dh, tq), jnp.bfloat16),      # rotated q tile (hoisted rope)
            pltpu.VMEM((1, tq), jnp.float32),        # running max (lane-dense)
            pltpu.VMEM((Dh1, tq), jnp.float32),      # un-normalized acc; row Dh = running sum
        ],
        compiler_params=pltpu.CompilerParams(
            dimension_semantics=("parallel", "parallel", "arbitrary"),
            vmem_limit_bytes=vmem_limit_bytes,
        ),
        cost_estimate=cost,
    )(q, k, v, cos, sin)


# ----------------------------- rope tables (glue) -----------------------------

def rope_tables(n, dim_head):
    """cos/sin of shape (dim_head // 4, N) for the split-halves rope basis.
    Matches rotary_embedding_torch defaults: RotaryEmbedding(dim=dim_head//2), theta=10000."""
    rot_dim = dim_head // 2
    inv_freq = 1.0 / (10000.0 ** (jnp.arange(0, rot_dim, 2, dtype=jnp.float32) / rot_dim))
    t = jnp.arange(n, dtype=jnp.float32)
    angles = inv_freq[:, None] * t[None, :]          # (rh, N)
    return jnp.cos(angles), jnp.sin(angles)


# ----------------------------- full module forward ----------------------------

def attention_forward(x, params, *, heads, dim_head, q_tile=None, kv_tile=None):
    """Reproduces Attention.forward(x) (self-attention, non-flash, dropout=0)."""
    B, C, N = x.shape
    hidden = heads * dim_head
    assert dim_head % 4 == 0, "rope with rot_dim = dim_head//2 needs dim_head % 4 == 0"
    assert N % 128 == 0, "this implementation assumes a 128-aligned sequence length"
    rot = dim_head // 2
    rh = rot // 2
    scale = float(dim_head) ** -0.5

    legacy, is_v7 = _device_flavor()
    exp_dtype = jnp.float32 if legacy else jnp.bfloat16      # no bf16 EUP on v5 and older
    # v7x: 64 MiB VMEM/TC -> conservative scoped limit; v5e/v6e: 128 MiB -> allow big tiles.
    vmem_limit = (32 if is_v7 else 64) * 1024 * 1024

    # Trace-time weight surgery: fold the softmax scale into the q rows of w_qkv and
    # permute the q/k rows per head into [even-rot | odd-rot | pass-through] order so the
    # in-kernel / pre-pass rope is elementwise on contiguous sublane slices.  q.k^T is
    # invariant to a shared permutation of q and k channels; v (and to_out) untouched.
    perm_head = np.concatenate([np.arange(0, rot, 2),
                                np.arange(1, rot, 2),
                                np.arange(rot, dim_head)])
    perm = (np.arange(heads)[:, None] * dim_head + perm_head[None, :]).reshape(-1)
    w_qkv = params["w_qkv"]
    w_q = w_qkv[:hidden][perm] * scale
    w_k = w_qkv[hidden:2 * hidden][perm]
    w_v = w_qkv[2 * hidden:]
    w_qkv_adj = jnp.concatenate([w_q, w_k, w_v], axis=0).astype(jnp.bfloat16)

    # to_qkv: Conv1d(dim, 3*hidden, 1, bias=False); f32 x is cast to bf16 inside the kernel.
    qkv = conv1x1(x, w_qkv_adj, out_dtype=jnp.bfloat16,
                  vmem_limit_bytes=vmem_limit)                       # (B, 3*hidden, N)
    q_c, k_c, v_c = jnp.split(qkv, 3, axis=1)

    cos, sin = rope_tables(N, dim_head)                              # (rh, N) f32

    # Q stays channel-major (Dh, N) straight from the conv (rope hoisted into the kernel).
    qq = q_c.reshape(B * heads, dim_head, N)
    # K is pre-rotated once (tiny Pallas pass, channel-major) and transposed once in glue
    # to (N, Dh) so the in-loop score matmul is fully canonical.
    k_rot = rope_channels(k_c.reshape(B * heads, dim_head, N), cos, sin,
                          vmem_limit_bytes=vmem_limit)
    kk = k_rot.transpose(0, 2, 1)                                    # (BH, N, Dh)
    # V gets a ones row so the PV matmul also produces the softmax row-sum.
    v_cm = v_c.reshape(B * heads, dim_head, N)
    v_hat = jnp.concatenate(
        [v_cm, jnp.ones((B * heads, 1, N), dtype=v_cm.dtype)], axis=1)   # (BH, Dh+1, N)

    out = sdpa(qq, kk, v_hat, cos, sin, q_tile=q_tile, kv_tile=kv_tile,
               exp_dtype=exp_dtype, vmem_limit_bytes=vmem_limit)     # (BH, Dh, N) bf16
    out = out.reshape(B, hidden, N)                  # 'b h n d -> b (h d) n' is free here

    # to_out: Conv1d(hidden, dim, 1) with bias, f32 output.
    return conv1x1(out, params["w_out"].astype(jnp.bfloat16), params["b_out"],
                   out_dtype=jnp.float32, vmem_limit_bytes=vmem_limit)


# ----------------------------- pure-JAX f32 reference -------------------------

def _rotary_cos_sin_interleaved(n, rot_dim):
    inv_freq = 1.0 / (10000.0 ** (jnp.arange(0, rot_dim, 2, dtype=jnp.float32) / rot_dim))
    t = jnp.arange(n, dtype=jnp.float32)
    angles = jnp.repeat(t[:, None] * inv_freq[None, :], 2, axis=-1)   # (N, rot_dim)
    return jnp.cos(angles), jnp.sin(angles)


def _rotate_half(x):
    x2 = x.reshape(x.shape[:-1] + (x.shape[-1] // 2, 2))
    a, b = x2[..., 0], x2[..., 1]
    return jnp.stack([-b, a], axis=-1).reshape(x.shape)


def _apply_rope(t, cos, sin):
    rot_dim = cos.shape[-1]
    t_rot, t_pass = t[..., :rot_dim], t[..., rot_dim:]
    t_rot = t_rot * cos + _rotate_half(t_rot) * sin
    return jnp.concatenate([t_rot, t_pass], axis=-1)


def attention_forward_ref(x, params, *, heads, dim_head):
    B, C, N = x.shape
    hidden = heads * dim_head
    qkv = jnp.einsum("oc,bcn->bon", params["w_qkv"], x)
    q, k, v = jnp.split(qkv, 3, axis=1)
    to_bhnc = lambda t: t.reshape(B, heads, dim_head, N).transpose(0, 1, 3, 2)
    q, k, v = map(to_bhnc, (q, k, v))
    cos, sin = _rotary_cos_sin_interleaved(N, dim_head // 2)
    q, k = _apply_rope(q, cos, sin), _apply_rope(k, cos, sin)
    scale = float(dim_head) ** -0.5
    sim = jnp.einsum("bhid,bhjd->bhij", q, k) * scale
    attn = jax.nn.softmax(sim, axis=-1)
    out = jnp.einsum("bhij,bhjd->bhid", attn, v)
    out = out.transpose(0, 1, 3, 2).reshape(B, hidden, N)
    return jnp.einsum("oc,bcn->bon", params["w_out"], out) + params["b_out"][None, :, None]


# ----------------------------- main -------------------------------------------

if __name__ == "__main__":
    B, dim, N = 2, 8, 512
    heads, dim_head = 4, 32          # module defaults (dim_head=32)
    hidden = heads * dim_head

    key = jax.random.PRNGKey(0)
    k_x, k_qkv, k_wo, k_bo = jax.random.split(key, 4)
    x = jax.random.normal(k_x, (B, dim, N), dtype=jnp.float32)
    params = {
        # nn.Conv1d(dim, hidden*3, 1, bias=False).weight -> (3*hidden, dim, 1); k=1 squeezed
        "w_qkv": jax.random.normal(k_qkv, (3 * hidden, dim), dtype=jnp.float32) * 0.1,
        # nn.Conv1d(hidden, dim, 1).weight / .bias
        "w_out": jax.random.normal(k_wo, (dim, hidden), dtype=jnp.float32) * 0.1,
        "b_out": jax.random.normal(k_bo, (dim,), dtype=jnp.float32) * 0.1,
    }

    fwd = jax.jit(partial(attention_forward, heads=heads, dim_head=dim_head,
                          q_tile=256, kv_tile=256))   # exercise the multi-tile flash path
    out = jax.block_until_ready(fwd(x, params))
    assert out.shape == (B, dim, N)

    ref = attention_forward_ref(x, params, heads=heads, dim_head=dim_head)
    np.testing.assert_allclose(np.asarray(out), np.asarray(ref), atol=1e-2, rtol=1e-2)

    print("KERNEL_OK")
</pallas_src>

<mosaic_0001>
module attributes {stable_mosaic.version = 11 : i64} {
  func.func @_conv1x1_kernel(%arg0: i32, %arg1: i32, %arg2: memref<1x8x512xf32, #tpu.memory_space<vmem>>, %arg3: memref<384x8xbf16, #tpu.memory_space<vmem>>, %arg4: memref<1x384x512xbf16, #tpu.memory_space<vmem>>) attributes {dimension_semantics = [#tpu.dimension_semantics<parallel>, #tpu.dimension_semantics<parallel>], iteration_bounds = array<i64: 2, 1>, scalar_prefetch = 0 : i64, scratch_operands = 0 : i64, tpu.core_type = #tpu.core_type<tc>, window_params = [{transform_indices = @transform_0, window_bounds = array<i64: 1, 8, 512>}, {pipeline_mode = #tpu.pipeline_mode<synchronous>, transform_indices = @transform_1, window_bounds = array<i64: 384, 8>}, {transform_indices = @transform_2, window_bounds = array<i64: 1, 384, 512>}]} {
    %c0 = arith.constant 0 : index
    %c0_0 = arith.constant 0 : index
    %0 = vector.load %arg3[%c0, %c0_0] : memref<384x8xbf16, #tpu.memory_space<vmem>>, vector<384x8xbf16>
    %c0_1 = arith.constant 0 : index
    %c0_2 = arith.constant 0 : index
    %c0_3 = arith.constant 0 : index
    %1 = vector.load %arg2[%c0_1, %c0_2, %c0_3] : memref<1x8x512xf32, #tpu.memory_space<vmem>>, vector<1x8x512xf32>
    %2 = vector.shape_cast %1 : vector<1x8x512xf32> to vector<8x512xf32>
    %3 = arith.truncf %2 : vector<8x512xf32> to vector<8x512xbf16>
    %cst = arith.constant dense<0.000000e+00> : vector<384x512xf32>
    %4 = tpu.matmul %0, %3, %cst {dimension_numbers = #tpu.dot_dimension_numbers<[1], [0], [0], [1], [0, 0, 1, 1], [], []>} : vector<384x8xbf16>, vector<8x512xbf16>, vector<384x512xf32> -> vector<384x512xf32>
    %5 = arith.truncf %4 : vector<384x512xf32> to vector<384x512xbf16>
    %c0_4 = arith.constant 0 : index
    %c0_5 = arith.constant 0 : index
    %c0_6 = arith.constant 0 : index
    %6 = vector.load %arg4[%c0_4, %c0_5, %c0_6] : memref<1x384x512xbf16, #tpu.memory_space<vmem>>, vector<1x384x512xbf16>
    %7 = vector.shape_cast %6 : vector<1x384x512xbf16> to vector<384x512xbf16>
    %8 = vector.shape_cast %5 : vector<384x512xbf16> to vector<1x384x512xbf16>
    tpu.vector_store %arg4[%c0_4, %c0_5, %c0_6], %8 {strides = array<i32>} : memref<1x384x512xbf16, #tpu.memory_space<vmem>>, vector<1x384x512xbf16>,
    return
  }
  func.func @transform_0(%arg0: i32, %arg1: i32) -> (i32, i32, i32) {
    %c0_i32 = arith.constant 0 : i32
    %c0_i32_0 = arith.constant 0 : i32
    return %arg0, %c0_i32, %arg1 : i32, i32, i32
  }
  func.func @transform_1(%arg0: i32, %arg1: i32) -> (i32, i32) {
    %c0_i32 = arith.constant 0 : i32
    %c0_i32_0 = arith.constant 0 : i32
    %c0_i32_1 = arith.constant 0 : i32
    return %c0_i32, %c0_i32_0 : i32, i32
  }
  func.func @transform_2(%arg0: i32, %arg1: i32) -> (i32, i32, i32) {
    %c0_i32 = arith.constant 0 : i32
    %c0_i32_0 = arith.constant 0 : i32
    return %arg0, %c0_i32, %arg1 : i32, i32, i32
  }
}

module attributes {stable_mosaic.version = 11 : i64} {
  func.func @_rope_channels_kernel(%arg0: i32, %arg1: i32, %arg2: memref<1x32x512xbf16, #tpu.memory_space<vmem>>, %arg3: memref<8x512xf32, #tpu.memory_space<vmem>>, %arg4: memref<8x512xf32, #tpu.memory_space<vmem>>, %arg5: memref<1x32x512xbf16, #tpu.memory_space<vmem>>) attributes {dimension_semantics = [#tpu.dimension_semantics<parallel>, #tpu.dimension_semantics<parallel>], iteration_bounds = array<i64: 8, 1>, scalar_prefetch = 0 : i64, scratch_operands = 0 : i64, tpu.core_type = #tpu.core_type<tc>, window_params = [{transform_indices = @transform_0, window_bounds = array<i64: 1, 32, 512>}, {transform_indices = @transform_1, window_bounds = array<i64: 8, 512>}, {transform_indices = @transform_2, window_bounds = array<i64: 8, 512>}, {transform_indices = @transform_3, window_bounds = array<i64: 1, 32, 512>}]} {
    %c0 = arith.constant 0 : index
    %c0_0 = arith.constant 0 : index
    %c0_1 = arith.constant 0 : index
    %0 = vector.load %arg2[%c0, %c0_0, %c0_1] : memref<1x32x512xbf16, #tpu.memory_space<vmem>>, vector<1x32x512xbf16>
    %1 = vector.shape_cast %0 : vector<1x32x512xbf16> to vector<32x512xbf16>
    %c0_2 = arith.constant 0 : index
    %c0_3 = arith.constant 0 : index
    %2 = vector.load %arg3[%c0_2, %c0_3] : memref<8x512xf32, #tpu.memory_space<vmem>>, vector<8x512xf32>
    %c0_4 = arith.constant 0 : index
    %c0_5 = arith.constant 0 : index
    %3 = vector.load %arg4[%c0_4, %c0_5] : memref<8x512xf32, #tpu.memory_space<vmem>>, vector<8x512xf32>
    %4 = vector.extract_strided_slice %1 {offsets = [0, 0], sizes = [8, 512], strides = [1, 1]} : vector<32x512xbf16> to vector<8x512xbf16>
    %5 = arith.extf %4 : vector<8x512xbf16> to vector<8x512xf32>
    %6 = vector.extract_strided_slice %1 {offsets = [8, 0], sizes = [8, 512], strides = [1, 1]} : vector<32x512xbf16> to vector<8x512xbf16>
    %7 = arith.extf %6 : vector<8x512xbf16> to vector<8x512xf32>
    %8 = arith.mulf %5, %2 : vector<8x512xf32>
    %9 = arith.mulf %7, %3 : vector<8x512xf32>
    %10 = arith.subf %8, %9 : vector<8x512xf32>
    %11 = arith.truncf %10 : vector<8x512xf32> to vector<8x512xbf16>
    %12 = arith.mulf %5, %3 : vector<8x512xf32>
    %13 = arith.mulf %7, %2 : vector<8x512xf32>
    %14 = arith.addf %12, %13 : vector<8x512xf32>
    %15 = arith.truncf %14 : vector<8x512xf32> to vector<8x512xbf16>
    %16 = vector.extract_strided_slice %1 {offsets = [16, 0], sizes = [16, 512], strides = [1, 1]} : vector<32x512xbf16> to vector<16x512xbf16>
    %17 = tpu.concatenate %11, %15, %16 in 0 : vector<8x512xbf16>, vector<8x512xbf16>, vector<16x512xbf16> -> vector<32x512xbf16>
    %c0_6 = arith.constant 0 : index
    %c0_7 = arith.constant 0 : index
    %c0_8 = arith.constant 0 : index
    %18 = vector.load %arg5[%c0_6, %c0_7, %c0_8] : memref<1x32x512xbf16, #tpu.memory_space<vmem>>, vector<1x32x512xbf16>
    %19 = vector.shape_cast %18 : vector<1x32x512xbf16> to vector<32x512xbf16>
    %20 = vector.shape_cast %17 : vector<32x512xbf16> to vector<1x32x512xbf16>
    tpu.vector_store %arg5[%c0_6, %c0_7, %c0_8], %20 {strides = array<i32>} : memref<1x32x512xbf16, #tpu.memory_space<vmem>>, vector<1x32x512xbf16>,
    return
  }
  func.func @transform_0(%arg0: i32, %arg1: i32) -> (i32, i32, i32) {
    %c0_i32 = arith.constant 0 : i32
    %c0_i32_0 = arith.constant 0 : i32
    return %arg0, %c0_i32, %arg1 : i32, i32, i32
  }
  func.func @transform_1(%arg0: i32, %arg1: i32) -> (i32, i32) {
    %c0_i32 = arith.constant 0 : i32
    %c0_i32_0 = arith.constant 0 : i32
    return %c0_i32, %arg1 : i32, i32
  }
  func.func @transform_2(%arg0: i32, %arg1: i32) -> (i32, i32) {
    %c0_i32 = arith.constant 0 : i32
    %c0_i32_0 = arith.constant 0 : i32
    return %c0_i32, %arg1 : i32, i32
  }
  func.func @transform_3(%arg0: i32, %arg1: i32) -> (i32, i32, i32) {
    %c0_i32 = arith.constant 0 : i32
    %c0_i32_0 = arith.constant 0 : i32
    return %arg0, %c0_i32, %arg1 : i32, i32, i32
  }
}

module attributes {stable_mosaic.version = 11 : i64} {
  func.func @_flash_attn_kernel(%arg0: i32, %arg1: i32, %arg2: i32, %arg3: memref<1x32x256xbf16, #tpu.memory_space<vmem>>, %arg4: memref<1x256x32xbf16, #tpu.memory_space<vmem>>, %arg5: memref<1x33x256xbf16, #tpu.memory_space<vmem>>, %arg6: memref<8x256xf32, #tpu.memory_space<vmem>>, %arg7: memref<8x256xf32, #tpu.memory_space<vmem>>, %arg8: memref<1x32x256xbf16, #tpu.memory_space<vmem>>, %arg9: memref<32x256xbf16, #tpu.memory_space<vmem>>, %arg10: memref<1x256xf32, #tpu.memory_space<vmem>>, %arg11: memref<33x256xf32, #tpu.memory_space<vmem>>) attributes {dimension_semantics = [#tpu.dimension_semantics<parallel>, #tpu.dimension_semantics<parallel>, #tpu.dimension_semantics<arbitrary>], iteration_bounds = array<i64: 8, 2, 2>, scalar_prefetch = 0 : i64, scratch_operands = 3 : i64, tpu.core_type = #tpu.core_type<tc>, window_params = [{transform_indices = @transform_0, window_bounds = array<i64: 1, 32, 256>}, {transform_indices = @transform_1, window_bounds = array<i64: 1, 256, 32>}, {transform_indices = @transform_2, window_bounds = array<i64: 1, 33, 256>}, {transform_indices = @transform_3, window_bounds = array<i64: 8, 256>}, {transform_indices = @transform_4, window_bounds = array<i64: 8, 256>}, {transform_indices = @transform_5, window_bounds = array<i64: 1, 32, 256>}]} {
    %c0_i32 = arith.constant 0 : i32
    %0 = arith.cmpi eq, %arg2, %c0_i32 : i32
    %1 = arith.extui %0 : i1 to i32
    %c0_i32_0 = arith.constant 0 : i32
    %2 = arith.cmpi ne, %1, %c0_i32_0 : i32
    scf.if %2 {
      %c0_19 = arith.constant 0 : index
      %c0_20 = arith.constant 0 : index
      %c0_21 = arith.constant 0 : index
      %29 = vector.load %arg3[%c0_19, %c0_20, %c0_21] : memref<1x32x256xbf16, #tpu.memory_space<vmem>>, vector<1x32x256xbf16>
      %30 = vector.shape_cast %29 : vector<1x32x256xbf16> to vector<32x256xbf16>
      %31 = vector.extract_strided_slice %30 {offsets = [0, 0], sizes = [8, 256], strides = [1, 1]} : vector<32x256xbf16> to vector<8x256xbf16>
      %32 = arith.extf %31 : vector<8x256xbf16> to vector<8x256xf32>
      %33 = vector.extract_strided_slice %30 {offsets = [8, 0], sizes = [8, 256], strides = [1, 1]} : vector<32x256xbf16> to vector<8x256xbf16>
      %34 = arith.extf %33 : vector<8x256xbf16> to vector<8x256xf32>
      %c0_22 = arith.constant 0 : index
      %c0_23 = arith.constant 0 : index
      %35 = vector.load %arg6[%c0_22, %c0_23] : memref<8x256xf32, #tpu.memory_space<vmem>>, vector<8x256xf32>
      %c0_24 = arith.constant 0 : index
      %c0_25 = arith.constant 0 : index
      %36 = vector.load %arg7[%c0_24, %c0_25] : memref<8x256xf32, #tpu.memory_space<vmem>>, vector<8x256xf32>
      %37 = arith.mulf %32, %35 : vector<8x256xf32>
      %38 = arith.mulf %34, %36 : vector<8x256xf32>
      %39 = arith.subf %37, %38 : vector<8x256xf32>
      %40 = arith.truncf %39 : vector<8x256xf32> to vector<8x256xbf16>
      %41 = arith.mulf %32, %36 : vector<8x256xf32>
      %42 = arith.mulf %34, %35 : vector<8x256xf32>
      %43 = arith.addf %41, %42 : vector<8x256xf32>
      %44 = arith.truncf %43 : vector<8x256xf32> to vector<8x256xbf16>
      %45 = vector.extract_strided_slice %30 {offsets = [16, 0], sizes = [16, 256], strides = [1, 1]} : vector<32x256xbf16> to vector<16x256xbf16>
      %46 = tpu.concatenate %40, %44, %45 in 0 : vector<8x256xbf16>, vector<8x256xbf16>, vector<16x256xbf16> -> vector<32x256xbf16>
      %c0_26 = arith.constant 0 : index
      %c0_27 = arith.constant 0 : index
      %47 = vector.load %arg9[%c0_26, %c0_27] : memref<32x256xbf16, #tpu.memory_space<vmem>>, vector<32x256xbf16>
      tpu.vector_store %arg9[%c0_26, %c0_27], %46 {strides = array<i32>} : memref<32x256xbf16, #tpu.memory_space<vmem>>, vector<32x256xbf16>,
      %cst_28 = arith.constant 0xFF800000 : f32
      %48 = vector.broadcast %cst_28 : f32 to vector<1x256xf32>
      %c0_29 = arith.constant 0 : index
      %c0_30 = arith.constant 0 : index
      %49 = vector.load %arg10[%c0_29, %c0_30] : memref<1x256xf32, #tpu.memory_space<vmem>>, vector<1x256xf32>
      tpu.vector_store %arg10[%c0_29, %c0_30], %48 {strides = array<i32>} : memref<1x256xf32, #tpu.memory_space<vmem>>, vector<1x256xf32>,
      %cst_31 = arith.constant 0.000000e+00 : f32
      %50 = vector.broadcast %cst_31 : f32 to vector<33x256xf32>
      %c0_32 = arith.constant 0 : index
      %c0_33 = arith.constant 0 : index
      %51 = vector.load %arg11[%c0_32, %c0_33] : memref<33x256xf32, #tpu.memory_space<vmem>>, vector<33x256xf32>
      tpu.vector_store %arg11[%c0_32, %c0_33], %50 {strides = array<i32>} : memref<33x256xf32, #tpu.memory_space<vmem>>, vector<33x256xf32>,
    } else {
    }
    %c0 = arith.constant 0 : index
    %c0_1 = arith.constant 0 : index
    %c0_2 = arith.constant 0 : index
    %3 = vector.load %arg4[%c0, %c0_1, %c0_2] : memref<1x256x32xbf16, #tpu.memory_space<vmem>>, vector<1x256x32xbf16>
    %4 = vector.shape_cast %3 : vector<1x256x32xbf16> to vector<256x32xbf16>
    %c0_3 = arith.constant 0 : index
    %c0_4 = arith.constant 0 : index
    %5 = vector.load %arg9[%c0_3, %c0_4] : memref<32x256xbf16, #tpu.memory_space<vmem>>, vector<32x256xbf16>
    %cst = arith.constant dense<0.000000e+00> : vector<256x256xf32>
    %6 = tpu.matmul %4, %5, %cst {dimension_numbers = #tpu.dot_dimension_numbers<[1], [0], [0], [1], [0, 0, 1, 1], [], []>} : vector<256x32xbf16>, vector<32x256xbf16>, vector<256x256xf32> -> vector<256x256xf32>
    %c0_5 = arith.constant 0 : index
    %c0_6 = arith.constant 0 : index
    %7 = vector.load %arg10[%c0_5, %c0_6] : memref<1x256xf32, #tpu.memory_space<vmem>>, vector<1x256xf32>
    %cst_7 = arith.constant dense<0xFF800000> : vector<256xf32>
    %8 = vector.multi_reduction <maximumf>, %6, %cst_7 [0] : vector<256x256xf32> to vector<256xf32>
    %9 = vector.shape_cast %8 : vector<256xf32> to vector<1x256xf32>
    %10 = arith.maximumf %7, %9 : vector<1x256xf32>
    %11 = arith.subf %7, %10 : vector<1x256xf32>
    %12 = math.exp %11 : vector<1x256xf32>
    %13 = vector.broadcast %10 : vector<1x256xf32> to vector<256x256xf32>
    %14 = arith.subf %6, %13 : vector<256x256xf32>
    %15 = arith.truncf %14 : vector<256x256xf32> to vector<256x256xbf16>
    %16 = math.exp %15 : vector<256x256xbf16>
    %c0_8 = arith.constant 0 : index
    %c0_9 = arith.constant 0 : index
    %c0_10 = arith.constant 0 : index
    %17 = vector.load %arg5[%c0_8, %c0_9, %c0_10] : memref<1x33x256xbf16, #tpu.memory_space<vmem>>, vector<1x33x256xbf16>
    %18 = vector.shape_cast %17 : vector<1x33x256xbf16> to vector<33x256xbf16>
    %cst_11 = arith.constant dense<0.000000e+00> : vector<33x256xf32>
    %19 = tpu.matmul %18, %16, %cst_11 {dimension_numbers = #tpu.dot_dimension_numbers<[1], [0], [0], [1], [0, 0, 1, 1], [], []>} : vector<33x256xbf16>, vector<256x256xbf16>, vector<33x256xf32> -> vector<33x256xf32>
    %c0_12 = arith.constant 0 : index
    %c0_13 = arith.constant 0 : index
    %20 = vector.load %arg11[%c0_12, %c0_13] : memref<33x256xf32, #tpu.memory_space<vmem>>, vector<33x256xf32>
    %21 = vector.broadcast %12 : vector<1x256xf32> to vector<33x256xf32>
    %22 = arith.mulf %21, %20 : vector<33x256xf32>
    %23 = arith.addf %22, %19 : vector<33x256xf32>
    %c0_14 = arith.constant 0 : index
    %c0_15 = arith.constant 0 : index
    %24 = vector.load %arg11[%c0_14, %c0_15] : memref<33x256xf32, #tpu.memory_space<vmem>>, vector<33x256xf32>
    tpu.vector_store %arg11[%c0_14, %c0_15], %23 {strides = array<i32>} : memref<33x256xf32, #tpu.memory_space<vmem>>, vector<33x256xf32>,
    %c0_16 = arith.constant 0 : index
    %c0_17 = arith.constant 0 : index
    %25 = vector.load %arg10[%c0_16, %c0_17] : memref<1x256xf32, #tpu.memory_space<vmem>>, vector<1x256xf32>
    tpu.vector_store %arg10[%c0_16, %c0_17], %10 {strides = array<i32>} : memref<1x256xf32, #tpu.memory_space<vmem>>, vector<1x256xf32>,
    %c1_i32 = arith.constant 1 : i32
    %26 = arith.cmpi eq, %arg2, %c1_i32 : i32
    %27 = arith.extui %26 : i1 to i32
    %c0_i32_18 = arith.constant 0 : i32
    %28 = arith.cmpi ne, %27, %c0_i32_18 : i32
    scf.if %28 {
      %c0_19 = arith.constant 0 : index
      %c0_20 = arith.constant 0 : index
      %29 = vector.load %arg11[%c0_19, %c0_20] : memref<33x256xf32, #tpu.memory_space<vmem>>, vector<33x256xf32>
      %30 = vector.extract_strided_slice %29 {offsets = [32, 0], sizes = [1, 256], strides = [1, 1]} : vector<33x256xf32> to vector<1x256xf32>
      %31 = tpu.reciprocal %30 {approx = true} : vector<1x256xf32> -> vector<1x256xf32>
      %32 = vector.extract_strided_slice %29 {offsets = [0, 0], sizes = [32, 256], strides = [1, 1]} : vector<33x256xf32> to vector<32x256xf32>
      %33 = vector.broadcast %31 : vector<1x256xf32> to vector<32x256xf32>
      %34 = arith.mulf %32, %33 : vector<32x256xf32>
      %35 = arith.truncf %34 : vector<32x256xf32> to vector<32x256xbf16>
      %c0_21 = arith.constant 0 : index
      %c0_22 = arith.constant 0 : index
      %c0_23 = arith.constant 0 : index
      %36 = vector.load %arg8[%c0_21, %c0_22, %c0_23] : memref<1x32x256xbf16, #tpu.memory_space<vmem>>, vector<1x32x256xbf16>
      %37 = vector.shape_cast %36 : vector<1x32x256xbf16> to vector<32x256xbf16>
      %38 = vector.shape_cast %35 : vector<32x256xbf16> to vector<1x32x256xbf16>
      tpu.vector_store %arg8[%c0_21, %c0_22, %c0_23], %38 {strides = array<i32>} : memref<1x32x256xbf16, #tpu.memory_space<vmem>>, vector<1x32x256xbf16>,
    } else {
    }
    return
  }
  func.func @transform_0(%arg0: i32, %arg1: i32, %arg2: i32) -> (i32, i32, i32) {
    %c0_i32 = arith.constant 0 : i32
    %c0_i32_0 = arith.constant 0 : i32
    return %arg0, %c0_i32, %arg1 : i32, i32, i32
  }
  func.func @transform_1(%arg0: i32, %arg1: i32, %arg2: i32) -> (i32, i32, i32) {
    %c0_i32 = arith.constant 0 : i32
    %c0_i32_0 = arith.constant 0 : i32
    return %arg0, %arg2, %c0_i32 : i32, i32, i32
  }
  func.func @transform_2(%arg0: i32, %arg1: i32, %arg2: i32) -> (i32, i32, i32) {
    %c0_i32 = arith.constant 0 : i32
    %c0_i32_0 = arith.constant 0 : i32
    return %arg0, %c0_i32, %arg2 : i32, i32, i32
  }
  func.func @transform_3(%arg0: i32, %arg1: i32, %arg2: i32) -> (i32, i32) {
    %c0_i32 = arith.constant 0 : i32
    %c0_i32_0 = arith.constant 0 : i32
    return %c0_i32, %arg1 : i32, i32
  }
  func.func @transform_4(%arg0: i32, %arg1: i32, %arg2: i32) -> (i32, i32) {
    %c0_i32 = arith.constant 0 : i32
    %c0_i32_0 = arith.constant 0 : i32
    return %c0_i32, %arg1 : i32, i32
  }
  func.func @transform_5(%arg0: i32, %arg1: i32, %arg2: i32) -> (i32, i32, i32) {
    %c0_i32 = arith.constant 0 : i32
    %c0_i32_0 = arith.constant 0 : i32
    return %arg0, %c0_i32, %arg1 : i32, i32, i32
  }
}

module attributes {stable_mosaic.version = 11 : i64} {
  func.func @_conv1x1_bias_kernel(%arg0: i32, %arg1: i32, %arg2: memref<1x128x512xbf16, #tpu.memory_space<vmem>>, %arg3: memref<8x128xbf16, #tpu.memory_space<vmem>>, %arg4: memref<8x1xf32, #tpu.memory_space<vmem>>, %arg5: memref<1x8x512xf32, #tpu.memory_space<vmem>>) attributes {dimension_semantics = [#tpu.dimension_semantics<parallel>, #tpu.dimension_semantics<parallel>], iteration_bounds = array<i64: 2, 1>, scalar_prefetch = 0 : i64, scratch_operands = 0 : i64, tpu.core_type = #tpu.core_type<tc>, window_params = [{transform_indices = @transform_0, window_bounds = array<i64: 1, 128, 512>}, {pipeline_mode = #tpu.pipeline_mode<synchronous>, transform_indices = @transform_1, window_bounds = array<i64: 8, 128>}, {pipeline_mode = #tpu.pipeline_mode<synchronous>, transform_indices = @transform_2, window_bounds = array<i64: 8, 1>}, {transform_indices = @transform_3, window_bounds = array<i64: 1, 8, 512>}]} {
    %c0 = arith.constant 0 : index
    %c0_0 = arith.constant 0 : index
    %0 = vector.load %arg3[%c0, %c0_0] : memref<8x128xbf16, #tpu.memory_space<vmem>>, vector<8x128xbf16>
    %c0_1 = arith.constant 0 : index
    %c0_2 = arith.constant 0 : index
    %c0_3 = arith.constant 0 : index
    %1 = vector.load %arg2[%c0_1, %c0_2, %c0_3] : memref<1x128x512xbf16, #tpu.memory_space<vmem>>, vector<1x128x512xbf16>
    %2 = vector.shape_cast %1 : vector<1x128x512xbf16> to vector<128x512xbf16>
    %cst = arith.constant dense<0.000000e+00> : vector<8x512xf32>
    %3 = tpu.matmul %0, %2, %cst {dimension_numbers = #tpu.dot_dimension_numbers<[1], [0], [0], [1], [0, 0, 1, 1], [], []>} : vector<8x128xbf16>, vector<128x512xbf16>, vector<8x512xf32> -> vector<8x512xf32>
    %c0_4 = arith.constant 0 : index
    %c0_5 = arith.constant 0 : index
    %4 = vector.load %arg4[%c0_4, %c0_5] : memref<8x1xf32, #tpu.memory_space<vmem>>, vector<8x1xf32>
    %5 = vector.broadcast %4 : vector<8x1xf32> to vector<8x512xf32>
    %6 = arith.addf %3, %5 : vector<8x512xf32>
    %c0_6 = arith.constant 0 : index
    %c0_7 = arith.constant 0 : index
    %c0_8 = arith.constant 0 : index
    %7 = vector.load %arg5[%c0_6, %c0_7, %c0_8] : memref<1x8x512xf32, #tpu.memory_space<vmem>>, vector<1x8x512xf32>
    %8 = vector.shape_cast %7 : vector<1x8x512xf32> to vector<8x512xf32>
    %9 = vector.shape_cast %6 : vector<8x512xf32> to vector<1x8x512xf32>
    tpu.vector_store %arg5[%c0_6, %c0_7, %c0_8], %9 {strides = array<i32>} : memref<1x8x512xf32, #tpu.memory_space<vmem>>, vector<1x8x512xf32>,
    return
  }
  func.func @transform_0(%arg0: i32, %arg1: i32) -> (i32, i32, i32) {
    %c0_i32 = arith.constant 0 : i32
    %c0_i32_0 = arith.constant 0 : i32
    return %arg0, %c0_i32, %arg1 : i32, i32, i32
  }
  func.func @transform_1(%arg0: i32, %arg1: i32) -> (i32, i32) {
    %c0_i32 = arith.constant 0 : i32
    %c0_i32_0 = arith.constant 0 : i32
    %c0_i32_1 = arith.constant 0 : i32
    return %c0_i32, %c0_i32_0 : i32, i32
  }
  func.func @transform_2(%arg0: i32, %arg1: i32) -> (i32, i32) {
    %c0_i32 = arith.constant 0 : i32
    %c0_i32_0 = arith.constant 0 : i32
    %c0_i32_1 = arith.constant 0 : i32
    return %c0_i32, %c0_i32_0 : i32, i32
  }
  func.func @transform_3(%arg0: i32, %arg1: i32) -> (i32, i32, i32) {
    %c0_i32 = arith.constant 0 : i32
    %c0_i32_0 = arith.constant 0 : i32
    return %arg0, %c0_i32, %arg1 : i32, i32, i32
  }
}

</mosaic_0001>

<llo_original>
// kernel: attention_forward.5
$region0: #{attention_forward.5}
  #allocation0 [shape = 'u32[]', space=smem, size = 0x4, offset = 0x4, fixed_abs, tag = 'smem constant byte address 0x4 - core index']
  #allocation1 [shape = 'u32[144,128]{1,0:T(1,128)}', space=vmem, size = 0x12000, scoped, tag = 'internal scratch']
  %s0 = inlined_call_operand.hbm [shape: bf16[8,32,512], index: 0, kind: input, shape index: {}]
  %s1 = inlined_call_operand.hbm [shape: f32[8,512], index: 1, kind: input, shape index: {}]
  %s2 = inlined_call_operand.hbm [shape: f32[8,512], index: 2, kind: input, shape index: {}]
  %s3 = inlined_call_operand.hbm [shape: bf16[8,32,512], index: 3, kind: output, shape index: {}]
  %s4 = sld [smem:[#allocation0]]
  $region57: #{attention_forward.5} parent=0
    _
  %s6 = ssub.s32 1, %s4
  %s7 = scalar_select 0, %s6, %s4
  $region1: #{attention_forward.5} parent=0
    #allocation2 [shape = 'u8[65536]{0}', space=vmem, size = 0x10000, scoped, tag = 'input window, operand 0']
    #allocation3 [shape = 's32[2]{0}', space=sflag, size = 0x8, scoped, tag = 'scoped memory for attention_forward.5']
    #allocation4 [shape = 's32[2]{0}', space=sflag, size = 0x8, scoped, tag = 'scoped memory for attention_forward.5']
    #allocation5 [shape = 'u8[16384]{0}', space=vmem, size = 0x4000, scoped, tag = 'input window, operand 1, single buffered']
    #allocation6 [shape = 's32[1]{0}', space=sflag, size = 0x4, scoped, tag = 'scoped memory for attention_forward.5']
    #allocation7 [shape = 'u8[16384]{0}', space=vmem, size = 0x4000, scoped, tag = 'input window, operand 2, single buffered']
    #allocation8 [shape = 'u8[65536]{0}', space=vmem, size = 0x10000, scoped, tag = 'output window, operand 0']
    %8 = vsyncpa [#allocation3], 0
    %s9 = scalar_lea.sflag [#allocation3], 1
    %10 = vsyncpa %s9, 0
    %11 = vsyncpa [#allocation6], 0
    %12 = vsyncpa [#allocation4], 0
    %s13 = scalar_lea.sflag [#allocation4], 1
    %14 = vsyncpa %s13, 0
    loop: start=0, step=1, limit=10
    $region2: #{attention_forward.5} parent=1 // loop_pre_header
      _
    $region3: #{attention_forward.5} parent=1 // loop_header
      %s16 = sphi 0, %s20
      %p17 = scmp.ge.s32.totalorder %s16, 10
      %s23 = sphi 0, %s35
      %s24 = sphi 0, %s31
      %s25 = sphi 0, %s23
      %s26 = sphi 0, %s24
      %s27 = sphi 0, %s25
      %s28 = sphi 0, %s26
      %s40 = sphi 0, %s42
      %s43 = sphi 0, %s40
      %s44 = sphi 0, %s43
      %s60 = sphi 0, %s44
      %s66 = sphi 0, %s68
      %s69 = sphi 0, %s66
      %s70 = sphi 0, %s69
      %s86 = sphi 0, %s70
      %s92 = sphi 0, %s94
      %s95 = sphi 0, %s92
      %s96 = sphi 0, %s95
      %s112 = sphi 0, %s96
      %s120 = sphi 0, %s122
      %s123 = sphi 0, %s120
      %s124 = sphi 0, %s123
      %s140 = sphi 0, %s124
    $region4: #{attention_forward.5} parent=1 // loop_header_branch
      %19 = sbr.rel (%p17) target = $region8
    $region5: #{attention_forward.5} parent=1 // loop_body
      %s21 = ssub.s32 %s16, 1
      %s22 = ssub.s32 %s16, 2
      %s29 = sadd.s32 1, %s24
      %p30 = scmp.ge.s32.totalorder %s29, 1
      %s31 = scalar_select %p30, 0, %s29
      %s32 = sadd.s32 1, %s23
      %s33 = scalar_select %p30, %s32, %s23
      %p34 = scmp.ge.s32.totalorder %s33, 8
      %s35 = scalar_select %p34, 0, %s33
      %s36 = ssub.s32 %s23, %s35
      %s37 = ssub.s32 %s24, %s31
      %s38 = sor.u32 %s36, %s37
      %p39 = scmp.eq.s32.totalorder %s38, 0
      %s41 = sadd.s32 %s40, 1
      %s42 = scalar_select %p39, %s40, %s41
      %p45 = pneg %p39
      %p46 = scmp.eq.s32.totalorder %s16, 7
      %p47 = por %p45, %p46
      %p48 = scmp.ne.s32.totalorder %s40, %s43
      %p49 = scmp.eq.s32.totalorder %s16, 0
      %p50 = por %p48, %p49
      %p51 = scmp.ne.s32.totalorder %s40, %s43
      %p52 = scmp.eq.s32.totalorder %s21, 7
      %p53 = por %p51, %p52
      %p54 = scmp.ne.s32.totalorder %s43, %s44
      %p55 = scmp.eq.s32.totalorder %s21, 0
      %p56 = por %p54, %p55
      %p57 = scmp.ne.s32.totalorder %s43, %s44
      %p58 = scmp.eq.s32.totalorder %s22, 7
      %p59 = por %p57, %p58
      %p61 = scmp.ne.s32.totalorder %s44, %s60
      %p62 = scmp.eq.s32.totalorder %s22, 0
      %p63 = por %p61, %p62
      %s64 = ssub.s32 %s24, %s31
      %p65 = scmp.eq.s32.totalorder %s64, 0
      %s67 = sadd.s32 %s66, 1
      %s68 = scalar_select %p65, %s66, %s67
      %p71 = pneg %p65
      %p72 = scmp.eq.s32.totalorder %s16, 7
      %p73 = por %p71, %p72
      %p74 = scmp.ne.s32.totalorder %s66, %s69
      %p75 = scmp.eq.s32.totalorder %s16, 0
      %p76 = por %p74, %p75
      %p77 = scmp.ne.s32.totalorder %s66, %s69
      %p78 = scmp.eq.s32.totalorder %s21, 7
      %p79 = por %p77, %p78
      %p80 = scmp.ne.s32.totalorder %s69, %s70
      %p81 = scmp.eq.s32.totalorder %s21, 0
      %p82 = por %p80, %p81
      %p83 = scmp.ne.s32.totalorder %s69, %s70
      %p84 = scmp.eq.s32.totalorder %s22, 7
      %p85 = por %p83, %p84
      %p87 = scmp.ne.s32.totalorder %s70, %s86
      %p88 = scmp.eq.s32.totalorder %s22, 0
      %p89 = por %p87, %p88
      %s90 = ssub.s32 %s24, %s31
      %p91 = scmp.eq.s32.totalorder %s90, 0
      %s93 = sadd.s32 %s92, 1
      %s94 = scalar_select %p91, %s92, %s93
      %p97 = pneg %p91
      %p98 = scmp.eq.s32.totalorder %s16, 7
      %p99 = por %p97, %p98
      %p100 = scmp.ne.s32.totalorder %s92, %s95
      %p101 = scmp.eq.s32.totalorder %s16, 0
      %p102 = por %p100, %p101
      %p103 = scmp.ne.s32.totalorder %s92, %s95
      %p104 = scmp.eq.s32.totalorder %s21, 7
      %p105 = por %p103, %p104
      %p106 = scmp.ne.s32.totalorder %s95, %s96
      %p107 = scmp.eq.s32.totalorder %s21, 0
      %p108 = por %p106, %p107
      %p109 = scmp.ne.s32.totalorder %s95, %s96
      %p110 = scmp.eq.s32.totalorder %s22, 7
      %p111 = por %p109, %p110
      %p113 = scmp.ne.s32.totalorder %s96, %s112
      %p114 = scmp.eq.s32.totalorder %s22, 0
      %p115 = por %p113, %p114
      %s116 = ssub.s32 %s23, %s35
      %s117 = ssub.s32 %s24, %s31
      %s118 = sor.u32 %s116, %s117
      %p119 = scmp.eq.s32.totalorder %s118, 0
      %s121 = sadd.s32 %s120, 1
      %s122 = scalar_select %p119, %s120, %s121
      %p125 = pneg %p119
      %p126 = scmp.eq.s32.totalorder %s16, 7
      %p127 = por %p125, %p126
      %p128 = scmp.ne.s32.totalorder %s120, %s123
      %p129 = scmp.eq.s32.totalorder %s16, 0
      %p130 = por %p128, %p129
      %p131 = scmp.ne.s32.totalorder %s120, %s123
      %p132 = scmp.eq.s32.totalorder %s21, 7
      %p133 = por %p131, %p132
      %p134 = scmp.ne.s32.totalorder %s123, %s124
      %p135 = scmp.eq.s32.totalorder %s21, 0
      %p136 = por %p134, %p135
      %p137 = scmp.ne.s32.totalorder %s123, %s124
      %p138 = scmp.eq.s32.totalorder %s22, 7
      %p139 = por %p137, %p138
      %p141 = scmp.ne.s32.totalorder %s124, %s140
      %p142 = scmp.eq.s32.totalorder %s22, 0
      %p143 = por %p141, %p142
      %p144 = scmp.le.s32.totalorder 1, %s16
      %p145 = scmp.lt.s32.totalorder %s16, 9
      %p146 = pnand %p144, %p145
      %p147 = pneg %p146
      // Predicated region
      $region9: #{attention_forward.5} parent=5 // pred_check
        _
      $region10: #{attention_forward.5} parent=5 // pred_check_branch
        %149 = sbr.rel (%p146) target = $region12
      $region11: #{attention_forward.5} parent=5 // pred_region
        %s150 = ssub.s32 %s16, 1
        // Predicated region
        $region13: #{attention_forward.5} parent=11 // pred_check
          %p151 = pneg %p82
        $region14: #{attention_forward.5} parent=11 // pred_check_branch
          %153 = sbr.rel (%p151) target = $region16
        $region15: #{attention_forward.5} parent=11 // pred_region
          %s154 = smul.u32 4, %s26
          %s156 = ssub.s32 512, 512
          %157 = vsyncadd [#allocation6], %s156
          %s158 = smul.addr %s154, 128
          %s159 = scalar_lea.hbm %s1, %s158
          %s161 = sshll.u32 [#allocation5], 4
          %s162 = int_to_ptr.vmem [resolvable:$true] %s161
          %164 = dma.hbm_to_vmem [thread:$0]  %s159, 512, %s162, [#allocation6]
        $region16: #{attention_forward.5} parent=11 // pred_fallthru
          _
        // Predicated region
        $region17: #{attention_forward.5} parent=11 // pred_check
          %p165 = pneg %p108
        $region18: #{attention_forward.5} parent=11 // pred_check_branch
          %167 = sbr.rel (%p165) target = $region20
        $region19: #{attention_forward.5} parent=11 // pred_region
          %s168 = smul.u32 4, %s26
          %s170 = ssub.s32 512, 512
          %171 = vsyncadd [#allocation6], %s170
          %s172 = smul.addr %s168, 128
          %s173 = scalar_lea.hbm %s2, %s172
          %s175 = sshll.u32 [#allocation7], 4
          %s176 = int_to_ptr.vmem [resolvable:$true] %s175
          %178 = dma.hbm_to_vmem [thread:$0]  %s173, 512, %s176, [#allocation6]
        $region20: #{attention_forward.5} parent=11 // pred_fallthru
          _
      $region12: #{attention_forward.5} parent=5 // pred_fallthru
        _
      %p179 = scmp.lt.s32.totalorder %s16, 8
      // Predicated region
      $region21: #{attention_forward.5} parent=5 // pred_check
        %p180 = pneg %p179
      $region22: #{attention_forward.5} parent=5 // pred_check_branch
        %182 = sbr.rel (%p180) target = $region24
      $region23: #{attention_forward.5} parent=5 // pred_region
        // Predicated region
        $region25: #{attention_forward.5} parent=23 // pred_check
          %p183 = pneg %p50
        $region26: #{attention_forward.5} parent=23 // pred_check_branch
          %185 = sbr.rel (%p183) target = $region28
        $region27: #{attention_forward.5} parent=23 // pred_region
          %s186 = sand.u32 %s40, 1
          %s187 = scalar_lea.sflag [#allocation3], %s186
          %s188 = sand.u32 %s40, 1
          %s189 = smul.addr %s188, 64
          %s190 = scalar_lea.vmem [#allocation2], %s189
          %s191 = smul.u32 4, %s24
          %s193 = ssub.s32 1024, 1024
          %194 = vsyncadd %s187, %s193
          %s195 = smul.addr %s23, 16
          %s196 = sadd.s32 %s191, %s195
          %s197 = smul.addr %s196, 64
          %s198 = scalar_lea.hbm %s0, %s197
          %s199 = sshll.u32 %s190, 4
          %s200 = int_to_ptr.vmem [resolvable:$true] %s199
          %205 = dma.hbm_to_vmem [thread:$0]  %s198, 1024, %s200, %s187, 256, 256, 16
        $region28: #{attention_forward.5} parent=23 // pred_fallthru
          _
      $region24: #{attention_forward.5} parent=5 // pred_fallthru
        _
      %p206 = scmp.le.s32.totalorder 1, %s16
      %p207 = scmp.lt.s32.totalorder %s16, 9
      %p208 = pnand %p206, %p207
      %p209 = pneg %p208
      // Predicated region
      $region29: #{attention_forward.5} parent=5 // pred_check
        _
      $region30: #{attention_forward.5} parent=5 // pred_check_branch
        %211 = sbr.rel (%p208) target = $region32
      $region31: #{attention_forward.5} parent=5 // pred_region
        %s212 = ssub.s32 %s16, 1
        %s213 = sand.u32 %s43, 1
        %s214 = scalar_lea.sflag [#allocation3], %s213
        %s215 = sand.u32 %s43, 1
        %s216 = smul.addr %s215, 64
        %s217 = scalar_lea.vmem [#allocation2], %s216
        // Predicated region
        $region33: #{attention_forward.5} parent=31 // pred_check
          %p218 = pneg %p56
        $region34: #{attention_forward.5} parent=31 // pred_check_branch
          %220 = sbr.rel (%p218) target = $region36
        $region35: #{attention_forward.5} parent=31 // pred_region
          %221 = dma.done %s214, 1024
        $region36: #{attention_forward.5} parent=31 // pred_fallthru
          _
        // Predicated region
        $region37: #{attention_forward.5} parent=31 // pred_check
          %p222 = pneg %p82
        $region38: #{attention_forward.5} parent=31 // pred_check_branch
          %224 = sbr.rel (%p222) target = $region40
        $region39: #{attention_forward.5} parent=31 // pred_region
          %225 = dma.done [#allocation6], 512
        $region40: #{attention_forward.5} parent=31 // pred_fallthru
          _
        // Predicated region
        $region41: #{attention_forward.5} parent=31 // pred_check
          %p226 = pneg %p108
        $region42: #{attention_forward.5} parent=31 // pred_check_branch
          %228 = sbr.rel (%p226) target = $region44
        $region43: #{attention_forward.5} parent=31 // pred_region
          %229 = dma.done [#allocation6], 512
        $region44: #{attention_forward.5} parent=31 // pred_fallthru
          _
        %s230 = sand.u32 %s43, 1
        %s231 = scalar_lea.sflag [#allocation3], %s230
        %s232 = sand.u32 %s43, 1
        %s233 = smul.addr %s232, 64
        %s234 = scalar_lea.vmem [#allocation2], %s233
        %p235 = pneg %p56
        %p236 = pneg %p53
        %p237 = pneg %p82
        %p238 = pneg %p79
        %p239 = pneg %p108
        %p240 = pneg %p105
        %p241 = pneg %p136
        %p242 = pneg %p133
        %s243 = sand.u32 %s123, 1
        %s244 = scalar_lea.sflag [#allocation4], %s243
        %s245 = sand.u32 %s123, 1
        %s246 = smul.addr %s245, 64
        %s247 = scalar_lea.vmem [#allocation8], %s246
        %s248 = smul.u32 4, %s26
        %s249 = smul.u32 4, %s26
        %s250 = smul.u32 4, %s26
        %s251 = smul.u32 4, %s26
        %v252 = vld [vmem:[%s217] sm:$0xff]
        %v253 = vld [vmem:[%s217 + $0x8] sm:$0xff]
        %v254 = vld [vmem:[%s217 + $0x10] sm:$0xff]
        %v255 = vld [vmem:[%s217 + $0x18] sm:$0xff]
        %v256 = vld [vmem:[%s217 + $0x20] sm:$0xff]
        %v257 = vld [vmem:[%s217 + $0x28] sm:$0xff]
        %v258 = vld [vmem:[%s217 + $0x30] sm:$0xff]
        %v259 = vld [vmem:[%s217 + $0x38] sm:$0xff]
        %v260 = vld [vmem:[#allocation5] sm:$0xff]
        %v261 = vld [vmem:[#allocation5 + $0x8] sm:$0xff]
        %v262 = vld [vmem:[#allocation5 + $0x10] sm:$0xff]
        %v263 = vld [vmem:[#allocation5 + $0x18] sm:$0xff]
        %v264 = vld [vmem:[#allocation7] sm:$0xff]
        %v265 = vld [vmem:[#allocation7 + $0x8] sm:$0xff]
        %v266 = vld [vmem:[#allocation7 + $0x10] sm:$0xff]
        %v267 = vld [vmem:[#allocation7 + $0x18] sm:$0xff]
        %v268 = vunpack.c.l.bf16 %v252
        %v269 = vunpack.c.h.bf16 %v252
        %v270 = vunpack.c.l.bf16 %v253
        %v271 = vunpack.c.h.bf16 %v253
        %v272 = vunpack.c.l.bf16 %v254
        %v273 = vunpack.c.h.bf16 %v254
        %v274 = vunpack.c.l.bf16 %v255
        %v275 = vunpack.c.h.bf16 %v255
        %v276 = vmul.f32 %v268, %v260
        %v277 = vmul.f32 %v269, %v261
        %v278 = vmul.f32 %v270, %v262
        %v279 = vmul.f32 %v271, %v263
        %v280 = vmul.f32 %v272, %v264
        %v281 = vmul.f32 %v273, %v265
        %v282 = vmul.f32 %v274, %v266
        %v283 = vmul.f32 %v275, %v267
        %v284 = vsub.f32 %v276, %v280
        %v285 = vsub.f32 %v277, %v281
        %v286 = vsub.f32 %v278, %v282
        %v287 = vsub.f32 %v279, %v283
        %v288 = vpack.c.bf16 %v284, %v284
        %v289 = vpack.c.bf16 %v285, %v285
        %v290 = vpack.c.bf16 %v286, %v286
        %v291 = vpack.c.bf16 %v287, %v287
        %v292 = vmul.f32 %v268, %v264
        %v293 = vmul.f32 %v269, %v265
        %v294 = vmul.f32 %v270, %v266
        %v295 = vmul.f32 %v271, %v267
        %v296 = vmul.f32 %v272, %v260
        %v297 = vmul.f32 %v273, %v261
        %v298 = vmul.f32 %v274, %v262
        %v299 = vmul.f32 %v275, %v263
        %v300 = vadd.f32 %v292, %v296
        %v301 = vadd.f32 %v293, %v297
        %v302 = vadd.f32 %v294, %v298
        %v303 = vadd.f32 %v295, %v299
        %v304 = vpack.c.bf16 %v300, %v300
        %v305 = vpack.c.bf16 %v301, %v301
        %v306 = vpack.c.bf16 %v302, %v302
        %v307 = vpack.c.bf16 %v303, %v303
        %v312 = vrot.slane %v304, 4
        %v313 = vrot.slane %v305, 4
        %v314 = vrot.slane %v306, 4
        %v315 = vrot.slane %v307, 4
        %v320 = vunpack.c.l.b16 %v256
        %v321 = vunpack.c.h.b16 %v256
        %v322 = vunpack.c.l.b16 %v257
        %v323 = vunpack.c.h.b16 %v257
        %v324 = vunpack.c.l.b16 %v258
        %v325 = vunpack.c.h.b16 %v258
        %v326 = vunpack.c.l.b16 %v259
        %v327 = vunpack.c.h.b16 %v259
        %vm328 = vcmask 1043456
        %v331 = vsel %vm328, %v288, %v312
        %v334 = vsel %vm328, %v289, %v313
        %v337 = vsel %vm328, %v290, %v314
        %v340 = vsel %vm328, %v291, %v315
        %v345 = vunpack.c.l.b16 %v331
        %v346 = vunpack.c.l.b16 %v334
        %v347 = vunpack.c.l.b16 %v337
        %v348 = vunpack.c.l.b16 %v340
        %v349 = vunpack.c.h.b16 %v331
        %v350 = vunpack.c.h.b16 %v334
        %v351 = vunpack.c.h.b16 %v337
        %v352 = vunpack.c.h.b16 %v340
        %v353 = vpack.c.b16 %v346, %v345
        %v354 = vpack.c.b16 %v348, %v347
        %v355 = vpack.c.b16 %v350, %v349
        %v356 = vpack.c.b16 %v352, %v351
        %v357 = vpack.c.b16 %v321, %v320
        %v358 = vpack.c.b16 %v323, %v322
        %v359 = vpack.c.b16 %v325, %v324
        %v360 = vpack.c.b16 %v327, %v326
        %369 = vst [vmem:[%s247] sm:$0xff] %v353
        %370 = vst [vmem:[%s247 + $0x8] sm:$0xff] %v354
        %371 = vst [vmem:[%s247 + $0x10] sm:$0xff] %v355
        %372 = vst [vmem:[%s247 + $0x18] sm:$0xff] %v356
        %373 = vst [vmem:[%s247 + $0x20] sm:$0xff] %v357
        %374 = vst [vmem:[%s247 + $0x28] sm:$0xff] %v358
        %375 = vst [vmem:[%s247 + $0x30] sm:$0xff] %v359
        %376 = vst [vmem:[%s247 + $0x38] sm:$0xff] %v360
        %s377 = sand.u32 %s123, 1
        %s378 = scalar_lea.sflag [#allocation4], %s377
        %s379 = sand.u32 %s123, 1
        %s380 = smul.addr %s379, 64
        %s381 = scalar_lea.vmem [#allocation8], %s380
        // Predicated region
        $region45: #{attention_forward.5} parent=31 // pred_check
          %p382 = pneg %p133
        $region46: #{attention_forward.5} parent=31 // pred_check_branch
          %384 = sbr.rel (%p382) target = $region48
        $region47: #{attention_forward.5} parent=31 // pred_region
          %s385 = smul.u32 4, %s26
          %s387 = ssub.s32 1024, 1024
          %388 = vsyncadd %s378, %s387
          %s389 = smul.addr %s25, 16
          %s390 = sadd.s32 %s385, %s389
          %s391 = smul.addr %s390, 64
          %s392 = scalar_lea.hbm %s3, %s391
          %s393 = sshll.u32 %s381, 4
          %s394 = int_to_ptr.vmem [resolvable:$true] %s393
          %399 = dma.vmem_to_hbm [thread:$0]  %s394, 1024, %s392, %s378, 256, 256, 16
        $region48: #{attention_forward.5} parent=31 // pred_fallthru
          _
      $region32: #{attention_forward.5} parent=5 // pred_fallthru
        _
      %p400 = scmp.le.s32.totalorder 2, %s16
      // Predicated region
      $region49: #{attention_forward.5} parent=5 // pred_check
        %p401 = pneg %p400
      $region50: #{attention_forward.5} parent=5 // pred_check_branch
        %403 = sbr.rel (%p401) target = $region52
      $region51: #{attention_forward.5} parent=5 // pred_region
        %s404 = ssub.s32 %s16, 2
        // Predicated region
        $region53: #{attention_forward.5} parent=51 // pred_check
          %p405 = pneg %p139
        $region54: #{attention_forward.5} parent=51 // pred_check_branch
          %407 = sbr.rel (%p405) target = $region56
        $region55: #{attention_forward.5} parent=51 // pred_region
          %s408 = sand.u32 %s124, 1
          %s409 = scalar_lea.sflag [#allocation4], %s408
          %s410 = sand.u32 %s124, 1
          %s411 = smul.addr %s410, 64
          %s412 = scalar_lea.vmem [#allocation8], %s411
          %413 = dma.done %s409, 1024
        $region56: #{attention_forward.5} parent=51 // pred_fallthru
          _
      $region52: #{attention_forward.5} parent=5 // pred_fallthru
        _
    $region6: #{attention_forward.5} parent=1 // loop_footer
      %s20 = sadd.s32 1, %s16
    $region7: #{attention_forward.5} parent=1 // loop_footer_branch
      %15 = sbr.rel target = $region3
    $region8: #{attention_forward.5} parent=1 // loop_exit
      _
    %414 = vsyncpa [#allocation3], 1
    %s415 = scalar_lea.sflag [#allocation3], 1
    %416 = vsyncpa %s415, 1
    %417 = vsyncpa [#allocation6], 1
    %418 = vsyncpa [#allocation4], 1
    %s419 = scalar_lea.sflag [#allocation4], 1
    %420 = vsyncpa %s419, 1

// kernel: attention_forward.4
$region0: #{attention_forward.4}
  #allocation0 [shape = 'u32[]', space=smem, size = 0x4, offset = 0x4, fixed_abs, tag = 'smem constant byte address 0x4 - core index']
  #allocation1 [shape = 'u32[144,128]{1,0:T(1,128)}', space=vmem, size = 0x12000, scoped, tag = 'internal scratch']
  %s0 = inlined_call_operand.hbm [shape: f32[2,8,512], index: 0, kind: input, shape index: {}]
  %s1 = inlined_call_operand.hbm [shape: bf16[384,8], index: 1, kind: input, shape index: {}]
  %s2 = inlined_call_operand.hbm [shape: bf16[2,384,512], index: 2, kind: output, shape index: {}]
  %s3 = sld [smem:[#allocation0]]
  $region49: #{attention_forward.4} parent=0
    _
  %s5 = ssub.s32 1, %s3
  %s6 = scalar_select 0, %s5, %s3
  $region1: #{attention_forward.4} parent=0
    #allocation2 [shape = 'u8[32768]{0}', space=vmem, size = 0x8000, scoped, tag = 'input window, operand 0']
    #allocation3 [shape = 's32[2]{0}', space=sflag, size = 0x8, scoped, tag = 'scoped memory for attention_forward.4']
    #allocation4 [shape = 's32[2]{0}', space=sflag, size = 0x8, scoped, tag = 'scoped memory for attention_forward.4']
    #allocation5 [shape = 'u8[98304]{0}', space=vmem, size = 0x18000, scoped, tag = 'input window, operand 1, single buffered']
    #allocation6 [shape = 's32[1]{0}', space=sflag, size = 0x4, scoped, tag = 'scoped memory for attention_forward.4']
    #allocation7 [shape = 'u8[786432]{0}', space=vmem, size = 0xc0000, scoped, tag = 'output window, operand 0']
    %7 = vsyncpa [#allocation3], 0
    %s8 = scalar_lea.sflag [#allocation3], 1
    %9 = vsyncpa %s8, 0
    %10 = vsyncpa [#allocation6], 0
    %11 = vsyncpa [#allocation4], 0
    %s12 = scalar_lea.sflag [#allocation4], 1
    %13 = vsyncpa %s12, 0
    loop: start=0, step=1, limit=4
    $region2: #{attention_forward.4} parent=1 // loop_pre_header
      _
    $region3: #{attention_forward.4} parent=1 // loop_header
      %s15 = sphi 0, %s19
      %p16 = scmp.ge.s32.totalorder %s15, 4
      %s22 = sphi 0, %s34
      %s23 = sphi 0, %s30
      %s24 = sphi 0, %s22
      %s25 = sphi 0, %s23
      %s26 = sphi 0, %s24
      %s27 = sphi 0, %s25
      %s39 = sphi 0, %s41
      %s42 = sphi 0, %s39
      %s43 = sphi 0, %s42
      %s59 = sphi 0, %s43
      %s63 = sphi 0, %s63
      %s65 = sphi 0, %s63
      %s66 = sphi 0, %s65
      %s80 = sphi 0, %s66
      %s88 = sphi 0, %s90
      %s91 = sphi 0, %s88
      %s92 = sphi 0, %s91
      %s108 = sphi 0, %s92
    $region4: #{attention_forward.4} parent=1 // loop_header_branch
      %18 = sbr.rel (%p16) target = $region8
    $region5: #{attention_forward.4} parent=1 // loop_body
      %s20 = ssub.s32 %s15, 1
      %s21 = ssub.s32 %s15, 2
      %s28 = sadd.s32 1, %s23
      %p29 = scmp.ge.s32.totalorder %s28, 1
      %s30 = scalar_select %p29, 0, %s28
      %s31 = sadd.s32 1, %s22
      %s32 = scalar_select %p29, %s31, %s22
      %p33 = scmp.ge.s32.totalorder %s32, 2
      %s34 = scalar_select %p33, 0, %s32
      %s35 = ssub.s32 %s22, %s34
      %s36 = ssub.s32 %s23, %s30
      %s37 = sor.u32 %s35, %s36
      %p38 = scmp.eq.s32.totalorder %s37, 0
      %s40 = sadd.s32 %s39, 1
      %s41 = scalar_select %p38, %s39, %s40
      %p44 = pneg %p38
      %p45 = scmp.eq.s32.totalorder %s15, 1
      %p46 = por %p44, %p45
      %p47 = scmp.ne.s32.totalorder %s39, %s42
      %p48 = scmp.eq.s32.totalorder %s15, 0
      %p49 = por %p47, %p48
      %p50 = scmp.ne.s32.totalorder %s39, %s42
      %p51 = scmp.eq.s32.totalorder %s20, 1
      %p52 = por %p50, %p51
      %p53 = scmp.ne.s32.totalorder %s42, %s43
      %p54 = scmp.eq.s32.totalorder %s20, 0
      %p55 = por %p53, %p54
      %p56 = scmp.ne.s32.totalorder %s42, %s43
      %p57 = scmp.eq.s32.totalorder %s21, 1
      %p58 = por %p56, %p57
      %p60 = scmp.ne.s32.totalorder %s43, %s59
      %p61 = scmp.eq.s32.totalorder %s21, 0
      %p62 = por %p60, %p61
      %s64 = sadd.s32 %s63, 1
      %p67 = scmp.eq.s32.totalorder %s15, 1
      %p68 = scmp.ne.s32.totalorder %s63, %s65
      %p69 = scmp.eq.s32.totalorder %s15, 0
      %p70 = por %p68, %p69
      %p71 = scmp.ne.s32.totalorder %s63, %s65
      %p72 = scmp.eq.s32.totalorder %s20, 1
      %p73 = por %p71, %p72
      %p74 = scmp.ne.s32.totalorder %s65, %s66
      %p75 = scmp.eq.s32.totalorder %s20, 0
      %p76 = por %p74, %p75
      %p77 = scmp.ne.s32.totalorder %s65, %s66
      %p78 = scmp.eq.s32.totalorder %s21, 1
      %p79 = por %p77, %p78
      %p81 = scmp.ne.s32.totalorder %s66, %s80
      %p82 = scmp.eq.s32.totalorder %s21, 0
      %p83 = por %p81, %p82
      %s84 = ssub.s32 %s22, %s34
      %s85 = ssub.s32 %s23, %s30
      %s86 = sor.u32 %s84, %s85
      %p87 = scmp.eq.s32.totalorder %s86, 0
      %s89 = sadd.s32 %s88, 1
      %s90 = scalar_select %p87, %s88, %s89
      %p93 = pneg %p87
      %p94 = scmp.eq.s32.totalorder %s15, 1
      %p95 = por %p93, %p94
      %p96 = scmp.ne.s32.totalorder %s88, %s91
      %p97 = scmp.eq.s32.totalorder %s15, 0
      %p98 = por %p96, %p97
      %p99 = scmp.ne.s32.totalorder %s88, %s91
      %p100 = scmp.eq.s32.totalorder %s20, 1
      %p101 = por %p99, %p100
      %p102 = scmp.ne.s32.totalorder %s91, %s92
      %p103 = scmp.eq.s32.totalorder %s20, 0
      %p104 = por %p102, %p103
      %p105 = scmp.ne.s32.totalorder %s91, %s92
      %p106 = scmp.eq.s32.totalorder %s21, 1
      %p107 = por %p105, %p106
      %p109 = scmp.ne.s32.totalorder %s92, %s108
      %p110 = scmp.eq.s32.totalorder %s21, 0
      %p111 = por %p109, %p110
      %p112 = scmp.le.s32.totalorder 1, %s15
      %p113 = scmp.lt.s32.totalorder %s15, 3
      %p114 = pnand %p112, %p113
      %p115 = pneg %p114
      // Predicated region
      $region9: #{attention_forward.4} parent=5 // pred_check
        _
      $region10: #{attention_forward.4} parent=5 // pred_check_branch
        %117 = sbr.rel (%p114) target = $region12
      $region11: #{attention_forward.4} parent=5 // pred_region
        %s118 = ssub.s32 %s15, 1
        // Predicated region
        $region13: #{attention_forward.4} parent=11 // pred_check
          %p119 = pneg %p76
        $region14: #{attention_forward.4} parent=11 // pred_check_branch
          %121 = sbr.rel (%p119) target = $region16
        $region15: #{attention_forward.4} parent=11 // pred_region
          %s123 = ssub.s32 3072, 3072
          %124 = vsyncadd [#allocation6], %s123
          %s125 = sshll.u32 [#allocation5], 4
          %s126 = int_to_ptr.vmem [resolvable:$true] %s125
          %131 = dma.hbm_to_vmem [thread:$0]  %s1, 3072, %s126, [#allocation6], 64, 64, 4
        $region16: #{attention_forward.4} parent=11 // pred_fallthru
          _
      $region12: #{attention_forward.4} parent=5 // pred_fallthru
        _
      %p132 = scmp.lt.s32.totalorder %s15, 2
      // Predicated region
      $region17: #{attention_forward.4} parent=5 // pred_check
        %p133 = pneg %p132
      $region18: #{attention_forward.4} parent=5 // pred_check_branch
        %135 = sbr.rel (%p133) target = $region20
      $region19: #{attention_forward.4} parent=5 // pred_region
        // Predicated region
        $region21: #{attention_forward.4} parent=19 // pred_check
          %p136 = pneg %p49
        $region22: #{attention_forward.4} parent=19 // pred_check_branch
          %138 = sbr.rel (%p136) target = $region24
        $region23: #{attention_forward.4} parent=19 // pred_region
          %s139 = sand.u32 %s39, 1
          %s140 = scalar_lea.sflag [#allocation3], %s139
          %s141 = sand.u32 %s39, 1
          %s142 = smul.addr %s141, 32
          %s143 = scalar_lea.vmem [#allocation2], %s142
          %s144 = smul.u32 4, %s23
          %s146 = ssub.s32 512, 512
          %147 = vsyncadd %s140, %s146
          %s148 = smul.addr %s22, 4
          %s149 = sadd.s32 %s144, %s148
          %s150 = smul.addr %s149, 128
          %s151 = scalar_lea.hbm %s0, %s150
          %s153 = sshll.u32 %s143, 4
          %s154 = int_to_ptr.vmem [resolvable:$true] %s153
          %156 = dma.hbm_to_vmem [thread:$0]  %s151, 512, %s154, %s140
        $region24: #{attention_forward.4} parent=19 // pred_fallthru
          _
      $region20: #{attention_forward.4} parent=5 // pred_fallthru
        _
      %p157 = scmp.le.s32.totalorder 1, %s15
      %p158 = scmp.lt.s32.totalorder %s15, 3
      %p159 = pnand %p157, %p158
      %p160 = pneg %p159
      // Predicated region
      $region25: #{attention_forward.4} parent=5 // pred_check
        _
      $region26: #{attention_forward.4} parent=5 // pred_check_branch
        %162 = sbr.rel (%p159) target = $region28
      $region27: #{attention_forward.4} parent=5 // pred_region
        %s163 = ssub.s32 %s15, 1
        %s164 = sand.u32 %s42, 1
        %s165 = scalar_lea.sflag [#allocation3], %s164
        %s166 = sand.u32 %s42, 1
        %s167 = smul.addr %s166, 32
        %s168 = scalar_lea.vmem [#allocation2], %s167
        // Predicated region
        $region29: #{attention_forward.4} parent=27 // pred_check
          %p169 = pneg %p55
        $region30: #{attention_forward.4} parent=27 // pred_check_branch
          %171 = sbr.rel (%p169) target = $region32
        $region31: #{attention_forward.4} parent=27 // pred_region
          %172 = dma.done %s165, 512
        $region32: #{attention_forward.4} parent=27 // pred_fallthru
          _
        // Predicated region
        $region33: #{attention_forward.4} parent=27 // pred_check
          %p173 = pneg %p76
        $region34: #{attention_forward.4} parent=27 // pred_check_branch
          %175 = sbr.rel (%p173) target = $region36
        $region35: #{attention_forward.4} parent=27 // pred_region
          %176 = dma.done [#allocation6], 3072
        $region36: #{attention_forward.4} parent=27 // pred_fallthru
          _
        %s177 = sand.u32 %s42, 1
        %s178 = scalar_lea.sflag [#allocation3], %s177
        %s179 = sand.u32 %s42, 1
        %s180 = smul.addr %s179, 32
        %s181 = scalar_lea.vmem [#allocation2], %s180
        %p182 = pneg %p55
        %p183 = pneg %p52
        %p184 = pneg %p76
        %p185 = pneg %p73
        %p186 = pneg %p104
        %p187 = pneg %p101
        %s188 = sand.u32 %s91, 1
        %s189 = scalar_lea.sflag [#allocation4], %s188
        %s190 = sand.u32 %s91, 1
        %s191 = smul.addr %s190, 768
        %s192 = scalar_lea.vmem [#allocation7], %s191
        %s193 = smul.u32 4, %s25
        %s194 = smul.u32 4, %s25
        %v196 = vld [vmem:[#allocation5] sm:$0xf]
        %v197 = vld [vmem:[#allocation5 + $0x4] sm:$0xf]
        %v198 = vld [vmem:[#allocation5 + $0x8] sm:$0xf]
        %v199 = vld [vmem:[#allocation5 + $0xc] sm:$0xf]
        %v200 = vld [vmem:[#allocation5 + $0x10] sm:$0xf]
        %v201 = vld [vmem:[#allocation5 + $0x14] sm:$0xf]
        %v202 = vld [vmem:[#allocation5 + $0x18] sm:$0xf]
        %v203 = vld [vmem:[#allocation5 + $0x1c] sm:$0xf]
        %v204 = vld [vmem:[#allocation5 + $0x20] sm:$0xf]
        %v205 = vld [vmem:[#allocation5 + $0x24] sm:$0xf]
        %v206 = vld [vmem:[#allocation5 + $0x28] sm:$0xf]
        %v207 = vld [vmem:[#allocation5 + $0x2c] sm:$0xf]
        %v208 = vld [vmem:[#allocation5 + $0x30] sm:$0xf]
        %v209 = vld [vmem:[#allocation5 + $0x34] sm:$0xf]
        %v210 = vld [vmem:[#allocation5 + $0x38] sm:$0xf]
        %v211 = vld [vmem:[#allocation5 + $0x3c] sm:$0xf]
        %v212 = vld [vmem:[#allocation5 + $0x40] sm:$0xf]
        %v213 = vld [vmem:[#allocation5 + $0x44] sm:$0xf]
        %v214 = vld [vmem:[#allocation5 + $0x48] sm:$0xf]
        %v215 = vld [vmem:[#allocation5 + $0x4c] sm:$0xf]
        %v216 = vld [vmem:[#allocation5 + $0x50] sm:$0xf]
        %v217 = vld [vmem:[#allocation5 + $0x54] sm:$0xf]
        %v218 = vld [vmem:[#allocation5 + $0x58] sm:$0xf]
        %v219 = vld [vmem:[#allocation5 + $0x5c] sm:$0xf]
        %v220 = vld [vmem:[#allocation5 + $0x60] sm:$0xf]
        %v221 = vld [vmem:[#allocation5 + $0x64] sm:$0xf]
        %v222 = vld [vmem:[#allocation5 + $0x68] sm:$0xf]
        %v223 = vld [vmem:[#allocation5 + $0x6c] sm:$0xf]
        %v224 = vld [vmem:[#allocation5 + $0x70] sm:$0xf]
        %v225 = vld [vmem:[#allocation5 + $0x74] sm:$0xf]
        %v226 = vld [vmem:[#allocation5 + $0x78] sm:$0xf]
        %v227 = vld [vmem:[#allocation5 + $0x7c] sm:$0xf]
        %v228 = vld [vmem:[#allocation5 + $0x80] sm:$0xf]
        %v229 = vld [vmem:[#allocation5 + $0x84] sm:$0xf]
        %v230 = vld [vmem:[#allocation5 + $0x88] sm:$0xf]
        %v231 = vld [vmem:[#allocation5 + $0x8c] sm:$0xf]
        %v232 = vld [vmem:[#allocation5 + $0x90] sm:$0xf]
        %v233 = vld [vmem:[#allocation5 + $0x94] sm:$0xf]
        %v234 = vld [vmem:[#allocation5 + $0x98] sm:$0xf]
        %v235 = vld [vmem:[#allocation5 + $0x9c] sm:$0xf]
        %v236 = vld [vmem:[#allocation5 + $0xa0] sm:$0xf]
        %v237 = vld [vmem:[#allocation5 + $0xa4] sm:$0xf]
        %v238 = vld [vmem:[#allocation5 + $0xa8] sm:$0xf]
        %v239 = vld [vmem:[#allocation5 + $0xac] sm:$0xf]
        %v240 = vld [vmem:[#allocation5 + $0xb0] sm:$0xf]
        %v241 = vld [vmem:[#allocation5 + $0xb4] sm:$0xf]
        %v242 = vld [vmem:[#allocation5 + $0xb8] sm:$0xf]
        %v243 = vld [vmem:[#allocation5 + $0xbc] sm:$0xf]
        %v244 = vld [vmem:[%s168] sm:$0xff]
        %v245 = vld [vmem:[%s168 + $0x8] sm:$0xff]
        %v246 = vld [vmem:[%s168 + $0x10] sm:$0xff]
        %v247 = vld [vmem:[%s168 + $0x18] sm:$0xff]
        %v248 = vpack.c.bf16 %v244, %v244
        %v249 = vpack.c.bf16 %v245, %v245
        %v250 = vpack.c.bf16 %v246, %v246
        %v251 = vpack.c.bf16 %v247, %v247
        %v300 = vunpack.c.l.b16 %v196
        %v301 = vunpack.c.l.b16 %v197
        %v302 = vunpack.c.l.b16 %v198
        %v303 = vunpack.c.l.b16 %v199
        %v304 = vunpack.c.l.b16 %v200
        %v305 = vunpack.c.l.b16 %v201
        %v306 = vunpack.c.l.b16 %v202
        %v307 = vunpack.c.l.b16 %v203
        %v308 = vunpack.c.l.b16 %v204
        %v309 = vunpack.c.l.b16 %v205
        %v310 = vunpack.c.l.b16 %v206
        %v311 = vunpack.c.l.b16 %v207
        %v312 = vunpack.c.l.b16 %v208
        %v313 = vunpack.c.l.b16 %v209
        %v314 = vunpack.c.l.b16 %v210
        %v315 = vunpack.c.l.b16 %v211
        %v316 = vunpack.c.l.b16 %v212
        %v317 = vunpack.c.l.b16 %v213
        %v318 = vunpack.c.l.b16 %v214
        %v319 = vunpack.c.l.b16 %v215
        %v320 = vunpack.c.l.b16 %v216
        %v321 = vunpack.c.l.b16 %v217
        %v322 = vunpack.c.l.b16 %v218
        %v323 = vunpack.c.l.b16 %v219
        %v324 = vunpack.c.l.b16 %v220
        %v325 = vunpack.c.l.b16 %v221
        %v326 = vunpack.c.l.b16 %v222
        %v327 = vunpack.c.l.b16 %v223
        %v328 = vunpack.c.l.b16 %v224
        %v329 = vunpack.c.l.b16 %v225
        %v330 = vunpack.c.l.b16 %v226
        %v331 = vunpack.c.l.b16 %v227
        %v332 = vunpack.c.l.b16 %v228
        %v333 = vunpack.c.l.b16 %v229
        %v334 = vunpack.c.l.b16 %v230
        %v335 = vunpack.c.l.b16 %v231
        %v336 = vunpack.c.l.b16 %v232
        %v337 = vunpack.c.l.b16 %v233
        %v338 = vunpack.c.l.b16 %v234
        %v339 = vunpack.c.l.b16 %v235
        %v340 = vunpack.c.l.b16 %v236
        %v341 = vunpack.c.l.b16 %v237
        %v342 = vunpack.c.l.b16 %v238
        %v343 = vunpack.c.l.b16 %v239
        %v344 = vunpack.c.l.b16 %v240
        %v345 = vunpack.c.l.b16 %v241
        %v346 = vunpack.c.l.b16 %v242
        %v347 = vunpack.c.l.b16 %v243
        %v348 = vpack.c.b16 %v301, %v300
        %v349 = vpack.c.b16 %v303, %v302
        %v350 = vpack.c.b16 %v305, %v304
        %v351 = vpack.c.b16 %v307, %v306
        %v352 = vpack.c.b16 %v309, %v308
        %v353 = vpack.c.b16 %v311, %v310
        %v354 = vpack.c.b16 %v313, %v312
        %v355 = vpack.c.b16 %v315, %v314
        %v356 = vpack.c.b16 %v317, %v316
        %v357 = vpack.c.b16 %v319, %v318
        %v358 = vpack.c.b16 %v321, %v320
        %v359 = vpack.c.b16 %v323, %v322
        %v360 = vpack.c.b16 %v325, %v324
        %v361 = vpack.c.b16 %v327, %v326
        %v362 = vpack.c.b16 %v329, %v328
        %v363 = vpack.c.b16 %v331, %v330
        %v364 = vpack.c.b16 %v333, %v332
        %v365 = vpack.c.b16 %v335, %v334
        %v366 = vpack.c.b16 %v337, %v336
        %v367 = vpack.c.b16 %v339, %v338
        %v368 = vpack.c.b16 %v341, %v340
        %v369 = vpack.c.b16 %v343, %v342
        %v370 = vpack.c.b16 %v345, %v344
        %v371 = vpack.c.b16 %v347, %v346
        %vm372 = vcmask 64512
        %v374 = vsel %vm372, %v348, 0
        %v377 = vsel %vm372, %v349, 0
        %v380 = vsel %vm372, %v350, 0
        %v383 = vsel %vm372, %v351, 0
        %v386 = vsel %vm372, %v352, 0
        %v389 = vsel %vm372, %v353, 0
        %v392 = vsel %vm372, %v354, 0
        %v395 = vsel %vm372, %v355, 0
        %v398 = vsel %vm372, %v356, 0
        %v401 = vsel %vm372, %v357, 0
        %v404 = vsel %vm372, %v358, 0
        %v407 = vsel %vm372, %v359, 0
        %v410 = vsel %vm372, %v360, 0
        %v413 = vsel %vm372, %v361, 0
        %v416 = vsel %vm372, %v362, 0
        %v419 = vsel %vm372, %v363, 0
        %v422 = vsel %vm372, %v364, 0
        %v425 = vsel %vm372, %v365, 0
        %v428 = vsel %vm372, %v366, 0
        %v431 = vsel %vm372, %v367, 0
        %v434 = vsel %vm372, %v368, 0
        %v437 = vsel %vm372, %v369, 0
        %v440 = vsel %vm372, %v370, 0
        %v443 = vsel %vm372, %v371, 0
        %vm445 = vcmask 1043456
        %v447 = vsel %vm445, %v248, 0
        %v450 = vsel %vm445, %v249, 0
        %v453 = vsel %vm445, %v250, 0
        %v456 = vsel %vm445, %v251, 0
        %458 = vmatprep.subr.bf16.mxu0 %v450
        %459 = vmatpush1.bf16.msra.mxu0 %v447
        %460 = vmatprep.subr.bf16.mxu0 0
        %461 = vmatpush1.bf16.msra.mxu0 0
        %462 = vmatprep.subr.bf16.mxu0 0
        %463 = vmatpush1.bf16.msra.mxu0 0
        %464 = vmatprep.subr.bf16.mxu0 0
        %465 = vmatpush1.bf16.msra.mxu0 0
        %466 = vmatprep.subr.bf16.mxu0 0
        %467 = vmatpush1.bf16.msra.mxu0 0
        %468 = vmatprep.subr.bf16.mxu0 0
        %469 = vmatpush1.bf16.msra.mxu0 0
        %470 = vmatprep.subr.bf16.mxu0 0
        %471 = vmatpush1.bf16.msra.mxu0 0
        %472 = vmatprep.subr.bf16.mxu0 0
        %473 = vmatpush1.bf16.msra.mxu0 0
        %474 = vmatprep.subr.bf16.mxu0 0
        %475 = vmatpush1.bf16.msra.mxu0 0
        %476 = vmatprep.subr.bf16.mxu0 0
        %477 = vmatpush1.bf16.msra.mxu0 0
        %478 = vmatprep.subr.bf16.mxu0 0
        %479 = vmatpush1.bf16.msra.mxu0 0
        %480 = vmatprep.subr.bf16.mxu0 0
        %481 = vmatpush1.bf16.msra.mxu0 0
        %482 = vmatprep.subr.bf16.mxu0 0
        %483 = vmatpush1.bf16.msra.mxu0 0
        %484 = vmatprep.subr.bf16.mxu0 0
        %485 = vmatpush1.bf16.msra.mxu0 0
        %486 = vmatprep.subr.bf16.mxu0 0
        %487 = vmatpush1.bf16.msra.mxu0 0
        %488 = vmatprep.subr.bf16.mxu0 0
        %489 = vmatpush1.bf16.msra.mxu0 0
        %490 = vmatprep.mubr.bf16.mxu0 0
        %491 = vmatmul.mubr.bf16.gmra.mrb[0].mxu0 %v374
        %v492 = vpop.f32.mrb[0].mxu0
        %v493 = vadd.f32 0.0, %v492
        %v494 = vpop.f32.mrb[0].mxu0
        %v495 = vadd.f32 0.0, %v494
        %v496 = vpop.f32.mrb[0].mxu0
        %v497 = vadd.f32 0.0, %v496
        %v498 = vpop.f32.mrb[0].mxu0
        %v499 = vadd.f32 0.0, %v498
        %500 = vmatprep.mubr.bf16.mxu0 0
        %501 = vmatmul.mubr.bf16.gmra.mrb[0].mxu0 %v377
        %v502 = vpop.f32.mrb[0].mxu0
        %v503 = vadd.f32 0.0, %v502
        %v504 = vpop.f32.mrb[0].mxu0
        %v505 = vadd.f32 0.0, %v504
        %v506 = vpop.f32.mrb[0].mxu0
        %v507 = vadd.f32 0.0, %v506
        %v508 = vpop.f32.mrb[0].mxu0
        %v509 = vadd.f32 0.0, %v508
        %510 = vmatprep.mubr.bf16.mxu0 0
        %511 = vmatmul.mubr.bf16.gmra.mrb[0].mxu0 %v380
        %v512 = vpop.f32.mrb[0].mxu0
        %v513 = vadd.f32 0.0, %v512
        %v514 = vpop.f32.mrb[0].mxu0
        %v515 = vadd.f32 0.0, %v514
        %v516 = vpop.f32.mrb[0].mxu0
        %v517 = vadd.f32 0.0, %v516
        %v518 = vpop.f32.mrb[0].mxu0
        %v519 = vadd.f32 0.0, %v518
        %520 = vmatprep.mubr.bf16.mxu0 0
        %521 = vmatmul.mubr.bf16.gmra.mrb[0].mxu0 %v383
        %v522 = vpop.f32.mrb[0].mxu0
        %v523 = vadd.f32 0.0, %v522
        %v524 = vpop.f32.mrb[0].mxu0
        %v525 = vadd.f32 0.0, %v524
        %v526 = vpop.f32.mrb[0].mxu0
        %v527 = vadd.f32 0.0, %v526
        %v528 = vpop.f32.mrb[0].mxu0
        %v529 = vadd.f32 0.0, %v528
        %530 = vmatprep.mubr.bf16.mxu0 0
        %531 = vmatmul.mubr.bf16.gmra.mrb[0].mxu0 %v386
        %v532 = vpop.f32.mrb[0].mxu0
        %v533 = vadd.f32 0.0, %v532
        %v534 = vpop.f32.mrb[0].mxu0
        %v535 = vadd.f32 0.0, %v534
        %v536 = vpop.f32.mrb[0].mxu0
        %v537 = vadd.f32 0.0, %v536
        %v538 = vpop.f32.mrb[0].mxu0
        %v539 = vadd.f32 0.0, %v538
        %540 = vmatprep.mubr.bf16.mxu0 0
        %541 = vmatmul.mubr.bf16.gmra.mrb[0].mxu0 %v389
        %v542 = vpop.f32.mrb[0].mxu0
        %v543 = vadd.f32 0.0, %v542
        %v544 = vpop.f32.mrb[0].mxu0
        %v545 = vadd.f32 0.0, %v544
        %v546 = vpop.f32.mrb[0].mxu0
        %v547 = vadd.f32 0.0, %v546
        %v548 = vpop.f32.mrb[0].mxu0
        %v549 = vadd.f32 0.0, %v548
        %550 = vmatprep.mubr.bf16.mxu0 0
        %551 = vmatmul.mubr.bf16.gmra.mrb[0].mxu0 %v392
        %v552 = vpop.f32.mrb[0].mxu0
        %v553 = vadd.f32 0.0, %v552
        %v554 = vpop.f32.mrb[0].mxu0
        %v555 = vadd.f32 0.0, %v554
        %v556 = vpop.f32.mrb[0].mxu0
        %v557 = vadd.f32 0.0, %v556
        %v558 = vpop.f32.mrb[0].mxu0
        %v559 = vadd.f32 0.0, %v558
        %560 = vmatprep.mubr.bf16.mxu0 0
        %561 = vmatmul.mubr.bf16.gmra.mrb[0].mxu0 %v395
        %v562 = vpop.f32.mrb[0].mxu0
        %v563 = vadd.f32 0.0, %v562
        %v564 = vpop.f32.mrb[0].mxu0
        %v565 = vadd.f32 0.0, %v564
        %v566 = vpop.f32.mrb[0].mxu0
        %v567 = vadd.f32 0.0, %v566
        %v568 = vpop.f32.mrb[0].mxu0
        %v569 = vadd.f32 0.0, %v568
        %570 = vmatprep.mubr.bf16.mxu0 0
        %571 = vmatmul.mubr.bf16.gmra.mrb[0].mxu0 %v398
        %v572 = vpop.f32.mrb[0].mxu0
        %v573 = vadd.f32 0.0, %v572
        %v574 = vpop.f32.mrb[0].mxu0
        %v575 = vadd.f32 0.0, %v574
        %v576 = vpop.f32.mrb[0].mxu0
        %v577 = vadd.f32 0.0, %v576
        %v578 = vpop.f32.mrb[0].mxu0
        %v579 = vadd.f32 0.0, %v578
        %580 = vmatprep.mubr.bf16.mxu0 0
        %581 = vmatmul.mubr.bf16.gmra.mrb[0].mxu0 %v401
        %v582 = vpop.f32.mrb[0].mxu0
        %v583 = vadd.f32 0.0, %v582
        %v584 = vpop.f32.mrb[0].mxu0
        %v585 = vadd.f32 0.0, %v584
        %v586 = vpop.f32.mrb[0].mxu0
        %v587 = vadd.f32 0.0, %v586
        %v588 = vpop.f32.mrb[0].mxu0
        %v589 = vadd.f32 0.0, %v588
        %590 = vmatprep.mubr.bf16.mxu0 0
        %591 = vmatmul.mubr.bf16.gmra.mrb[0].mxu0 %v404
        %v592 = vpop.f32.mrb[0].mxu0
        %v593 = vadd.f32 0.0, %v592
        %v594 = vpop.f32.mrb[0].mxu0
        %v595 = vadd.f32 0.0, %v594
        %v596 = vpop.f32.mrb[0].mxu0
        %v597 = vadd.f32 0.0, %v596
        %v598 = vpop.f32.mrb[0].mxu0
        %v599 = vadd.f32 0.0, %v598
        %600 = vmatprep.mubr.bf16.mxu0 0
        %601 = vmatmul.mubr.bf16.gmra.mrb[0].mxu0 %v407
        %v602 = vpop.f32.mrb[0].mxu0
        %v603 = vadd.f32 0.0, %v602
        %v604 = vpop.f32.mrb[0].mxu0
        %v605 = vadd.f32 0.0, %v604
        %v606 = vpop.f32.mrb[0].mxu0
        %v607 = vadd.f32 0.0, %v606
        %v608 = vpop.f32.mrb[0].mxu0
        %v609 = vadd.f32 0.0, %v608
        %610 = vmatprep.mubr.bf16.mxu0 0
        %611 = vmatmul.mubr.bf16.gmra.mrb[0].mxu0 %v410
        %v612 = vpop.f32.mrb[0].mxu0
        %v613 = vadd.f32 0.0, %v612
        %v614 = vpop.f32.mrb[0].mxu0
        %v615 = vadd.f32 0.0, %v614
        %v616 = vpop.f32.mrb[0].mxu0
        %v617 = vadd.f32 0.0, %v616
        %v618 = vpop.f32.mrb[0].mxu0
        %v619 = vadd.f32 0.0, %v618
        %620 = vmatprep.mubr.bf16.mxu0 0
        %621 = vmatmul.mubr.bf16.gmra.mrb[0].mxu0 %v413
        %v622 = vpop.f32.mrb[0].mxu0
        %v623 = vadd.f32 0.0, %v622
        %v624 = vpop.f32.mrb[0].mxu0
        %v625 = vadd.f32 0.0, %v624
        %v626 = vpop.f32.mrb[0].mxu0
        %v627 = vadd.f32 0.0, %v626
        %v628 = vpop.f32.mrb[0].mxu0
        %v629 = vadd.f32 0.0, %v628
        %630 = vmatprep.mubr.bf16.mxu0 0
        %631 = vmatmul.mubr.bf16.gmra.mrb[0].mxu0 %v416
        %v632 = vpop.f32.mrb[0].mxu0
        %v633 = vadd.f32 0.0, %v632
        %v634 = vpop.f32.mrb[0].mxu0
        %v635 = vadd.f32 0.0, %v634
        %v636 = vpop.f32.mrb[0].mxu0
        %v637 = vadd.f32 0.0, %v636
        %v638 = vpop.f32.mrb[0].mxu0
        %v639 = vadd.f32 0.0, %v638
        %640 = vmatprep.mubr.bf16.mxu0 0
        %641 = vmatmul.mubr.bf16.gmra.mrb[0].mxu0 %v419
        %v642 = vpop.f32.mrb[0].mxu0
        %v643 = vadd.f32 0.0, %v642
        %v644 = vpop.f32.mrb[0].mxu0
        %v645 = vadd.f32 0.0, %v644
        %v646 = vpop.f32.mrb[0].mxu0
        %v647 = vadd.f32 0.0, %v646
        %v648 = vpop.f32.mrb[0].mxu0
        %v649 = vadd.f32 0.0, %v648
        %650 = vmatprep.mubr.bf16.mxu0 0
        %651 = vmatmul.mubr.bf16.gmra.mrb[0].mxu0 %v422
        %v652 = vpop.f32.mrb[0].mxu0
        %v653 = vadd.f32 0.0, %v652
        %v654 = vpop.f32.mrb[0].mxu0
        %v655 = vadd.f32 0.0, %v654
        %v656 = vpop.f32.mrb[0].mxu0
        %v657 = vadd.f32 0.0, %v656
        %v658 = vpop.f32.mrb[0].mxu0
        %v659 = vadd.f32 0.0, %v658
        %660 = vmatprep.mubr.bf16.mxu0 0
        %661 = vmatmul.mubr.bf16.gmra.mrb[0].mxu0 %v425
        %v662 = vpop.f32.mrb[0].mxu0
        %v663 = vadd.f32 0.0, %v662
        %v664 = vpop.f32.mrb[0].mxu0
        %v665 = vadd.f32 0.0, %v664
        %v666 = vpop.f32.mrb[0].mxu0
        %v667 = vadd.f32 0.0, %v666
        %v668 = vpop.f32.mrb[0].mxu0
        %v669 = vadd.f32 0.0, %v668
        %670 = vmatprep.mubr.bf16.mxu0 0
        %671 = vmatmul.mubr.bf16.gmra.mrb[0].mxu0 %v428
        %v672 = vpop.f32.mrb[0].mxu0
        %v673 = vadd.f32 0.0, %v672
        %v674 = vpop.f32.mrb[0].mxu0
        %v675 = vadd.f32 0.0, %v674
        %v676 = vpop.f32.mrb[0].mxu0
        %v677 = vadd.f32 0.0, %v676
        %v678 = vpop.f32.mrb[0].mxu0
        %v679 = vadd.f32 0.0, %v678
        %680 = vmatprep.mubr.bf16.mxu0 0
        %681 = vmatmul.mubr.bf16.gmra.mrb[0].mxu0 %v431
        %v682 = vpop.f32.mrb[0].mxu0
        %v683 = vadd.f32 0.0, %v682
        %v684 = vpop.f32.mrb[0].mxu0
        %v685 = vadd.f32 0.0, %v684
        %v686 = vpop.f32.mrb[0].mxu0
        %v687 = vadd.f32 0.0, %v686
        %v688 = vpop.f32.mrb[0].mxu0
        %v689 = vadd.f32 0.0, %v688
        %690 = vmatprep.mubr.bf16.mxu0 0
        %691 = vmatmul.mubr.bf16.gmra.mrb[0].mxu0 %v434
        %v692 = vpop.f32.mrb[0].mxu0
        %v693 = vadd.f32 0.0, %v692
        %v694 = vpop.f32.mrb[0].mxu0
        %v695 = vadd.f32 0.0, %v694
        %v696 = vpop.f32.mrb[0].mxu0
        %v697 = vadd.f32 0.0, %v696
        %v698 = vpop.f32.mrb[0].mxu0
        %v699 = vadd.f32 0.0, %v698
        %700 = vmatprep.mubr.bf16.mxu0 0
        %701 = vmatmul.mubr.bf16.gmra.mrb[0].mxu0 %v437
        %v702 = vpop.f32.mrb[0].mxu0
        %v703 = vadd.f32 0.0, %v702
        %v704 = vpop.f32.mrb[0].mxu0
        %v705 = vadd.f32 0.0, %v704
        %v706 = vpop.f32.mrb[0].mxu0
        %v707 = vadd.f32 0.0, %v706
        %v708 = vpop.f32.mrb[0].mxu0
        %v709 = vadd.f32 0.0, %v708
        %710 = vmatprep.mubr.bf16.mxu0 0
        %711 = vmatmul.mubr.bf16.gmra.mrb[0].mxu0 %v440
        %v712 = vpop.f32.mrb[0].mxu0
        %v713 = vadd.f32 0.0, %v712
        %v714 = vpop.f32.mrb[0].mxu0
        %v715 = vadd.f32 0.0, %v714
        %v716 = vpop.f32.mrb[0].mxu0
        %v717 = vadd.f32 0.0, %v716
        %v718 = vpop.f32.mrb[0].mxu0
        %v719 = vadd.f32 0.0, %v718
        %720 = vmatprep.mubr.bf16.mxu0 0
        %721 = vmatmul.mubr.bf16.gmra.mrb[0].mxu0 %v443
        %v722 = vpop.f32.mrb[0].mxu0
        %v723 = vadd.f32 0.0, %v722
        %v724 = vpop.f32.mrb[0].mxu0
        %v725 = vadd.f32 0.0, %v724
        %v726 = vpop.f32.mrb[0].mxu0
        %v727 = vadd.f32 0.0, %v726
        %v728 = vpop.f32.mrb[0].mxu0
        %v729 = vadd.f32 0.0, %v728
        %730 = vdwg.mxu0
        %731 = vmatprep.subr.bf16.mxu0 %v456
        %732 = vmatpush1.bf16.msra.mxu0 %v453
        %733 = vmatprep.subr.bf16.mxu0 0
        %734 = vmatpush1.bf16.msra.mxu0 0
        %735 = vmatprep.subr.bf16.mxu0 0
        %736 = vmatpush1.bf16.msra.mxu0 0
        %737 = vmatprep.subr.bf16.mxu0 0
        %738 = vmatpush1.bf16.msra.mxu0 0
        %739 = vmatprep.subr.bf16.mxu0 0
        %740 = vmatpush1.bf16.msra.mxu0 0
        %741 = vmatprep.subr.bf16.mxu0 0
        %742 = vmatpush1.bf16.msra.mxu0 0
        %743 = vmatprep.subr.bf16.mxu0 0
        %744 = vmatpush1.bf16.msra.mxu0 0
        %745 = vmatprep.subr.bf16.mxu0 0
        %746 = vmatpush1.bf16.msra.mxu0 0
        %747 = vmatprep.subr.bf16.mxu0 0
        %748 = vmatpush1.bf16.msra.mxu0 0
        %749 = vmatprep.subr.bf16.mxu0 0
        %750 = vmatpush1.bf16.msra.mxu0 0
        %751 = vmatprep.subr.bf16.mxu0 0
        %752 = vmatpush1.bf16.msra.mxu0 0
        %753 = vmatprep.subr.bf16.mxu0 0
        %754 = vmatpush1.bf16.msra.mxu0 0
        %755 = vmatprep.subr.bf16.mxu0 0
        %756 = vmatpush1.bf16.msra.mxu0 0
        %757 = vmatprep.subr.bf16.mxu0 0
        %758 = vmatpush1.bf16.msra.mxu0 0
        %759 = vmatprep.subr.bf16.mxu0 0
        %760 = vmatpush1.bf16.msra.mxu0 0
        %761 = vmatprep.subr.bf16.mxu0 0
        %762 = vmatpush1.bf16.msra.mxu0 0
        %763 = vmatprep.mubr.bf16.mxu0 0
        %764 = vmatmul.mubr.bf16.gmra.mrb[0].mxu0 %v374
        %v765 = vpop.f32.mrb[0].mxu0
        %v766 = vadd.f32 0.0, %v765
        %v767 = vpop.f32.mrb[0].mxu0
        %v768 = vadd.f32 0.0, %v767
        %v769 = vpop.f32.mrb[0].mxu0
        %v770 = vadd.f32 0.0, %v769
        %v771 = vpop.f32.mrb[0].mxu0
        %v772 = vadd.f32 0.0, %v771
        %773 = vmatprep.mubr.bf16.mxu0 0
        %774 = vmatmul.mubr.bf16.gmra.mrb[0].mxu0 %v377
        %v775 = vpop.f32.mrb[0].mxu0
        %v776 = vadd.f32 0.0, %v775
        %v777 = vpop.f32.mrb[0].mxu0
        %v778 = vadd.f32 0.0, %v777
        %v779 = vpop.f32.mrb[0].mxu0
        %v780 = vadd.f32 0.0, %v779
        %v781 = vpop.f32.mrb[0].mxu0
        %v782 = vadd.f32 0.0, %v781
        %783 = vmatprep.mubr.bf16.mxu0 0
        %784 = vmatmul.mubr.bf16.gmra.mrb[0].mxu0 %v380
        %v785 = vpop.f32.mrb[0].mxu0
        %v786 = vadd.f32 0.0, %v785
        %v787 = vpop.f32.mrb[0].mxu0
        %v788 = vadd.f32 0.0, %v787
        %v789 = vpop.f32.mrb[0].mxu0
        %v790 = vadd.f32 0.0, %v789
        %v791 = vpop.f32.mrb[0].mxu0
        %v792 = vadd.f32 0.0, %v791
        %793 = vmatprep.mubr.bf16.mxu0 0
        %794 = vmatmul.mubr.bf16.gmra.mrb[0].mxu0 %v383
        %v795 = vpop.f32.mrb[0].mxu0
        %v796 = vadd.f32 0.0, %v795
        %v797 = vpop.f32.mrb[0].mxu0
        %v798 = vadd.f32 0.0, %v797
        %v799 = vpop.f32.mrb[0].mxu0
        %v800 = vadd.f32 0.0, %v799
        %v801 = vpop.f32.mrb[0].mxu0
        %v802 = vadd.f32 0.0, %v801
        %803 = vmatprep.mubr.bf16.mxu0 0
        %804 = vmatmul.mubr.bf16.gmra.mrb[0].mxu0 %v386
        %v805 = vpop.f32.mrb[0].mxu0
        %v806 = vadd.f32 0.0, %v805
        %v807 = vpop.f32.mrb[0].mxu0
        %v808 = vadd.f32 0.0, %v807
        %v809 = vpop.f32.mrb[0].mxu0
        %v810 = vadd.f32 0.0, %v809
        %v811 = vpop.f32.mrb[0].mxu0
        %v812 = vadd.f32 0.0, %v811
        %813 = vmatprep.mubr.bf16.mxu0 0
        %814 = vmatmul.mubr.bf16.gmra.mrb[0].mxu0 %v389
        %v815 = vpop.f32.mrb[0].mxu0
        %v816 = vadd.f32 0.0, %v815
        %v817 = vpop.f32.mrb[0].mxu0
        %v818 = vadd.f32 0.0, %v817
        %v819 = vpop.f32.mrb[0].mxu0
        %v820 = vadd.f32 0.0, %v819
        %v821 = vpop.f32.mrb[0].mxu0
        %v822 = vadd.f32 0.0, %v821
        %823 = vmatprep.mubr.bf16.mxu0 0
        %824 = vmatmul.mubr.bf16.gmra.mrb[0].mxu0 %v392
        %v825 = vpop.f32.mrb[0].mxu0
        %v826 = vadd.f32 0.0, %v825
        %v827 = vpop.f32.mrb[0].mxu0
        %v828 = vadd.f32 0.0, %v827
        %v829 = vpop.f32.mrb[0].mxu0
        %v830 = vadd.f32 0.0, %v829
        %v831 = vpop.f32.mrb[0].mxu0
        %v832 = vadd.f32 0.0, %v831
        %833 = vmatprep.mubr.bf16.mxu0 0
        %834 = vmatmul.mubr.bf16.gmra.mrb[0].mxu0 %v395
        %v835 = vpop.f32.mrb[0].mxu0
        %v836 = vadd.f32 0.0, %v835
        %v837 = vpop.f32.mrb[0].mxu0
        %v838 = vadd.f32 0.0, %v837
        %v839 = vpop.f32.mrb[0].mxu0
        %v840 = vadd.f32 0.0, %v839
        %v841 = vpop.f32.mrb[0].mxu0
        %v842 = vadd.f32 0.0, %v841
        %843 = vmatprep.mubr.bf16.mxu0 0
        %844 = vmatmul.mubr.bf16.gmra.mrb[0].mxu0 %v398
        %v845 = vpop.f32.mrb[0].mxu0
        %v846 = vadd.f32 0.0, %v845
        %v847 = vpop.f32.mrb[0].mxu0
        %v848 = vadd.f32 0.0, %v847
        %v849 = vpop.f32.mrb[0].mxu0
        %v850 = vadd.f32 0.0, %v849
        %v851 = vpop.f32.mrb[0].mxu0
        %v852 = vadd.f32 0.0, %v851
        %853 = vmatprep.mubr.bf16.mxu0 0
        %854 = vmatmul.mubr.bf16.gmra.mrb[0].mxu0 %v401
        %v855 = vpop.f32.mrb[0].mxu0
        %v856 = vadd.f32 0.0, %v855
        %v857 = vpop.f32.mrb[0].mxu0
        %v858 = vadd.f32 0.0, %v857
        %v859 = vpop.f32.mrb[0].mxu0
        %v860 = vadd.f32 0.0, %v859
        %v861 = vpop.f32.mrb[0].mxu0
        %v862 = vadd.f32 0.0, %v861
        %863 = vmatprep.mubr.bf16.mxu0 0
        %864 = vmatmul.mubr.bf16.gmra.mrb[0].mxu0 %v404
        %v865 = vpop.f32.mrb[0].mxu0
        %v866 = vadd.f32 0.0, %v865
        %v867 = vpop.f32.mrb[0].mxu0
        %v868 = vadd.f32 0.0, %v867
        %v869 = vpop.f32.mrb[0].mxu0
        %v870 = vadd.f32 0.0, %v869
        %v871 = vpop.f32.mrb[0].mxu0
        %v872 = vadd.f32 0.0, %v871
        %873 = vmatprep.mubr.bf16.mxu0 0
        %874 = vmatmul.mubr.bf16.gmra.mrb[0].mxu0 %v407
        %v875 = vpop.f32.mrb[0].mxu0
        %v876 = vadd.f32 0.0, %v875
        %v877 = vpop.f32.mrb[0].mxu0
        %v878 = vadd.f32 0.0, %v877
        %v879 = vpop.f32.mrb[0].mxu0
        %v880 = vadd.f32 0.0, %v879
        %v881 = vpop.f32.mrb[0].mxu0
        %v882 = vadd.f32 0.0, %v881
        %883 = vmatprep.mubr.bf16.mxu0 0
        %884 = vmatmul.mubr.bf16.gmra.mrb[0].mxu0 %v410
        %v885 = vpop.f32.mrb[0].mxu0
        %v886 = vadd.f32 0.0, %v885
        %v887 = vpop.f32.mrb[0].mxu0
        %v888 = vadd.f32 0.0, %v887
        %v889 = vpop.f32.mrb[0].mxu0
        %v890 = vadd.f32 0.0, %v889
        %v891 = vpop.f32.mrb[0].mxu0
        %v892 = vadd.f32 0.0, %v891
        %893 = vmatprep.mubr.bf16.mxu0 0
        %894 = vmatmul.mubr.bf16.gmra.mrb[0].mxu0 %v413
        %v895 = vpop.f32.mrb[0].mxu0
        %v896 = vadd.f32 0.0, %v895
        %v897 = vpop.f32.mrb[0].mxu0
        %v898 = vadd.f32 0.0, %v897
        %v899 = vpop.f32.mrb[0].mxu0
        %v900 = vadd.f32 0.0, %v899
        %v901 = vpop.f32.mrb[0].mxu0
        %v902 = vadd.f32 0.0, %v901
        %903 = vmatprep.mubr.bf16.mxu0 0
        %904 = vmatmul.mubr.bf16.gmra.mrb[0].mxu0 %v416
        %v905 = vpop.f32.mrb[0].mxu0
        %v906 = vadd.f32 0.0, %v905
        %v907 = vpop.f32.mrb[0].mxu0
        %v908 = vadd.f32 0.0, %v907
        %v909 = vpop.f32.mrb[0].mxu0
        %v910 = vadd.f32 0.0, %v909
        %v911 = vpop.f32.mrb[0].mxu0
        %v912 = vadd.f32 0.0, %v911
        %913 = vmatprep.mubr.bf16.mxu0 0
        %914 = vmatmul.mubr.bf16.gmra.mrb[0].mxu0 %v419
        %v915 = vpop.f32.mrb[0].mxu0
        %v916 = vadd.f32 0.0, %v915
        %v917 = vpop.f32.mrb[0].mxu0
        %v918 = vadd.f32 0.0, %v917
        %v919 = vpop.f32.mrb[0].mxu0
        %v920 = vadd.f32 0.0, %v919
        %v921 = vpop.f32.mrb[0].mxu0
        %v922 = vadd.f32 0.0, %v921
        %923 = vmatprep.mubr.bf16.mxu0 0
        %924 = vmatmul.mubr.bf16.gmra.mrb[0].mxu0 %v422
        %v925 = vpop.f32.mrb[0].mxu0
        %v926 = vadd.f32 0.0, %v925
        %v927 = vpop.f32.mrb[0].mxu0
        %v928 = vadd.f32 0.0, %v927
        %v929 = vpop.f32.mrb[0].mxu0
        %v930 = vadd.f32 0.0, %v929
        %v931 = vpop.f32.mrb[0].mxu0
        %v932 = vadd.f32 0.0, %v931
        %933 = vmatprep.mubr.bf16.mxu0 0
        %934 = vmatmul.mubr.bf16.gmra.mrb[0].mxu0 %v425
        %v935 = vpop.f32.mrb[0].mxu0
        %v936 = vadd.f32 0.0, %v935
        %v937 = vpop.f32.mrb[0].mxu0
        %v938 = vadd.f32 0.0, %v937
        %v939 = vpop.f32.mrb[0].mxu0
        %v940 = vadd.f32 0.0, %v939
        %v941 = vpop.f32.mrb[0].mxu0
        %v942 = vadd.f32 0.0, %v941
        %943 = vmatprep.mubr.bf16.mxu0 0
        %944 = vmatmul.mubr.bf16.gmra.mrb[0].mxu0 %v428
        %v945 = vpop.f32.mrb[0].mxu0
        %v946 = vadd.f32 0.0, %v945
        %v947 = vpop.f32.mrb[0].mxu0
        %v948 = vadd.f32 0.0, %v947
        %v949 = vpop.f32.mrb[0].mxu0
        %v950 = vadd.f32 0.0, %v949
        %v951 = vpop.f32.mrb[0].mxu0
        %v952 = vadd.f32 0.0, %v951
        %953 = vmatprep.mubr.bf16.mxu0 0
        %954 = vmatmul.mubr.bf16.gmra.mrb[0].mxu0 %v431
        %v955 = vpop.f32.mrb[0].mxu0
        %v956 = vadd.f32 0.0, %v955
        %v957 = vpop.f32.mrb[0].mxu0
        %v958 = vadd.f32 0.0, %v957
        %v959 = vpop.f32.mrb[0].mxu0
        %v960 = vadd.f32 0.0, %v959
        %v961 = vpop.f32.mrb[0].mxu0
        %v962 = vadd.f32 0.0, %v961
        %963 = vmatprep.mubr.bf16.mxu0 0
        %964 = vmatmul.mubr.bf16.gmra.mrb[0].mxu0 %v434
        %v965 = vpop.f32.mrb[0].mxu0
        %v966 = vadd.f32 0.0, %v965
        %v967 = vpop.f32.mrb[0].mxu0
        %v968 = vadd.f32 0.0, %v967
        %v969 = vpop.f32.mrb[0].mxu0
        %v970 = vadd.f32 0.0, %v969
        %v971 = vpop.f32.mrb[0].mxu0
        %v972 = vadd.f32 0.0, %v971
        %973 = vmatprep.mubr.bf16.mxu0 0
        %974 = vmatmul.mubr.bf16.gmra.mrb[0].mxu0 %v437
        %v975 = vpop.f32.mrb[0].mxu0
        %v976 = vadd.f32 0.0, %v975
        %v977 = vpop.f32.mrb[0].mxu0
        %v978 = vadd.f32 0.0, %v977
        %v979 = vpop.f32.mrb[0].mxu0
        %v980 = vadd.f32 0.0, %v979
        %v981 = vpop.f32.mrb[0].mxu0
        %v982 = vadd.f32 0.0, %v981
        %983 = vmatprep.mubr.bf16.mxu0 0
        %984 = vmatmul.mubr.bf16.gmra.mrb[0].mxu0 %v440
        %v985 = vpop.f32.mrb[0].mxu0
        %v986 = vadd.f32 0.0, %v985
        %v987 = vpop.f32.mrb[0].mxu0
        %v988 = vadd.f32 0.0, %v987
        %v989 = vpop.f32.mrb[0].mxu0
        %v990 = vadd.f32 0.0, %v989
        %v991 = vpop.f32.mrb[0].mxu0
        %v992 = vadd.f32 0.0, %v991
        %993 = vmatprep.mubr.bf16.mxu0 0
        %994 = vmatmul.mubr.bf16.gmra.mrb[0].mxu0 %v443
        %v995 = vpop.f32.mrb[0].mxu0
        %v996 = vadd.f32 0.0, %v995
        %v997 = vpop.f32.mrb[0].mxu0
        %v998 = vadd.f32 0.0, %v997
        %v999 = vpop.f32.mrb[0].mxu0
        %v1000 = vadd.f32 0.0, %v999
        %v1001 = vpop.f32.mrb[0].mxu0
        %v1002 = vadd.f32 0.0, %v1001
        %1003 = vdwg.mxu0
        %v1004 = vpack.c.bf16 %v497, %v493
        %v1005 = vpack.c.bf16 %v499, %v495
        %v1006 = vpack.c.bf16 %v770, %v766
        %v1007 = vpack.c.bf16 %v772, %v768
        %v1008 = vpack.c.bf16 %v507, %v503
        %v1009 = vpack.c.bf16 %v509, %v505
        %v1010 = vpack.c.bf16 %v780, %v776
        %v1011 = vpack.c.bf16 %v782, %v778
        %v1012 = vpack.c.bf16 %v517, %v513
        %v1013 = vpack.c.bf16 %v519, %v515
        %v1014 = vpack.c.bf16 %v790, %v786
        %v1015 = vpack.c.bf16 %v792, %v788
        %v1016 = vpack.c.bf16 %v527, %v523
        %v1017 = vpack.c.bf16 %v529, %v525
        %v1018 = vpack.c.bf16 %v800, %v796
        %v1019 = vpack.c.bf16 %v802, %v798
        %v1020 = vpack.c.bf16 %v537, %v533
        %v1021 = vpack.c.bf16 %v539, %v535
        %v1022 = vpack.c.bf16 %v810, %v806
        %v1023 = vpack.c.bf16 %v812, %v808
        %v1024 = vpack.c.bf16 %v547, %v543
        %v1025 = vpack.c.bf16 %v549, %v545
        %v1026 = vpack.c.bf16 %v820, %v816
        %v1027 = vpack.c.bf16 %v822, %v818
        %v1028 = vpack.c.bf16 %v557, %v553
        %v1029 = vpack.c.bf16 %v559, %v555
        %v1030 = vpack.c.bf16 %v830, %v826
        %v1031 = vpack.c.bf16 %v832, %v828
        %v1032 = vpack.c.bf16 %v567, %v563
        %v1033 = vpack.c.bf16 %v569, %v565
        %v1034 = vpack.c.bf16 %v840, %v836
        %v1035 = vpack.c.bf16 %v842, %v838
        %v1036 = vpack.c.bf16 %v577, %v573
        %v1037 = vpack.c.bf16 %v579, %v575
        %v1038 = vpack.c.bf16 %v850, %v846
        %v1039 = vpack.c.bf16 %v852, %v848
        %v1040 = vpack.c.bf16 %v587, %v583
        %v1041 = vpack.c.bf16 %v589, %v585
        %v1042 = vpack.c.bf16 %v860, %v856
        %v1043 = vpack.c.bf16 %v862, %v858
        %v1044 = vpack.c.bf16 %v597, %v593
        %v1045 = vpack.c.bf16 %v599, %v595
        %v1046 = vpack.c.bf16 %v870, %v866
        %v1047 = vpack.c.bf16 %v872, %v868
        %v1048 = vpack.c.bf16 %v607, %v603
        %v1049 = vpack.c.bf16 %v609, %v605
        %v1050 = vpack.c.bf16 %v880, %v876
        %v1051 = vpack.c.bf16 %v882, %v878
        %v1052 = vpack.c.bf16 %v617, %v613
        %v1053 = vpack.c.bf16 %v619, %v615
        %v1054 = vpack.c.bf16 %v890, %v886
        %v1055 = vpack.c.bf16 %v892, %v888
        %v1056 = vpack.c.bf16 %v627, %v623
        %v1057 = vpack.c.bf16 %v629, %v625
        %v1058 = vpack.c.bf16 %v900, %v896
        %v1059 = vpack.c.bf16 %v902, %v898
        %v1060 = vpack.c.bf16 %v637, %v633
        %v1061 = vpack.c.bf16 %v639, %v635
        %v1062 = vpack.c.bf16 %v910, %v906
        %v1063 = vpack.c.bf16 %v912, %v908
        %v1064 = vpack.c.bf16 %v647, %v643
        %v1065 = vpack.c.bf16 %v649, %v645
        %v1066 = vpack.c.bf16 %v920, %v916
        %v1067 = vpack.c.bf16 %v922, %v918
        %v1068 = vpack.c.bf16 %v657, %v653
        %v1069 = vpack.c.bf16 %v659, %v655
        %v1070 = vpack.c.bf16 %v930, %v926
        %v1071 = vpack.c.bf16 %v932, %v928
        %v1072 = vpack.c.bf16 %v667, %v663
        %v1073 = vpack.c.bf16 %v669, %v665
        %v1074 = vpack.c.bf16 %v940, %v936
        %v1075 = vpack.c.bf16 %v942, %v938
        %v1076 = vpack.c.bf16 %v677, %v673
        %v1077 = vpack.c.bf16 %v679, %v675
        %v1078 = vpack.c.bf16 %v950, %v946
        %v1079 = vpack.c.bf16 %v952, %v948
        %v1080 = vpack.c.bf16 %v687, %v683
        %v1081 = vpack.c.bf16 %v689, %v685
        %v1082 = vpack.c.bf16 %v960, %v956
        %v1083 = vpack.c.bf16 %v962, %v958
        %v1084 = vpack.c.bf16 %v697, %v693
        %v1085 = vpack.c.bf16 %v699, %v695
        %v1086 = vpack.c.bf16 %v970, %v966
        %v1087 = vpack.c.bf16 %v972, %v968
        %v1088 = vpack.c.bf16 %v707, %v703
        %v1089 = vpack.c.bf16 %v709, %v705
        %v1090 = vpack.c.bf16 %v980, %v976
        %v1091 = vpack.c.bf16 %v982, %v978
        %v1092 = vpack.c.bf16 %v717, %v713
        %v1093 = vpack.c.bf16 %v719, %v715
        %v1094 = vpack.c.bf16 %v990, %v986
        %v1095 = vpack.c.bf16 %v992, %v988
        %v1096 = vpack.c.bf16 %v727, %v723
        %v1097 = vpack.c.bf16 %v729, %v725
        %v1098 = vpack.c.bf16 %v1000, %v996
        %v1099 = vpack.c.bf16 %v1002, %v998
        %v1196 = vunpack.c.l.b16 %v1004
        %v1197 = vunpack.c.l.b16 %v1005
        %v1198 = vunpack.c.l.b16 %v1006
        %v1199 = vunpack.c.l.b16 %v1007
        %v1200 = vunpack.c.h.b16 %v1004
        %v1201 = vunpack.c.h.b16 %v1005
        %v1202 = vunpack.c.h.b16 %v1006
        %v1203 = vunpack.c.h.b16 %v1007
        %v1204 = vunpack.c.l.b16 %v1008
        %v1205 = vunpack.c.l.b16 %v1009
        %v1206 = vunpack.c.l.b16 %v1010
        %v1207 = vunpack.c.l.b16 %v1011
        %v1208 = vunpack.c.h.b16 %v1008
        %v1209 = vunpack.c.h.b16 %v1009
        %v1210 = vunpack.c.h.b16 %v1010
        %v1211 = vunpack.c.h.b16 %v1011
        %v1212 = vunpack.c.l.b16 %v1012
        %v1213 = vunpack.c.l.b16 %v1013
        %v1214 = vunpack.c.l.b16 %v1014
        %v1215 = vunpack.c.l.b16 %v1015
        %v1216 = vunpack.c.h.b16 %v1012
        %v1217 = vunpack.c.h.b16 %v1013
        %v1218 = vunpack.c.h.b16 %v1014
        %v1219 = vunpack.c.h.b16 %v1015
        %v1220 = vunpack.c.l.b16 %v1016
        %v1221 = vunpack.c.l.b16 %v1017
        %v1222 = vunpack.c.l.b16 %v1018
        %v1223 = vunpack.c.l.b16 %v1019
        %v1224 = vunpack.c.h.b16 %v1016
        %v1225 = vunpack.c.h.b16 %v1017
        %v1226 = vunpack.c.h.b16 %v1018
        %v1227 = vunpack.c.h.b16 %v1019
        %v1228 = vunpack.c.l.b16 %v1020
        %v1229 = vunpack.c.l.b16 %v1021
        %v1230 = vunpack.c.l.b16 %v1022
        %v1231 = vunpack.c.l.b16 %v1023
        %v1232 = vunpack.c.h.b16 %v1020
        %v1233 = vunpack.c.h.b16 %v1021
        %v1234 = vunpack.c.h.b16 %v1022
        %v1235 = vunpack.c.h.b16 %v1023
        %v1236 = vunpack.c.l.b16 %v1024
        %v1237 = vunpack.c.l.b16 %v1025
        %v1238 = vunpack.c.l.b16 %v1026
        %v1239 = vunpack.c.l.b16 %v1027
        %v1240 = vunpack.c.h.b16 %v1024
        %v1241 = vunpack.c.h.b16 %v1025
        %v1242 = vunpack.c.h.b16 %v1026
        %v1243 = vunpack.c.h.b16 %v1027
        %v1244 = vunpack.c.l.b16 %v1028
        %v1245 = vunpack.c.l.b16 %v1029
        %v1246 = vunpack.c.l.b16 %v1030
        %v1247 = vunpack.c.l.b16 %v1031
        %v1248 = vunpack.c.h.b16 %v1028
        %v1249 = vunpack.c.h.b16 %v1029
        %v1250 = vunpack.c.h.b16 %v1030
        %v1251 = vunpack.c.h.b16 %v1031
        %v1252 = vunpack.c.l.b16 %v1032
        %v1253 = vunpack.c.l.b16 %v1033
        %v1254 = vunpack.c.l.b16 %v1034
        %v1255 = vunpack.c.l.b16 %v1035
        %v1256 = vunpack.c.h.b16 %v1032
        %v1257 = vunpack.c.h.b16 %v1033
        %v1258 = vunpack.c.h.b16 %v1034
        %v1259 = vunpack.c.h.b16 %v1035
        %v1260 = vunpack.c.l.b16 %v1036
        %v1261 = vunpack.c.l.b16 %v1037
        %v1262 = vunpack.c.l.b16 %v1038
        %v1263 = vunpack.c.l.b16 %v1039
        %v1264 = vunpack.c.h.b16 %v1036
        %v1265 = vunpack.c.h.b16 %v1037
        %v1266 = vunpack.c.h.b16 %v1038
        %v1267 = vunpack.c.h.b16 %v1039
        %v1268 = vunpack.c.l.b16 %v1040
        %v1269 = vunpack.c.l.b16 %v1041
        %v1270 = vunpack.c.l.b16 %v1042
        %v1271 = vunpack.c.l.b16 %v1043
        %v1272 = vunpack.c.h.b16 %v1040
        %v1273 = vunpack.c.h.b16 %v1041
        %v1274 = vunpack.c.h.b16 %v1042
        %v1275 = vunpack.c.h.b16 %v1043
        %v1276 = vunpack.c.l.b16 %v1044
        %v1277 = vunpack.c.l.b16 %v1045
        %v1278 = vunpack.c.l.b16 %v1046
        %v1279 = vunpack.c.l.b16 %v1047
        %v1280 = vunpack.c.h.b16 %v1044
        %v1281 = vunpack.c.h.b16 %v1045
        %v1282 = vunpack.c.h.b16 %v1046
        %v1283 = vunpack.c.h.b16 %v1047
        %v1284 = vunpack.c.l.b16 %v1048
        %v1285 = vunpack.c.l.b16 %v1049
        %v1286 = vunpack.c.l.b16 %v1050
        %v1287 = vunpack.c.l.b16 %v1051
        %v1288 = vunpack.c.h.b16 %v1048
        %v1289 = vunpack.c.h.b16 %v1049
        %v1290 = vunpack.c.h.b16 %v1050
        %v1291 = vunpack.c.h.b16 %v1051
        %v1292 = vunpack.c.l.b16 %v1052
        %v1293 = vunpack.c.l.b16 %v1053
        %v1294 = vunpack.c.l.b16 %v1054
        %v1295 = vunpack.c.l.b16 %v1055
        %v1296 = vunpack.c.h.b16 %v1052
        %v1297 = vunpack.c.h.b16 %v1053
        %v1298 = vunpack.c.h.b16 %v1054
        %v1299 = vunpack.c.h.b16 %v1055
        %v1300 = vunpack.c.l.b16 %v1056
        %v1301 = vunpack.c.l.b16 %v1057
        %v1302 = vunpack.c.l.b16 %v1058
        %v1303 = vunpack.c.l.b16 %v1059
        %v1304 = vunpack.c.h.b16 %v1056
        %v1305 = vunpack.c.h.b16 %v1057
        %v1306 = vunpack.c.h.b16 %v1058
        %v1307 = vunpack.c.h.b16 %v1059
        %v1308 = vunpack.c.l.b16 %v1060
        %v1309 = vunpack.c.l.b16 %v1061
        %v1310 = vunpack.c.l.b16 %v1062
        %v1311 = vunpack.c.l.b16 %v1063
        %v1312 = vunpack.c.h.b16 %v1060
        %v1313 = vunpack.c.h.b16 %v1061
        %v1314 = vunpack.c.h.b16 %v1062
        %v1315 = vunpack.c.h.b16 %v1063
        %v1316 = vunpack.c.l.b16 %v1064
        %v1317 = vunpack.c.l.b16 %v1065
        %v1318 = vunpack.c.l.b16 %v1066
        %v1319 = vunpack.c.l.b16 %v1067
        %v1320 = vunpack.c.h.b16 %v1064
        %v1321 = vunpack.c.h.b16 %v1065
        %v1322 = vunpack.c.h.b16 %v1066
        %v1323 = vunpack.c.h.b16 %v1067
        %v1324 = vunpack.c.l.b16 %v1068
        %v1325 = vunpack.c.l.b16 %v1069
        %v1326 = vunpack.c.l.b16 %v1070
        %v1327 = vunpack.c.l.b16 %v1071
        %v1328 = vunpack.c.h.b16 %v1068
        %v1329 = vunpack.c.h.b16 %v1069
        %v1330 = vunpack.c.h.b16 %v1070
        %v1331 = vunpack.c.h.b16 %v1071
        %v1332 = vunpack.c.l.b16 %v1072
        %v1333 = vunpack.c.l.b16 %v1073
        %v1334 = vunpack.c.l.b16 %v1074
        %v1335 = vunpack.c.l.b16 %v1075
        %v1336 = vunpack.c.h.b16 %v1072
        %v1337 = vunpack.c.h.b16 %v1073
        %v1338 = vunpack.c.h.b16 %v1074
        %v1339 = vunpack.c.h.b16 %v1075
        %v1340 = vunpack.c.l.b16 %v1076
        %v1341 = vunpack.c.l.b16 %v1077
        %v1342 = vunpack.c.l.b16 %v1078
        %v1343 = vunpack.c.l.b16 %v1079
        %v1344 = vunpack.c.h.b16 %v1076
        %v1345 = vunpack.c.h.b16 %v1077
        %v1346 = vunpack.c.h.b16 %v1078
        %v1347 = vunpack.c.h.b16 %v1079
        %v1348 = vunpack.c.l.b16 %v1080
        %v1349 = vunpack.c.l.b16 %v1081
        %v1350 = vunpack.c.l.b16 %v1082
        %v1351 = vunpack.c.l.b16 %v1083
        %v1352 = vunpack.c.h.b16 %v1080
        %v1353 = vunpack.c.h.b16 %v1081
        %v1354 = vunpack.c.h.b16 %v1082
        %v1355 = vunpack.c.h.b16 %v1083
        %v1356 = vunpack.c.l.b16 %v1084
        %v1357 = vunpack.c.l.b16 %v1085
        %v1358 = vunpack.c.l.b16 %v1086
        %v1359 = vunpack.c.l.b16 %v1087
        %v1360 = vunpack.c.h.b16 %v1084
        %v1361 = vunpack.c.h.b16 %v1085
        %v1362 = vunpack.c.h.b16 %v1086
        %v1363 = vunpack.c.h.b16 %v1087
        %v1364 = vunpack.c.l.b16 %v1088
        %v1365 = vunpack.c.l.b16 %v1089
        %v1366 = vunpack.c.l.b16 %v1090
        %v1367 = vunpack.c.l.b16 %v1091
        %v1368 = vunpack.c.h.b16 %v1088
        %v1369 = vunpack.c.h.b16 %v1089
        %v1370 = vunpack.c.h.b16 %v1090
        %v1371 = vunpack.c.h.b16 %v1091
        %v1372 = vunpack.c.l.b16 %v1092
        %v1373 = vunpack.c.l.b16 %v1093
        %v1374 = vunpack.c.l.b16 %v1094
        %v1375 = vunpack.c.l.b16 %v1095
        %v1376 = vunpack.c.h.b16 %v1092
        %v1377 = vunpack.c.h.b16 %v1093
        %v1378 = vunpack.c.h.b16 %v1094
        %v1379 = vunpack.c.h.b16 %v1095
        %v1380 = vunpack.c.l.b16 %v1096
        %v1381 = vunpack.c.l.b16 %v1097
        %v1382 = vunpack.c.l.b16 %v1098
        %v1383 = vunpack.c.l.b16 %v1099
        %v1384 = vunpack.c.h.b16 %v1096
        %v1385 = vunpack.c.h.b16 %v1097
        %v1386 = vunpack.c.h.b16 %v1098
        %v1387 = vunpack.c.h.b16 %v1099
        %v1388 = vpack.c.b16 %v1197, %v1196
        %v1389 = vpack.c.b16 %v1199, %v1198
        %v1390 = vpack.c.b16 %v1201, %v1200
        %v1391 = vpack.c.b16 %v1203, %v1202
        %v1392 = vpack.c.b16 %v1205, %v1204
        %v1393 = vpack.c.b16 %v1207, %v1206
        %v1394 = vpack.c.b16 %v1209, %v1208
        %v1395 = vpack.c.b16 %v1211, %v1210
        %v1396 = vpack.c.b16 %v1213, %v1212
        %v1397 = vpack.c.b16 %v1215, %v1214
        %v1398 = vpack.c.b16 %v1217, %v1216
        %v1399 = vpack.c.b16 %v1219, %v1218
        %v1400 = vpack.c.b16 %v1221, %v1220
        %v1401 = vpack.c.b16 %v1223, %v1222
        %v1402 = vpack.c.b16 %v1225, %v1224
        %v1403 = vpack.c.b16 %v1227, %v1226
        %v1404 = vpack.c.b16 %v1229, %v1228
        %v1405 = vpack.c.b16 %v1231, %v1230
        %v1406 = vpack.c.b16 %v1233, %v1232
        %v1407 = vpack.c.b16 %v1235, %v1234
        %v1408 = vpack.c.b16 %v1237, %v1236
        %v1409 = vpack.c.b16 %v1239, %v1238
        %v1410 = vpack.c.b16 %v1241, %v1240
        %v1411 = vpack.c.b16 %v1243, %v1242
        %v1412 = vpack.c.b16 %v1245, %v1244
        %v1413 = vpack.c.b16 %v1247, %v1246
        %v1414 = vpack.c.b16 %v1249, %v1248
        %v1415 = vpack.c.b16 %v1251, %v1250
        %v1416 = vpack.c.b16 %v1253, %v1252
        %v1417 = vpack.c.b16 %v1255, %v1254
        %v1418 = vpack.c.b16 %v1257, %v1256
        %v1419 = vpack.c.b16 %v1259, %v1258
        %v1420 = vpack.c.b16 %v1261, %v1260
        %v1421 = vpack.c.b16 %v1263, %v1262
        %v1422 = vpack.c.b16 %v1265, %v1264
        %v1423 = vpack.c.b16 %v1267, %v1266
        %v1424 = vpack.c.b16 %v1269, %v1268
        %v1425 = vpack.c.b16 %v1271, %v1270
        %v1426 = vpack.c.b16 %v1273, %v1272
        %v1427 = vpack.c.b16 %v1275, %v1274
        %v1428 = vpack.c.b16 %v1277, %v1276
        %v1429 = vpack.c.b16 %v1279, %v1278
        %v1430 = vpack.c.b16 %v1281, %v1280
        %v1431 = vpack.c.b16 %v1283, %v1282
        %v1432 = vpack.c.b16 %v1285, %v1284
        %v1433 = vpack.c.b16 %v1287, %v1286
        %v1434 = vpack.c.b16 %v1289, %v1288
        %v1435 = vpack.c.b16 %v1291, %v1290
        %v1436 = vpack.c.b16 %v1293, %v1292
        %v1437 = vpack.c.b16 %v1295, %v1294
        %v1438 = vpack.c.b16 %v1297, %v1296
        %v1439 = vpack.c.b16 %v1299, %v1298
        %v1440 = vpack.c.b16 %v1301, %v1300
        %v1441 = vpack.c.b16 %v1303, %v1302
        %v1442 = vpack.c.b16 %v1305, %v1304
        %v1443 = vpack.c.b16 %v1307, %v1306
        %v1444 = vpack.c.b16 %v1309, %v1308
        %v1445 = vpack.c.b16 %v1311, %v1310
        %v1446 = vpack.c.b16 %v1313, %v1312
        %v1447 = vpack.c.b16 %v1315, %v1314
        %v1448 = vpack.c.b16 %v1317, %v1316
        %v1449 = vpack.c.b16 %v1319, %v1318
        %v1450 = vpack.c.b16 %v1321, %v1320
        %v1451 = vpack.c.b16 %v1323, %v1322
        %v1452 = vpack.c.b16 %v1325, %v1324
        %v1453 = vpack.c.b16 %v1327, %v1326
        %v1454 = vpack.c.b16 %v1329, %v1328
        %v1455 = vpack.c.b16 %v1331, %v1330
        %v1456 = vpack.c.b16 %v1333, %v1332
        %v1457 = vpack.c.b16 %v1335, %v1334
        %v1458 = vpack.c.b16 %v1337, %v1336
        %v1459 = vpack.c.b16 %v1339, %v1338
        %v1460 = vpack.c.b16 %v1341, %v1340
        %v1461 = vpack.c.b16 %v1343, %v1342
        %v1462 = vpack.c.b16 %v1345, %v1344
        %v1463 = vpack.c.b16 %v1347, %v1346
        %v1464 = vpack.c.b16 %v1349, %v1348
        %v1465 = vpack.c.b16 %v1351, %v1350
        %v1466 = vpack.c.b16 %v1353, %v1352
        %v1467 = vpack.c.b16 %v1355, %v1354
        %v1468 = vpack.c.b16 %v1357, %v1356
        %v1469 = vpack.c.b16 %v1359, %v1358
        %v1470 = vpack.c.b16 %v1361, %v1360
        %v1471 = vpack.c.b16 %v1363, %v1362
        %v1472 = vpack.c.b16 %v1365, %v1364
        %v1473 = vpack.c.b16 %v1367, %v1366
        %v1474 = vpack.c.b16 %v1369, %v1368
        %v1475 = vpack.c.b16 %v1371, %v1370
        %v1476 = vpack.c.b16 %v1373, %v1372
        %v1477 = vpack.c.b16 %v1375, %v1374
        %v1478 = vpack.c.b16 %v1377, %v1376
        %v1479 = vpack.c.b16 %v1379, %v1378
        %v1480 = vpack.c.b16 %v1381, %v1380
        %v1481 = vpack.c.b16 %v1383, %v1382
        %v1482 = vpack.c.b16 %v1385, %v1384
        %v1483 = vpack.c.b16 %v1387, %v1386
        %1580 = vst [vmem:[%s192] sm:$0xff] %v1388
        %1581 = vst [vmem:[%s192 + $0x8] sm:$0xff] %v1389
        %1582 = vst [vmem:[%s192 + $0x10] sm:$0xff] %v1390
        %1583 = vst [vmem:[%s192 + $0x18] sm:$0xff] %v1391
        %1584 = vst [vmem:[%s192 + $0x20] sm:$0xff] %v1392
        %1585 = vst [vmem:[%s192 + $0x28] sm:$0xff] %v1393
        %1586 = vst [vmem:[%s192 + $0x30] sm:$0xff] %v1394
        %1587 = vst [vmem:[%s192 + $0x38] sm:$0xff] %v1395
        %1588 = vst [vmem:[%s192 + $0x40] sm:$0xff] %v1396
        %1589 = vst [vmem:[%s192 + $0x48] sm:$0xff] %v1397
        %1590 = vst [vmem:[%s192 + $0x50] sm:$0xff] %v1398
        %1591 = vst [vmem:[%s192 + $0x58] sm:$0xff] %v1399
        %1592 = vst [vmem:[%s192 + $0x60] sm:$0xff] %v1400
        %1593 = vst [vmem:[%s192 + $0x68] sm:$0xff] %v1401
        %1594 = vst [vmem:[%s192 + $0x70] sm:$0xff] %v1402
        %1595 = vst [vmem:[%s192 + $0x78] sm:$0xff] %v1403
        %1596 = vst [vmem:[%s192 + $0x80] sm:$0xff] %v1404
        %1597 = vst [vmem:[%s192 + $0x88] sm:$0xff] %v1405
        %1598 = vst [vmem:[%s192 + $0x90] sm:$0xff] %v1406
        %1599 = vst [vmem:[%s192 + $0x98] sm:$0xff] %v1407
        %1600 = vst [vmem:[%s192 + $0xa0] sm:$0xff] %v1408
        %1601 = vst [vmem:[%s192 + $0xa8] sm:$0xff] %v1409
        %1602 = vst [vmem:[%s192 + $0xb0] sm:$0xff] %v1410
        %1603 = vst [vmem:[%s192 + $0xb8] sm:$0xff] %v1411
        %1604 = vst [vmem:[%s192 + $0xc0] sm:$0xff] %v1412
        %1605 = vst [vmem:[%s192 + $0xc8] sm:$0xff] %v1413
        %1606 = vst [vmem:[%s192 + $0xd0] sm:$0xff] %v1414
        %1607 = vst [vmem:[%s192 + $0xd8] sm:$0xff] %v1415
        %1608 = vst [vmem:[%s192 + $0xe0] sm:$0xff] %v1416
        %1609 = vst [vmem:[%s192 + $0xe8] sm:$0xff] %v1417
        %1610 = vst [vmem:[%s192 + $0xf0] sm:$0xff] %v1418
        %1611 = vst [vmem:[%s192 + $0xf8] sm:$0xff] %v1419
        %1612 = vst [vmem:[%s192 + $0x100] sm:$0xff] %v1420
        %1613 = vst [vmem:[%s192 + $0x108] sm:$0xff] %v1421
        %1614 = vst [vmem:[%s192 + $0x110] sm:$0xff] %v1422
        %1615 = vst [vmem:[%s192 + $0x118] sm:$0xff] %v1423
        %1616 = vst [vmem:[%s192 + $0x120] sm:$0xff] %v1424
        %1617 = vst [vmem:[%s192 + $0x128] sm:$0xff] %v1425
        %1618 = vst [vmem:[%s192 + $0x130] sm:$0xff] %v1426
        %1619 = vst [vmem:[%s192 + $0x138] sm:$0xff] %v1427
        %1620 = vst [vmem:[%s192 + $0x140] sm:$0xff] %v1428
        %1621 = vst [vmem:[%s192 + $0x148] sm:$0xff] %v1429
        %1622 = vst [vmem:[%s192 + $0x150] sm:$0xff] %v1430
        %1623 = vst [vmem:[%s192 + $0x158] sm:$0xff] %v1431
        %1624 = vst [vmem:[%s192 + $0x160] sm:$0xff] %v1432
        %1625 = vst [vmem:[%s192 + $0x168] sm:$0xff] %v1433
        %1626 = vst [vmem:[%s192 + $0x170] sm:$0xff] %v1434
        %1627 = vst [vmem:[%s192 + $0x178] sm:$0xff] %v1435
        %1628 = vst [vmem:[%s192 + $0x180] sm:$0xff] %v1436
        %1629 = vst [vmem:[%s192 + $0x188] sm:$0xff] %v1437
        %1630 = vst [vmem:[%s192 + $0x190] sm:$0xff] %v1438
        %1631 = vst [vmem:[%s192 + $0x198] sm:$0xff] %v1439
        %1632 = vst [vmem:[%s192 + $0x1a0] sm:$0xff] %v1440
        %1633 = vst [vmem:[%s192 + $0x1a8] sm:$0xff] %v1441
        %1634 = vst [vmem:[%s192 + $0x1b0] sm:$0xff] %v1442
        %1635 = vst [vmem:[%s192 + $0x1b8] sm:$0xff] %v1443
        %1636 = vst [vmem:[%s192 + $0x1c0] sm:$0xff] %v1444
        %1637 = vst [vmem:[%s192 + $0x1c8] sm:$0xff] %v1445
        %1638 = vst [vmem:[%s192 + $0x1d0] sm:$0xff] %v1446
        %1639 = vst [vmem:[%s192 + $0x1d8] sm:$0xff] %v1447
        %1640 = vst [vmem:[%s192 + $0x1e0] sm:$0xff] %v1448
        %1641 = vst [vmem:[%s192 + $0x1e8] sm:$0xff] %v1449
        %1642 = vst [vmem:[%s192 + $0x1f0] sm:$0xff] %v1450
        %1643 = vst [vmem:[%s192 + $0x1f8] sm:$0xff] %v1451
        %1644 = vst [vmem:[%s192 + $0x200] sm:$0xff] %v1452
        %1645 = vst [vmem:[%s192 + $0x208] sm:$0xff] %v1453
        %1646 = vst [vmem:[%s192 + $0x210] sm:$0xff] %v1454
        %1647 = vst [vmem:[%s192 + $0x218] sm:$0xff] %v1455
        %1648 = vst [vmem:[%s192 + $0x220] sm:$0xff] %v1456
        %1649 = vst [vmem:[%s192 + $0x228] sm:$0xff] %v1457
        %1650 = vst [vmem:[%s192 + $0x230] sm:$0xff] %v1458
        %1651 = vst [vmem:[%s192 + $0x238] sm:$0xff] %v1459
        %1652 = vst [vmem:[%s192 + $0x240] sm:$0xff] %v1460
        %1653 = vst [vmem:[%s192 + $0x248] sm:$0xff] %v1461
        %1654 = vst [vmem:[%s192 + $0x250] sm:$0xff] %v1462
        %1655 = vst [vmem:[%s192 + $0x258] sm:$0xff] %v1463
        %1656 = vst [vmem:[%s192 + $0x260] sm:$0xff] %v1464
        %1657 = vst [vmem:[%s192 + $0x268] sm:$0xff] %v1465
        %1658 = vst [vmem:[%s192 + $0x270] sm:$0xff] %v1466
        %1659 = vst [vmem:[%s192 + $0x278] sm:$0xff] %v1467
        %1660 = vst [vmem:[%s192 + $0x280] sm:$0xff] %v1468
        %1661 = vst [vmem:[%s192 + $0x288] sm:$0xff] %v1469
        %1662 = vst [vmem:[%s192 + $0x290] sm:$0xff] %v1470
        %1663 = vst [vmem:[%s192 + $0x298] sm:$0xff] %v1471
        %1664 = vst [vmem:[%s192 + $0x2a0] sm:$0xff] %v1472
        %1665 = vst [vmem:[%s192 + $0x2a8] sm:$0xff] %v1473
        %1666 = vst [vmem:[%s192 + $0x2b0] sm:$0xff] %v1474
        %1667 = vst [vmem:[%s192 + $0x2b8] sm:$0xff] %v1475
        %1668 = vst [vmem:[%s192 + $0x2c0] sm:$0xff] %v1476
        %1669 = vst [vmem:[%s192 + $0x2c8] sm:$0xff] %v1477
        %1670 = vst [vmem:[%s192 + $0x2d0] sm:$0xff] %v1478
        %1671 = vst [vmem:[%s192 + $0x2d8] sm:$0xff] %v1479
        %1672 = vst [vmem:[%s192 + $0x2e0] sm:$0xff] %v1480
        %1673 = vst [vmem:[%s192 + $0x2e8] sm:$0xff] %v1481
        %1674 = vst [vmem:[%s192 + $0x2f0] sm:$0xff] %v1482
        %1675 = vst [vmem:[%s192 + $0x2f8] sm:$0xff] %v1483
        %s1676 = sand.u32 %s91, 1
        %s1677 = scalar_lea.sflag [#allocation4], %s1676
        %s1678 = sand.u32 %s91, 1
        %s1679 = smul.addr %s1678, 768
        %s1680 = scalar_lea.vmem [#allocation7], %s1679
        // Predicated region
        $region37: #{attention_forward.4} parent=27 // pred_check
          %p1681 = pneg %p101
        $region38: #{attention_forward.4} parent=27 // pred_check_branch
          %1683 = sbr.rel (%p1681) target = $region40
        $region39: #{attention_forward.4} parent=27 // pred_region
          %s1684 = smul.u32 4, %s25
          %s1686 = ssub.s32 12288, 12288
          %1687 = vsyncadd %s1677, %s1686
          %s1688 = smul.addr %s24, 192
          %s1689 = sadd.s32 %s1684, %s1688
          %s1690 = smul.addr %s1689, 64
          %s1691 = scalar_lea.hbm %s2, %s1690
          %s1692 = sshll.u32 %s1680, 4
          %s1693 = int_to_ptr.vmem [resolvable:$true] %s1692
          %1698 = dma.vmem_to_hbm [thread:$0]  %s1693, 12288, %s1691, %s1677, 256, 256, 16
        $region40: #{attention_forward.4} parent=27 // pred_fallthru
          _
      $region28: #{attention_forward.4} parent=5 // pred_fallthru
        _
      %p1699 = scmp.le.s32.totalorder 2, %s15
      // Predicated region
      $region41: #{attention_forward.4} parent=5 // pred_check
        %p1700 = pneg %p1699
      $region42: #{attention_forward.4} parent=5 // pred_check_branch
        %1702 = sbr.rel (%p1700) target = $region44
      $region43: #{attention_forward.4} parent=5 // pred_region
        %s1703 = ssub.s32 %s15, 2
        // Predicated region
        $region45: #{attention_forward.4} parent=43 // pred_check
          %p1704 = pneg %p107
        $region46: #{attention_forward.4} parent=43 // pred_check_branch
          %1706 = sbr.rel (%p1704) target = $region48
        $region47: #{attention_forward.4} parent=43 // pred_region
          %s1707 = sand.u32 %s92, 1
          %s1708 = scalar_lea.sflag [#allocation4], %s1707
          %s1709 = sand.u32 %s92, 1
          %s1710 = smul.addr %s1709, 768
          %s1711 = scalar_lea.vmem [#allocation7], %s1710
          %1712 = dma.done %s1708, 12288
        $region48: #{attention_forward.4} parent=43 // pred_fallthru
          _
      $region44: #{attention_forward.4} parent=5 // pred_fallthru
        _
    $region6: #{attention_forward.4} parent=1 // loop_footer
      %s19 = sadd.s32 1, %s15
    $region7: #{attention_forward.4} parent=1 // loop_footer_branch
      %14 = sbr.rel target = $region3
    $region8: #{attention_forward.4} parent=1 // loop_exit
      _
    %1713 = vsyncpa [#allocation3], 1
    %s1714 = scalar_lea.sflag [#allocation3], 1
    %1715 = vsyncpa %s1714, 1
    %1716 = vsyncpa [#allocation6], 1
    %1717 = vsyncpa [#allocation4], 1
    %s1718 = scalar_lea.sflag [#allocation4], 1
    %1719 = vsyncpa %s1718, 1

// kernel: attention_forward.7
$region0: #{attention_forward.7}
  #allocation0 [shape = 'u32[]', space=smem, size = 0x4, offset = 0x4, fixed_abs, tag = 'smem constant byte address 0x4 - core index']
  #allocation1 [shape = 'u32[144,128]{1,0:T(1,128)}', space=vmem, size = 0x12000, scoped, tag = 'internal scratch']
  %s0 = inlined_call_operand.hbm [shape: bf16[2,128,512], index: 0, kind: input, shape index: {}]
  %s1 = inlined_call_operand.hbm [shape: bf16[8,128], index: 1, kind: input, shape index: {}]
  %s2 = inlined_call_operand.hbm [shape: f32[8,1], index: 2, kind: input, shape index: {}]
  %s3 = inlined_call_operand.hbm [shape: f32[2,8,512], index: 3, kind: output, shape index: {}]
  %s4 = sld [smem:[#allocation0]]
  $region57: #{attention_forward.7} parent=0
    _
  %s6 = ssub.s32 1, %s4
  %s7 = scalar_select 0, %s6, %s4
  $region1: #{attention_forward.7} parent=0
    #allocation2 [shape = 'u8[262144]{0}', space=vmem, size = 0x40000, scoped, tag = 'input window, operand 0']
    #allocation3 [shape = 's32[2]{0}', space=sflag, size = 0x8, scoped, tag = 'scoped memory for attention_forward.7']
    #allocation4 [shape = 's32[2]{0}', space=sflag, size = 0x8, scoped, tag = 'scoped memory for attention_forward.7']
    #allocation5 [shape = 'u8[2048]{0}', space=vmem, size = 0x800, scoped, tag = 'input window, operand 1, single buffered']
    #allocation6 [shape = 's32[1]{0}', space=sflag, size = 0x4, scoped, tag = 'scoped memory for attention_forward.7']
    #allocation7 [shape = 'u8[4096]{0}', space=vmem, size = 0x1000, scoped, tag = 'input window, operand 2, single buffered']
    #allocation8 [shape = 'u8[32768]{0}', space=vmem, size = 0x8000, scoped, tag = 'output window, operand 0']
    %8 = vsyncpa [#allocation3], 0
    %s9 = scalar_lea.sflag [#allocation3], 1
    %10 = vsyncpa %s9, 0
    %11 = vsyncpa [#allocation6], 0
    %12 = vsyncpa [#allocation4], 0
    %s13 = scalar_lea.sflag [#allocation4], 1
    %14 = vsyncpa %s13, 0
    loop: start=0, step=1, limit=4
    $region2: #{attention_forward.7} parent=1 // loop_pre_header
      _
    $region3: #{attention_forward.7} parent=1 // loop_header
      %s16 = sphi 0, %s20
      %p17 = scmp.ge.s32.totalorder %s16, 4
      %s23 = sphi 0, %s35
      %s24 = sphi 0, %s31
      %s25 = sphi 0, %s23
      %s26 = sphi 0, %s24
      %s27 = sphi 0, %s25
      %s28 = sphi 0, %s26
      %s40 = sphi 0, %s42
      %s43 = sphi 0, %s40
      %s44 = sphi 0, %s43
      %s60 = sphi 0, %s44
      %s64 = sphi 0, %s64
      %s66 = sphi 0, %s64
      %s67 = sphi 0, %s66
      %s81 = sphi 0, %s67
      %s85 = sphi 0, %s85
      %s87 = sphi 0, %s85
      %s88 = sphi 0, %s87
      %s102 = sphi 0, %s88
      %s110 = sphi 0, %s112
      %s113 = sphi 0, %s110
      %s114 = sphi 0, %s113
      %s130 = sphi 0, %s114
    $region4: #{attention_forward.7} parent=1 // loop_header_branch
      %19 = sbr.rel (%p17) target = $region8
    $region5: #{attention_forward.7} parent=1 // loop_body
      %s21 = ssub.s32 %s16, 1
      %s22 = ssub.s32 %s16, 2
      %s29 = sadd.s32 1, %s24
      %p30 = scmp.ge.s32.totalorder %s29, 1
      %s31 = scalar_select %p30, 0, %s29
      %s32 = sadd.s32 1, %s23
      %s33 = scalar_select %p30, %s32, %s23
      %p34 = scmp.ge.s32.totalorder %s33, 2
      %s35 = scalar_select %p34, 0, %s33
      %s36 = ssub.s32 %s23, %s35
      %s37 = ssub.s32 %s24, %s31
      %s38 = sor.u32 %s36, %s37
      %p39 = scmp.eq.s32.totalorder %s38, 0
      %s41 = sadd.s32 %s40, 1
      %s42 = scalar_select %p39, %s40, %s41
      %p45 = pneg %p39
      %p46 = scmp.eq.s32.totalorder %s16, 1
      %p47 = por %p45, %p46
      %p48 = scmp.ne.s32.totalorder %s40, %s43
      %p49 = scmp.eq.s32.totalorder %s16, 0
      %p50 = por %p48, %p49
      %p51 = scmp.ne.s32.totalorder %s40, %s43
      %p52 = scmp.eq.s32.totalorder %s21, 1
      %p53 = por %p51, %p52
      %p54 = scmp.ne.s32.totalorder %s43, %s44
      %p55 = scmp.eq.s32.totalorder %s21, 0
      %p56 = por %p54, %p55
      %p57 = scmp.ne.s32.totalorder %s43, %s44
      %p58 = scmp.eq.s32.totalorder %s22, 1
      %p59 = por %p57, %p58
      %p61 = scmp.ne.s32.totalorder %s44, %s60
      %p62 = scmp.eq.s32.totalorder %s22, 0
      %p63 = por %p61, %p62
      %s65 = sadd.s32 %s64, 1
      %p68 = scmp.eq.s32.totalorder %s16, 1
      %p69 = scmp.ne.s32.totalorder %s64, %s66
      %p70 = scmp.eq.s32.totalorder %s16, 0
      %p71 = por %p69, %p70
      %p72 = scmp.ne.s32.totalorder %s64, %s66
      %p73 = scmp.eq.s32.totalorder %s21, 1
      %p74 = por %p72, %p73
      %p75 = scmp.ne.s32.totalorder %s66, %s67
      %p76 = scmp.eq.s32.totalorder %s21, 0
      %p77 = por %p75, %p76
      %p78 = scmp.ne.s32.totalorder %s66, %s67
      %p79 = scmp.eq.s32.totalorder %s22, 1
      %p80 = por %p78, %p79
      %p82 = scmp.ne.s32.totalorder %s67, %s81
      %p83 = scmp.eq.s32.totalorder %s22, 0
      %p84 = por %p82, %p83
      %s86 = sadd.s32 %s85, 1
      %p89 = scmp.eq.s32.totalorder %s16, 1
      %p90 = scmp.ne.s32.totalorder %s85, %s87
      %p91 = scmp.eq.s32.totalorder %s16, 0
      %p92 = por %p90, %p91
      %p93 = scmp.ne.s32.totalorder %s85, %s87
      %p94 = scmp.eq.s32.totalorder %s21, 1
      %p95 = por %p93, %p94
      %p96 = scmp.ne.s32.totalorder %s87, %s88
      %p97 = scmp.eq.s32.totalorder %s21, 0
      %p98 = por %p96, %p97
      %p99 = scmp.ne.s32.totalorder %s87, %s88
      %p100 = scmp.eq.s32.totalorder %s22, 1
      %p101 = por %p99, %p100
      %p103 = scmp.ne.s32.totalorder %s88, %s102
      %p104 = scmp.eq.s32.totalorder %s22, 0
      %p105 = por %p103, %p104
      %s106 = ssub.s32 %s23, %s35
      %s107 = ssub.s32 %s24, %s31
      %s108 = sor.u32 %s106, %s107
      %p109 = scmp.eq.s32.totalorder %s108, 0
      %s111 = sadd.s32 %s110, 1
      %s112 = scalar_select %p109, %s110, %s111
      %p115 = pneg %p109
      %p116 = scmp.eq.s32.totalorder %s16, 1
      %p117 = por %p115, %p116
      %p118 = scmp.ne.s32.totalorder %s110, %s113
      %p119 = scmp.eq.s32.totalorder %s16, 0
      %p120 = por %p118, %p119
      %p121 = scmp.ne.s32.totalorder %s110, %s113
      %p122 = scmp.eq.s32.totalorder %s21, 1
      %p123 = por %p121, %p122
      %p124 = scmp.ne.s32.totalorder %s113, %s114
      %p125 = scmp.eq.s32.totalorder %s21, 0
      %p126 = por %p124, %p125
      %p127 = scmp.ne.s32.totalorder %s113, %s114
      %p128 = scmp.eq.s32.totalorder %s22, 1
      %p129 = por %p127, %p128
      %p131 = scmp.ne.s32.totalorder %s114, %s130
      %p132 = scmp.eq.s32.totalorder %s22, 0
      %p133 = por %p131, %p132
      %p134 = scmp.le.s32.totalorder 1, %s16
      %p135 = scmp.lt.s32.totalorder %s16, 3
      %p136 = pnand %p134, %p135
      %p137 = pneg %p136
      // Predicated region
      $region9: #{attention_forward.7} parent=5 // pred_check
        _
      $region10: #{attention_forward.7} parent=5 // pred_check_branch
        %139 = sbr.rel (%p136) target = $region12
      $region11: #{attention_forward.7} parent=5 // pred_region
        %s140 = ssub.s32 %s16, 1
        // Predicated region
        $region13: #{attention_forward.7} parent=11 // pred_check
          %p141 = pneg %p77
        $region14: #{attention_forward.7} parent=11 // pred_check_branch
          %143 = sbr.rel (%p141) target = $region16
        $region15: #{attention_forward.7} parent=11 // pred_region
          %s145 = ssub.s32 64, 64
          %146 = vsyncadd [#allocation6], %s145
          %s148 = sshll.u32 [#allocation5], 4
          %s149 = int_to_ptr.vmem [resolvable:$true] %s148
          %151 = dma.hbm_to_vmem [thread:$0]  %s1, 64, %s149, [#allocation6]
        $region16: #{attention_forward.7} parent=11 // pred_fallthru
          _
        // Predicated region
        $region17: #{attention_forward.7} parent=11 // pred_check
          %p152 = pneg %p98
        $region18: #{attention_forward.7} parent=11 // pred_check_branch
          %154 = sbr.rel (%p152) target = $region20
        $region19: #{attention_forward.7} parent=11 // pred_region
          %s156 = ssub.s32 128, 128
          %157 = vsyncadd [#allocation6], %s156
          %s159 = sshll.u32 [#allocation7], 4
          %s160 = int_to_ptr.vmem [resolvable:$true] %s159
          %162 = dma.hbm_to_vmem [thread:$0]  %s2, 128, %s160, [#allocation6]
        $region20: #{attention_forward.7} parent=11 // pred_fallthru
          _
      $region12: #{attention_forward.7} parent=5 // pred_fallthru
        _
      %p163 = scmp.lt.s32.totalorder %s16, 2
      // Predicated region
      $region21: #{attention_forward.7} parent=5 // pred_check
        %p164 = pneg %p163
      $region22: #{attention_forward.7} parent=5 // pred_check_branch
        %166 = sbr.rel (%p164) target = $region24
      $region23: #{attention_forward.7} parent=5 // pred_region
        // Predicated region
        $region25: #{attention_forward.7} parent=23 // pred_check
          %p167 = pneg %p50
        $region26: #{attention_forward.7} parent=23 // pred_check_branch
          %169 = sbr.rel (%p167) target = $region28
        $region27: #{attention_forward.7} parent=23 // pred_region
          %s170 = sand.u32 %s40, 1
          %s171 = scalar_lea.sflag [#allocation3], %s170
          %s172 = sand.u32 %s40, 1
          %s173 = smul.addr %s172, 256
          %s174 = scalar_lea.vmem [#allocation2], %s173
          %s175 = smul.u32 4, %s24
          %s177 = ssub.s32 4096, 4096
          %178 = vsyncadd %s171, %s177
          %s179 = smul.addr %s23, 64
          %s180 = sadd.s32 %s175, %s179
          %s181 = smul.addr %s180, 64
          %s182 = scalar_lea.hbm %s0, %s181
          %s183 = sshll.u32 %s174, 4
          %s184 = int_to_ptr.vmem [resolvable:$true] %s183
          %189 = dma.hbm_to_vmem [thread:$0]  %s182, 4096, %s184, %s171, 256, 256, 16
        $region28: #{attention_forward.7} parent=23 // pred_fallthru
          _
      $region24: #{attention_forward.7} parent=5 // pred_fallthru
        _
      %p190 = scmp.le.s32.totalorder 1, %s16
      %p191 = scmp.lt.s32.totalorder %s16, 3
      %p192 = pnand %p190, %p191
      %p193 = pneg %p192
      // Predicated region
      $region29: #{attention_forward.7} parent=5 // pred_check
        _
      $region30: #{attention_forward.7} parent=5 // pred_check_branch
        %195 = sbr.rel (%p192) target = $region32
      $region31: #{attention_forward.7} parent=5 // pred_region
        %s196 = ssub.s32 %s16, 1
        %s197 = sand.u32 %s43, 1
        %s198 = scalar_lea.sflag [#allocation3], %s197
        %s199 = sand.u32 %s43, 1
        %s200 = smul.addr %s199, 256
        %s201 = scalar_lea.vmem [#allocation2], %s200
        // Predicated region
        $region33: #{attention_forward.7} parent=31 // pred_check
          %p202 = pneg %p56
        $region34: #{attention_forward.7} parent=31 // pred_check_branch
          %204 = sbr.rel (%p202) target = $region36
        $region35: #{attention_forward.7} parent=31 // pred_region
          %205 = dma.done %s198, 4096
        $region36: #{attention_forward.7} parent=31 // pred_fallthru
          _
        // Predicated region
        $region37: #{attention_forward.7} parent=31 // pred_check
          %p206 = pneg %p77
        $region38: #{attention_forward.7} parent=31 // pred_check_branch
          %208 = sbr.rel (%p206) target = $region40
        $region39: #{attention_forward.7} parent=31 // pred_region
          %209 = dma.done [#allocation6], 64
        $region40: #{attention_forward.7} parent=31 // pred_fallthru
          _
        // Predicated region
        $region41: #{attention_forward.7} parent=31 // pred_check
          %p210 = pneg %p98
        $region42: #{attention_forward.7} parent=31 // pred_check_branch
          %212 = sbr.rel (%p210) target = $region44
        $region43: #{attention_forward.7} parent=31 // pred_region
          %213 = dma.done [#allocation6], 128
        $region44: #{attention_forward.7} parent=31 // pred_fallthru
          _
        %s214 = sand.u32 %s43, 1
        %s215 = scalar_lea.sflag [#allocation3], %s214
        %s216 = sand.u32 %s43, 1
        %s217 = smul.addr %s216, 256
        %s218 = scalar_lea.vmem [#allocation2], %s217
        %p219 = pneg %p56
        %p220 = pneg %p53
        %p221 = pneg %p77
        %p222 = pneg %p74
        %p223 = pneg %p98
        %p224 = pneg %p95
        %p225 = pneg %p126
        %p226 = pneg %p123
        %s227 = sand.u32 %s113, 1
        %s228 = scalar_lea.sflag [#allocation4], %s227
        %s229 = sand.u32 %s113, 1
        %s230 = smul.addr %s229, 32
        %s231 = scalar_lea.vmem [#allocation8], %s230
        %s232 = smul.u32 4, %s26
        %s233 = smul.u32 4, %s26
        %v235 = vld [vmem:[#allocation5] sm:$0xf]
        %v236 = vld [vmem:[%s201] sm:$0xff]
        %v237 = vld [vmem:[%s201 + $0x8] sm:$0xff]
        %v238 = vld [vmem:[%s201 + $0x10] sm:$0xff]
        %v239 = vld [vmem:[%s201 + $0x18] sm:$0xff]
        %v240 = vld [vmem:[%s201 + $0x20] sm:$0xff]
        %v241 = vld [vmem:[%s201 + $0x28] sm:$0xff]
        %v242 = vld [vmem:[%s201 + $0x30] sm:$0xff]
        %v243 = vld [vmem:[%s201 + $0x38] sm:$0xff]
        %v244 = vld [vmem:[%s201 + $0x40] sm:$0xff]
        %v245 = vld [vmem:[%s201 + $0x48] sm:$0xff]
        %v246 = vld [vmem:[%s201 + $0x50] sm:$0xff]
        %v247 = vld [vmem:[%s201 + $0x58] sm:$0xff]
        %v248 = vld [vmem:[%s201 + $0x60] sm:$0xff]
        %v249 = vld [vmem:[%s201 + $0x68] sm:$0xff]
        %v250 = vld [vmem:[%s201 + $0x70] sm:$0xff]
        %v251 = vld [vmem:[%s201 + $0x78] sm:$0xff]
        %v252 = vld [vmem:[%s201 + $0x80] sm:$0xff]
        %v253 = vld [vmem:[%s201 + $0x88] sm:$0xff]
        %v254 = vld [vmem:[%s201 + $0x90] sm:$0xff]
        %v255 = vld [vmem:[%s201 + $0x98] sm:$0xff]
        %v256 = vld [vmem:[%s201 + $0xa0] sm:$0xff]
        %v257 = vld [vmem:[%s201 + $0xa8] sm:$0xff]
        %v258 = vld [vmem:[%s201 + $0xb0] sm:$0xff]
        %v259 = vld [vmem:[%s201 + $0xb8] sm:$0xff]
        %v260 = vld [vmem:[%s201 + $0xc0] sm:$0xff]
        %v261 = vld [vmem:[%s201 + $0xc8] sm:$0xff]
        %v262 = vld [vmem:[%s201 + $0xd0] sm:$0xff]
        %v263 = vld [vmem:[%s201 + $0xd8] sm:$0xff]
        %v264 = vld [vmem:[%s201 + $0xe0] sm:$0xff]
        %v265 = vld [vmem:[%s201 + $0xe8] sm:$0xff]
        %v266 = vld [vmem:[%s201 + $0xf0] sm:$0xff]
        %v267 = vld [vmem:[%s201 + $0xf8] sm:$0xff]
        %v268 = vld [vmem:[#allocation7] sm:$0xff]
        %270 = vset.pattern.permute.xlu0 0
        %271 = vperm.xlu0 %270, %v268
        %v272 = vpop.permute.xlu0 %271
        %v306 = vunpack.c.l.b16 %v236
        %v307 = vunpack.c.h.b16 %v236
        %v308 = vunpack.c.l.b16 %v237
        %v309 = vunpack.c.h.b16 %v237
        %v310 = vunpack.c.l.b16 %v238
        %v311 = vunpack.c.h.b16 %v238
        %v312 = vunpack.c.l.b16 %v239
        %v313 = vunpack.c.h.b16 %v239
        %v314 = vunpack.c.l.b16 %v240
        %v315 = vunpack.c.h.b16 %v240
        %v316 = vunpack.c.l.b16 %v241
        %v317 = vunpack.c.h.b16 %v241
        %v318 = vunpack.c.l.b16 %v242
        %v319 = vunpack.c.h.b16 %v242
        %v320 = vunpack.c.l.b16 %v243
        %v321 = vunpack.c.h.b16 %v243
        %v322 = vunpack.c.l.b16 %v244
        %v323 = vunpack.c.h.b16 %v244
        %v324 = vunpack.c.l.b16 %v245
        %v325 = vunpack.c.h.b16 %v245
        %v326 = vunpack.c.l.b16 %v246
        %v327 = vunpack.c.h.b16 %v246
        %v328 = vunpack.c.l.b16 %v247
        %v329 = vunpack.c.h.b16 %v247
        %v330 = vunpack.c.l.b16 %v248
        %v331 = vunpack.c.h.b16 %v248
        %v332 = vunpack.c.l.b16 %v249
        %v333 = vunpack.c.h.b16 %v249
        %v334 = vunpack.c.l.b16 %v250
        %v335 = vunpack.c.h.b16 %v250
        %v336 = vunpack.c.l.b16 %v251
        %v337 = vunpack.c.h.b16 %v251
        %v338 = vunpack.c.l.b16 %v252
        %v339 = vunpack.c.h.b16 %v252
        %v340 = vunpack.c.l.b16 %v253
        %v341 = vunpack.c.h.b16 %v253
        %v342 = vunpack.c.l.b16 %v254
        %v343 = vunpack.c.h.b16 %v254
        %v344 = vunpack.c.l.b16 %v255
        %v345 = vunpack.c.h.b16 %v255
        %v346 = vunpack.c.l.b16 %v256
        %v347 = vunpack.c.h.b16 %v256
        %v348 = vunpack.c.l.b16 %v257
        %v349 = vunpack.c.h.b16 %v257
        %v350 = vunpack.c.l.b16 %v258
        %v351 = vunpack.c.h.b16 %v258
        %v352 = vunpack.c.l.b16 %v259
        %v353 = vunpack.c.h.b16 %v259
        %v354 = vunpack.c.l.b16 %v260
        %v355 = vunpack.c.h.b16 %v260
        %v356 = vunpack.c.l.b16 %v261
        %v357 = vunpack.c.h.b16 %v261
        %v358 = vunpack.c.l.b16 %v262
        %v359 = vunpack.c.h.b16 %v262
        %v360 = vunpack.c.l.b16 %v263
        %v361 = vunpack.c.h.b16 %v263
        %v362 = vunpack.c.l.b16 %v264
        %v363 = vunpack.c.h.b16 %v264
        %v364 = vunpack.c.l.b16 %v265
        %v365 = vunpack.c.h.b16 %v265
        %v366 = vunpack.c.l.b16 %v266
        %v367 = vunpack.c.h.b16 %v266
        %v368 = vunpack.c.l.b16 %v267
        %v369 = vunpack.c.h.b16 %v267
        %v370 = vpack.c.b16 %v310, %v306
        %v371 = vpack.c.b16 %v311, %v307
        %v372 = vpack.c.b16 %v312, %v308
        %v373 = vpack.c.b16 %v313, %v309
        %v374 = vpack.c.b16 %v318, %v314
        %v375 = vpack.c.b16 %v319, %v315
        %v376 = vpack.c.b16 %v320, %v316
        %v377 = vpack.c.b16 %v321, %v317
        %v378 = vpack.c.b16 %v326, %v322
        %v379 = vpack.c.b16 %v327, %v323
        %v380 = vpack.c.b16 %v328, %v324
        %v381 = vpack.c.b16 %v329, %v325
        %v382 = vpack.c.b16 %v334, %v330
        %v383 = vpack.c.b16 %v335, %v331
        %v384 = vpack.c.b16 %v336, %v332
        %v385 = vpack.c.b16 %v337, %v333
        %v386 = vpack.c.b16 %v342, %v338
        %v387 = vpack.c.b16 %v343, %v339
        %v388 = vpack.c.b16 %v344, %v340
        %v389 = vpack.c.b16 %v345, %v341
        %v390 = vpack.c.b16 %v350, %v346
        %v391 = vpack.c.b16 %v351, %v347
        %v392 = vpack.c.b16 %v352, %v348
        %v393 = vpack.c.b16 %v353, %v349
        %v394 = vpack.c.b16 %v358, %v354
        %v395 = vpack.c.b16 %v359, %v355
        %v396 = vpack.c.b16 %v360, %v356
        %v397 = vpack.c.b16 %v361, %v357
        %v398 = vpack.c.b16 %v366, %v362
        %v399 = vpack.c.b16 %v367, %v363
        %v400 = vpack.c.b16 %v368, %v364
        %v401 = vpack.c.b16 %v369, %v365
        %434 = vmatprep.subr.bf16.mxu0 %v371
        %435 = vmatpush1.bf16.msra.mxu0 %v370
        %436 = vmatprep.subr.bf16.mxu0 %v375
        %437 = vmatpush1.bf16.msra.mxu0 %v374
        %438 = vmatprep.subr.bf16.mxu0 %v379
        %439 = vmatpush1.bf16.msra.mxu0 %v378
        %440 = vmatprep.subr.bf16.mxu0 %v383
        %441 = vmatpush1.bf16.msra.mxu0 %v382
        %442 = vmatprep.subr.bf16.mxu0 %v387
        %443 = vmatpush1.bf16.msra.mxu0 %v386
        %444 = vmatprep.subr.bf16.mxu0 %v391
        %445 = vmatpush1.bf16.msra.mxu0 %v390
        %446 = vmatprep.subr.bf16.mxu0 %v395
        %447 = vmatpush1.bf16.msra.mxu0 %v394
        %448 = vmatprep.subr.bf16.mxu0 %v399
        %449 = vmatpush1.bf16.msra.mxu0 %v398
        %450 = vmatprep.subr.bf16.mxu0 0
        %451 = vmatpush1.bf16.msra.mxu0 0
        %452 = vmatprep.subr.bf16.mxu0 0
        %453 = vmatpush1.bf16.msra.mxu0 0
        %454 = vmatprep.subr.bf16.mxu0 0
        %455 = vmatpush1.bf16.msra.mxu0 0
        %456 = vmatprep.subr.bf16.mxu0 0
        %457 = vmatpush1.bf16.msra.mxu0 0
        %458 = vmatprep.subr.bf16.mxu0 0
        %459 = vmatpush1.bf16.msra.mxu0 0
        %460 = vmatprep.subr.bf16.mxu0 0
        %461 = vmatpush1.bf16.msra.mxu0 0
        %462 = vmatprep.subr.bf16.mxu0 0
        %463 = vmatpush1.bf16.msra.mxu0 0
        %464 = vmatprep.subr.bf16.mxu0 0
        %465 = vmatpush1.bf16.msra.mxu0 0
        %466 = vmatprep.mubr.bf16.mxu0 0
        %467 = vmatmul.mubr.bf16.gmra.mrb[0].mxu0 %v235
        %v468 = vpop.f32.mrb[0].mxu0
        %v469 = vadd.f32 %v272, %v468
        %v470 = vpop.f32.mrb[0].mxu0
        %v471 = vadd.f32 %v272, %v470
        %v472 = vpop.f32.mrb[0].mxu0
        %v473 = vpop.f32.mrb[0].mxu0
        %474 = vdwg.mxu0
        %475 = vmatprep.subr.bf16.mxu0 %v373
        %476 = vmatpush1.bf16.msra.mxu0 %v372
        %477 = vmatprep.subr.bf16.mxu0 %v377
        %478 = vmatpush1.bf16.msra.mxu0 %v376
        %479 = vmatprep.subr.bf16.mxu0 %v381
        %480 = vmatpush1.bf16.msra.mxu0 %v380
        %481 = vmatprep.subr.bf16.mxu0 %v385
        %482 = vmatpush1.bf16.msra.mxu0 %v384
        %483 = vmatprep.subr.bf16.mxu0 %v389
        %484 = vmatpush1.bf16.msra.mxu0 %v388
        %485 = vmatprep.subr.bf16.mxu0 %v393
        %486 = vmatpush1.bf16.msra.mxu0 %v392
        %487 = vmatprep.subr.bf16.mxu0 %v397
        %488 = vmatpush1.bf16.msra.mxu0 %v396
        %489 = vmatprep.subr.bf16.mxu0 %v401
        %490 = vmatpush1.bf16.msra.mxu0 %v400
        %491 = vmatprep.subr.bf16.mxu0 0
        %492 = vmatpush1.bf16.msra.mxu0 0
        %493 = vmatprep.subr.bf16.mxu0 0
        %494 = vmatpush1.bf16.msra.mxu0 0
        %495 = vmatprep.subr.bf16.mxu0 0
        %496 = vmatpush1.bf16.msra.mxu0 0
        %497 = vmatprep.subr.bf16.mxu0 0
        %498 = vmatpush1.bf16.msra.mxu0 0
        %499 = vmatprep.subr.bf16.mxu0 0
        %500 = vmatpush1.bf16.msra.mxu0 0
        %501 = vmatprep.subr.bf16.mxu0 0
        %502 = vmatpush1.bf16.msra.mxu0 0
        %503 = vmatprep.subr.bf16.mxu0 0
        %504 = vmatpush1.bf16.msra.mxu0 0
        %505 = vmatprep.subr.bf16.mxu0 0
        %506 = vmatpush1.bf16.msra.mxu0 0
        %507 = vmatprep.mubr.bf16.mxu0 0
        %508 = vmatmul.mubr.bf16.gmra.mrb[0].mxu0 %v235
        %v509 = vpop.f32.mrb[0].mxu0
        %v510 = vadd.f32 %v272, %v509
        %v511 = vpop.f32.mrb[0].mxu0
        %v512 = vadd.f32 %v272, %v511
        %v513 = vpop.f32.mrb[0].mxu0
        %v514 = vpop.f32.mrb[0].mxu0
        %515 = vdwg.mxu0
        %516 = vst [vmem:[%s231] sm:$0xff] %v469
        %517 = vst [vmem:[%s231 + $0x8] sm:$0xff] %v471
        %518 = vst [vmem:[%s231 + $0x10] sm:$0xff] %v510
        %519 = vst [vmem:[%s231 + $0x18] sm:$0xff] %v512
        %s520 = sand.u32 %s113, 1
        %s521 = scalar_lea.sflag [#allocation4], %s520
        %s522 = sand.u32 %s113, 1
        %s523 = smul.addr %s522, 32
        %s524 = scalar_lea.vmem [#allocation8], %s523
        // Predicated region
        $region45: #{attention_forward.7} parent=31 // pred_check
          %p525 = pneg %p123
        $region46: #{attention_forward.7} parent=31 // pred_check_branch
          %527 = sbr.rel (%p525) target = $region48
        $region47: #{attention_forward.7} parent=31 // pred_region
          %s528 = smul.u32 4, %s26
          %s530 = ssub.s32 512, 512
          %531 = vsyncadd %s521, %s530
          %s532 = smul.addr %s25, 4
          %s533 = sadd.s32 %s528, %s532
          %s534 = smul.addr %s533, 128
          %s535 = scalar_lea.hbm %s3, %s534
          %s537 = sshll.u32 %s524, 4
          %s538 = int_to_ptr.vmem [resolvable:$true] %s537
          %540 = dma.vmem_to_hbm [thread:$0]  %s538, 512, %s535, %s521
        $region48: #{attention_forward.7} parent=31 // pred_fallthru
          _
      $region32: #{attention_forward.7} parent=5 // pred_fallthru
        _
      %p541 = scmp.le.s32.totalorder 2, %s16
      // Predicated region
      $region49: #{attention_forward.7} parent=5 // pred_check
        %p542 = pneg %p541
      $region50: #{attention_forward.7} parent=5 // pred_check_branch
        %544 = sbr.rel (%p542) target = $region52
      $region51: #{attention_forward.7} parent=5 // pred_region
        %s545 = ssub.s32 %s16, 2
        // Predicated region
        $region53: #{attention_forward.7} parent=51 // pred_check
          %p546 = pneg %p129
        $region54: #{attention_forward.7} parent=51 // pred_check_branch
          %548 = sbr.rel (%p546) target = $region56
        $region55: #{attention_forward.7} parent=51 // pred_region
          %s549 = sand.u32 %s114, 1
          %s550 = scalar_lea.sflag [#allocation4], %s549
          %s551 = sand.u32 %s114, 1
          %s552 = smul.addr %s551, 32
          %s553 = scalar_lea.vmem [#allocation8], %s552
          %554 = dma.done %s550, 512
        $region56: #{attention_forward.7} parent=51 // pred_fallthru
          _
      $region52: #{attention_forward.7} parent=5 // pred_fallthru
        _
    $region6: #{attention_forward.7} parent=1 // loop_footer
      %s20 = sadd.s32 1, %s16
    $region7: #{attention_forward.7} parent=1 // loop_footer_branch
      %15 = sbr.rel target = $region3
    $region8: #{attention_forward.7} parent=1 // loop_exit
      _
    %555 = vsyncpa [#allocation3], 1
    %s556 = scalar_lea.sflag [#allocation3], 1
    %557 = vsyncpa %s556, 1
    %558 = vsyncpa [#allocation6], 1
    %559 = vsyncpa [#allocation4], 1
    %s560 = scalar_lea.sflag [#allocation4], 1
    %561 = vsyncpa %s560, 1

// kernel: attention_forward.6
$region0: #{attention_forward.6}
  #allocation0 [shape = 'u32[]', space=smem, size = 0x4, offset = 0x4, fixed_abs, tag = 'smem constant byte address 0x4 - core index']
  #allocation1 [shape = 'u32[144,128]{1,0:T(1,128)}', space=vmem, size = 0x12000, scoped, tag = 'internal scratch']
  #allocation2 [shape = 'bf16[32,256]{1,0:T(16,128)(2,1)}', space=vmem, size = 0x4000, scoped, tag = 'scratch operand']
  #allocation3 [shape = 'f32[1,256]{1,0:T(1,128)}', space=vmem, size = 0x400, scoped, tag = 'scratch operand']
  #allocation4 [shape = 'f32[33,256]{1,0:T(8,128)}', space=vmem, size = 0xa000, scoped, tag = 'scratch operand']
  %s0 = inlined_call_operand.hbm [shape: bf16[8,32,512], index: 0, kind: input, shape index: {}]
  %s1 = inlined_call_operand.hbm [shape: bf16[8,512,32], index: 1, kind: input, shape index: {}]
  %s2 = inlined_call_operand.hbm [shape: bf16[8,33,512], index: 2, kind: input, shape index: {}]
  %s3 = inlined_call_operand.hbm [shape: f32[8,512], index: 3, kind: input, shape index: {}]
  %s4 = inlined_call_operand.hbm [shape: f32[8,512], index: 4, kind: input, shape index: {}]
  %s5 = inlined_call_operand.hbm [shape: bf16[8,32,512], index: 5, kind: output, shape index: {}]
  %s6 = sld [smem:[#allocation0]]
  $region81: #{attention_forward.6} parent=0
    _
  %s8 = ssub.s32 1, %s6
  %s9 = scalar_select 0, %s8, %s6
  $region1: #{attention_forward.6} parent=0
    #allocation5 [shape = 'u8[32768]{0}', space=vmem, size = 0x8000, scoped, tag = 'input window, operand 0']
    #allocation6 [shape = 's32[2]{0}', space=sflag, size = 0x8, scoped, tag = 'scoped memory for attention_forward.6']
    #allocation7 [shape = 's32[2]{0}', space=sflag, size = 0x8, scoped, tag = 'scoped memory for attention_forward.6']
    #allocation8 [shape = 'u8[131072]{0}', space=vmem, size = 0x20000, scoped, tag = 'input window, operand 1']
    #allocation9 [shape = 's32[2]{0}', space=sflag, size = 0x8, scoped, tag = 'scoped memory for attention_forward.6']
    #allocation10 [shape = 'u8[40960]{0}', space=vmem, size = 0xa000, scoped, tag = 'input window, operand 2']
    #allocation11 [shape = 'u8[16384]{0}', space=vmem, size = 0x4000, scoped, tag = 'input window, operand 3']
    #allocation12 [shape = 's32[2]{0}', space=sflag, size = 0x8, scoped, tag = 'scoped memory for attention_forward.6']
    #allocation13 [shape = 'u8[16384]{0}', space=vmem, size = 0x4000, scoped, tag = 'input window, operand 4']
    #allocation14 [shape = 'u8[32768]{0}', space=vmem, size = 0x8000, scoped, tag = 'output window, operand 0']
    %10 = vsyncpa [#allocation6], 0
    %s11 = scalar_lea.sflag [#allocation6], 1
    %12 = vsyncpa %s11, 0
    %13 = vsyncpa [#allocation9], 0
    %s14 = scalar_lea.sflag [#allocation9], 1
    %15 = vsyncpa %s14, 0
    %16 = vsyncpa [#allocation12], 0
    %s17 = scalar_lea.sflag [#allocation12], 1
    %18 = vsyncpa %s17, 0
    %19 = vsyncpa [#allocation7], 0
    %s20 = scalar_lea.sflag [#allocation7], 1
    %21 = vsyncpa %s20, 0
    loop: start=0, step=1, limit=34
    $region2: #{attention_forward.6} parent=1 // loop_pre_header
      _
    $region3: #{attention_forward.6} parent=1 // loop_header
      %s23 = sphi 0, %s27
      %p24 = scmp.ge.s32.totalorder %s23, 34
      %s30 = sphi 0, %s49
      %s31 = sphi 0, %s45
      %s32 = sphi 0, %s41
      %s33 = sphi 0, %s30
      %s34 = sphi 0, %s31
      %s35 = sphi 0, %s32
      %s36 = sphi 0, %s33
      %s37 = sphi 0, %s34
      %s38 = sphi 0, %s35
      %s54 = sphi 0, %s56
      %s57 = sphi 0, %s54
      %s58 = sphi 0, %s57
      %s74 = sphi 0, %s58
      %s82 = sphi 0, %s84
      %s85 = sphi 0, %s82
      %s86 = sphi 0, %s85
      %s102 = sphi 0, %s86
      %s110 = sphi 0, %s112
      %s113 = sphi 0, %s110
      %s114 = sphi 0, %s113
      %s130 = sphi 0, %s114
      %s136 = sphi 0, %s138
      %s139 = sphi 0, %s136
      %s140 = sphi 0, %s139
      %s156 = sphi 0, %s140
      %s162 = sphi 0, %s164
      %s165 = sphi 0, %s162
      %s166 = sphi 0, %s165
      %s182 = sphi 0, %s166
      %s190 = sphi 0, %s192
      %s193 = sphi 0, %s190
      %s194 = sphi 0, %s193
      %s210 = sphi 0, %s194
    $region4: #{attention_forward.6} parent=1 // loop_header_branch
      %26 = sbr.rel (%p24) target = $region8
    $region5: #{attention_forward.6} parent=1 // loop_body
      %s28 = ssub.s32 %s23, 1
      %s29 = ssub.s32 %s23, 2
      %s39 = sadd.s32 1, %s32
      %p40 = scmp.ge.s32.totalorder %s39, 2
      %s41 = scalar_select %p40, 0, %s39
      %s42 = sadd.s32 1, %s31
      %s43 = scalar_select %p40, %s42, %s31
      %p44 = scmp.ge.s32.totalorder %s43, 2
      %s45 = scalar_select %p44, 0, %s43
      %s46 = sadd.s32 1, %s30
      %s47 = scalar_select %p44, %s46, %s30
      %p48 = scmp.ge.s32.totalorder %s47, 8
      %s49 = scalar_select %p48, 0, %s47
      %s50 = ssub.s32 %s30, %s49
      %s51 = ssub.s32 %s31, %s45
      %s52 = sor.u32 %s50, %s51
      %p53 = scmp.eq.s32.totalorder %s52, 0
      %s55 = sadd.s32 %s54, 1
      %s56 = scalar_select %p53, %s54, %s55
      %p59 = pneg %p53
      %p60 = scmp.eq.s32.totalorder %s23, 31
      %p61 = por %p59, %p60
      %p62 = scmp.ne.s32.totalorder %s54, %s57
      %p63 = scmp.eq.s32.totalorder %s23, 0
      %p64 = por %p62, %p63
      %p65 = scmp.ne.s32.totalorder %s54, %s57
      %p66 = scmp.eq.s32.totalorder %s28, 31
      %p67 = por %p65, %p66
      %p68 = scmp.ne.s32.totalorder %s57, %s58
      %p69 = scmp.eq.s32.totalorder %s28, 0
      %p70 = por %p68, %p69
      %p71 = scmp.ne.s32.totalorder %s57, %s58
      %p72 = scmp.eq.s32.totalorder %s29, 31
      %p73 = por %p71, %p72
      %p75 = scmp.ne.s32.totalorder %s58, %s74
      %p76 = scmp.eq.s32.totalorder %s29, 0
      %p77 = por %p75, %p76
      %s78 = ssub.s32 %s30, %s49
      %s79 = ssub.s32 %s32, %s41
      %s80 = sor.u32 %s78, %s79
      %p81 = scmp.eq.s32.totalorder %s80, 0
      %s83 = sadd.s32 %s82, 1
      %s84 = scalar_select %p81, %s82, %s83
      %p87 = pneg %p81
      %p88 = scmp.eq.s32.totalorder %s23, 31
      %p89 = por %p87, %p88
      %p90 = scmp.ne.s32.totalorder %s82, %s85
      %p91 = scmp.eq.s32.totalorder %s23, 0
      %p92 = por %p90, %p91
      %p93 = scmp.ne.s32.totalorder %s82, %s85
      %p94 = scmp.eq.s32.totalorder %s28, 31
      %p95 = por %p93, %p94
      %p96 = scmp.ne.s32.totalorder %s85, %s86
      %p97 = scmp.eq.s32.totalorder %s28, 0
      %p98 = por %p96, %p97
      %p99 = scmp.ne.s32.totalorder %s85, %s86
      %p100 = scmp.eq.s32.totalorder %s29, 31
      %p101 = por %p99, %p100
      %p103 = scmp.ne.s32.totalorder %s86, %s102
      %p104 = scmp.eq.s32.totalorder %s29, 0
      %p105 = por %p103, %p104
      %s106 = ssub.s32 %s30, %s49
      %s107 = ssub.s32 %s32, %s41
      %s108 = sor.u32 %s106, %s107
      %p109 = scmp.eq.s32.totalorder %s108, 0
      %s111 = sadd.s32 %s110, 1
      %s112 = scalar_select %p109, %s110, %s111
      %p115 = pneg %p109
      %p116 = scmp.eq.s32.totalorder %s23, 31
      %p117 = por %p115, %p116
      %p118 = scmp.ne.s32.totalorder %s110, %s113
      %p119 = scmp.eq.s32.totalorder %s23, 0
      %p120 = por %p118, %p119
      %p121 = scmp.ne.s32.totalorder %s110, %s113
      %p122 = scmp.eq.s32.totalorder %s28, 31
      %p123 = por %p121, %p122
      %p124 = scmp.ne.s32.totalorder %s113, %s114
      %p125 = scmp.eq.s32.totalorder %s28, 0
      %p126 = por %p124, %p125
      %p127 = scmp.ne.s32.totalorder %s113, %s114
      %p128 = scmp.eq.s32.totalorder %s29, 31
      %p129 = por %p127, %p128
      %p131 = scmp.ne.s32.totalorder %s114, %s130
      %p132 = scmp.eq.s32.totalorder %s29, 0
      %p133 = por %p131, %p132
      %s134 = ssub.s32 %s31, %s45
      %p135 = scmp.eq.s32.totalorder %s134, 0
      %s137 = sadd.s32 %s136, 1
      %s138 = scalar_select %p135, %s136, %s137
      %p141 = pneg %p135
      %p142 = scmp.eq.s32.totalorder %s23, 31
      %p143 = por %p141, %p142
      %p144 = scmp.ne.s32.totalorder %s136, %s139
      %p145 = scmp.eq.s32.totalorder %s23, 0
      %p146 = por %p144, %p145
      %p147 = scmp.ne.s32.totalorder %s136, %s139
      %p148 = scmp.eq.s32.totalorder %s28, 31
      %p149 = por %p147, %p148
      %p150 = scmp.ne.s32.totalorder %s139, %s140
      %p151 = scmp.eq.s32.totalorder %s28, 0
      %p152 = por %p150, %p151
      %p153 = scmp.ne.s32.totalorder %s139, %s140
      %p154 = scmp.eq.s32.totalorder %s29, 31
      %p155 = por %p153, %p154
      %p157 = scmp.ne.s32.totalorder %s140, %s156
      %p158 = scmp.eq.s32.totalorder %s29, 0
      %p159 = por %p157, %p158
      %s160 = ssub.s32 %s31, %s45
      %p161 = scmp.eq.s32.totalorder %s160, 0
      %s163 = sadd.s32 %s162, 1
      %s164 = scalar_select %p161, %s162, %s163
      %p167 = pneg %p161
      %p168 = scmp.eq.s32.totalorder %s23, 31
      %p169 = por %p167, %p168
      %p170 = scmp.ne.s32.totalorder %s162, %s165
      %p171 = scmp.eq.s32.totalorder %s23, 0
      %p172 = por %p170, %p171
      %p173 = scmp.ne.s32.totalorder %s162, %s165
      %p174 = scmp.eq.s32.totalorder %s28, 31
      %p175 = por %p173, %p174
      %p176 = scmp.ne.s32.totalorder %s165, %s166
      %p177 = scmp.eq.s32.totalorder %s28, 0
      %p178 = por %p176, %p177
      %p179 = scmp.ne.s32.totalorder %s165, %s166
      %p180 = scmp.eq.s32.totalorder %s29, 31
      %p181 = por %p179, %p180
      %p183 = scmp.ne.s32.totalorder %s166, %s182
      %p184 = scmp.eq.s32.totalorder %s29, 0
      %p185 = por %p183, %p184
      %s186 = ssub.s32 %s30, %s49
      %s187 = ssub.s32 %s31, %s45
      %s188 = sor.u32 %s186, %s187
      %p189 = scmp.eq.s32.totalorder %s188, 0
      %s191 = sadd.s32 %s190, 1
      %s192 = scalar_select %p189, %s190, %s191
      %p195 = pneg %p189
      %p196 = scmp.eq.s32.totalorder %s23, 31
      %p197 = por %p195, %p196
      %p198 = scmp.ne.s32.totalorder %s190, %s193
      %p199 = scmp.eq.s32.totalorder %s23, 0
      %p200 = por %p198, %p199
      %p201 = scmp.ne.s32.totalorder %s190, %s193
      %p202 = scmp.eq.s32.totalorder %s28, 31
      %p203 = por %p201, %p202
      %p204 = scmp.ne.s32.totalorder %s193, %s194
      %p205 = scmp.eq.s32.totalorder %s28, 0
      %p206 = por %p204, %p205
      %p207 = scmp.ne.s32.totalorder %s193, %s194
      %p208 = scmp.eq.s32.totalorder %s29, 31
      %p209 = por %p207, %p208
      %p211 = scmp.ne.s32.totalorder %s194, %s210
      %p212 = scmp.eq.s32.totalorder %s29, 0
      %p213 = por %p211, %p212
      %p214 = scmp.le.s32.totalorder 1, %s23
      %p215 = scmp.lt.s32.totalorder %s23, 33
      %p216 = pnand %p214, %p215
      %p217 = pneg %p216
      // Predicated region
      $region9: #{attention_forward.6} parent=5 // pred_check
        _
      $region10: #{attention_forward.6} parent=5 // pred_check_branch
        %219 = sbr.rel (%p216) target = $region12
      $region11: #{attention_forward.6} parent=5 // pred_region
        %s220 = ssub.s32 %s23, 1
      $region12: #{attention_forward.6} parent=5 // pred_fallthru
        _
      %p221 = scmp.lt.s32.totalorder %s23, 32
      // Predicated region
      $region13: #{attention_forward.6} parent=5 // pred_check
        %p222 = pneg %p221
      $region14: #{attention_forward.6} parent=5 // pred_check_branch
        %224 = sbr.rel (%p222) target = $region16
      $region15: #{attention_forward.6} parent=5 // pred_region
        // Predicated region
        $region17: #{attention_forward.6} parent=15 // pred_check
          %p225 = pneg %p64
        $region18: #{attention_forward.6} parent=15 // pred_check_branch
          %227 = sbr.rel (%p225) target = $region20
        $region19: #{attention_forward.6} parent=15 // pred_region
          %s228 = sand.u32 %s54, 1
          %s229 = scalar_lea.sflag [#allocation6], %s228
          %s230 = sand.u32 %s54, 1
          %s231 = smul.addr %s230, 32
          %s232 = scalar_lea.vmem [#allocation5], %s231
          %s233 = smul.u32 2, %s31
          %s235 = ssub.s32 512, 512
          %236 = vsyncadd %s229, %s235
          %s237 = smul.addr %s30, 16
          %s238 = sadd.s32 %s233, %s237
          %s239 = smul.addr %s238, 64
          %s240 = scalar_lea.hbm %s0, %s239
          %s241 = sshll.u32 %s232, 4
          %s242 = int_to_ptr.vmem [resolvable:$true] %s241
          %247 = dma.hbm_to_vmem [thread:$0]  %s240, 512, %s242, %s229, 256, 128, 8
        $region20: #{attention_forward.6} parent=15 // pred_fallthru
          _
        // Predicated region
        $region21: #{attention_forward.6} parent=15 // pred_check
          %p248 = pneg %p92
        $region22: #{attention_forward.6} parent=15 // pred_check_branch
          %250 = sbr.rel (%p248) target = $region24
        $region23: #{attention_forward.6} parent=15 // pred_region
          %s251 = sand.u32 %s23, 1
          %s252 = scalar_lea.sflag [#allocation9], %s251
          %s253 = sand.u32 %s82, 1
          %s254 = smul.addr %s253, 128
          %s255 = scalar_lea.vmem [#allocation8], %s254
          %s256 = smul.u32 32, %s32
          %s258 = ssub.s32 2048, 2048
          %259 = vsyncadd %s252, %s258
          %s260 = smul.addr %s30, 64
          %s261 = sadd.s32 %s256, %s260
          %s262 = smul.addr %s261, 64
          %s263 = scalar_lea.hbm %s1, %s262
          %s264 = sshll.u32 %s255, 4
          %s265 = int_to_ptr.vmem [resolvable:$true] %s264
          %270 = dma.hbm_to_vmem [thread:$0]  %s263, 2048, %s265, %s252, 64, 64, 4
        $region24: #{attention_forward.6} parent=15 // pred_fallthru
          _
        // Predicated region
        $region25: #{attention_forward.6} parent=15 // pred_check
          %p271 = pneg %p120
        $region26: #{attention_forward.6} parent=15 // pred_check_branch
          %273 = sbr.rel (%p271) target = $region28
        $region27: #{attention_forward.6} parent=15 // pred_region
          %s274 = sand.u32 %s23, 1
          %s275 = scalar_lea.sflag [#allocation9], %s274
          %s276 = sand.u32 %s110, 1
          %s277 = smul.addr %s276, 40
          %s278 = scalar_lea.vmem [#allocation10], %s277
          %s279 = smul.u32 2, %s32
          %s281 = ssub.s32 640, 640
          %282 = vsyncadd %s275, %s281
          %s283 = smul.addr %s30, 20
          %s284 = sadd.s32 %s279, %s283
          %s285 = smul.addr %s284, 64
          %s286 = scalar_lea.hbm %s2, %s285
          %s287 = sshll.u32 %s278, 4
          %s288 = int_to_ptr.vmem [resolvable:$true] %s287
          %293 = dma.hbm_to_vmem [thread:$0]  %s286, 640, %s288, %s275, 256, 128, 8
        $region28: #{attention_forward.6} parent=15 // pred_fallthru
          _
        // Predicated region
        $region29: #{attention_forward.6} parent=15 // pred_check
          %p294 = pneg %p146
        $region30: #{attention_forward.6} parent=15 // pred_check_branch
          %296 = sbr.rel (%p294) target = $region32
        $region31: #{attention_forward.6} parent=15 // pred_region
          %s297 = sand.u32 %s23, 1
          %s298 = scalar_lea.sflag [#allocation12], %s297
          %s299 = sand.u32 %s136, 1
          %s300 = smul.addr %s299, 16
          %s301 = scalar_lea.vmem [#allocation11], %s300
          %s302 = smul.u32 2, %s31
          %s304 = ssub.s32 256, 256
          %305 = vsyncadd %s298, %s304
          %s306 = smul.addr %s302, 128
          %s307 = scalar_lea.hbm %s3, %s306
          %s309 = sshll.u32 %s301, 4
          %s310 = int_to_ptr.vmem [resolvable:$true] %s309
          %312 = dma.hbm_to_vmem [thread:$0]  %s307, 256, %s310, %s298
        $region32: #{attention_forward.6} parent=15 // pred_fallthru
          _
        // Predicated region
        $region33: #{attention_forward.6} parent=15 // pred_check
          %p313 = pneg %p172
        $region34: #{attention_forward.6} parent=15 // pred_check_branch
          %315 = sbr.rel (%p313) target = $region36
        $region35: #{attention_forward.6} parent=15 // pred_region
          %s316 = sand.u32 %s23, 1
          %s317 = scalar_lea.sflag [#allocation12], %s316
          %s318 = sand.u32 %s162, 1
          %s319 = smul.addr %s318, 16
          %s320 = scalar_lea.vmem [#allocation13], %s319
          %s321 = smul.u32 2, %s31
          %s323 = ssub.s32 256, 256
          %324 = vsyncadd %s317, %s323
          %s325 = smul.addr %s321, 128
          %s326 = scalar_lea.hbm %s4, %s325
          %s328 = sshll.u32 %s320, 4
          %s329 = int_to_ptr.vmem [resolvable:$true] %s328
          %331 = dma.hbm_to_vmem [thread:$0]  %s326, 256, %s329, %s317
        $region36: #{attention_forward.6} parent=15 // pred_fallthru
          _
      $region16: #{attention_forward.6} parent=5 // pred_fallthru
        _
      %p332 = scmp.le.s32.totalorder 1, %s23
      %p333 = scmp.lt.s32.totalorder %s23, 33
      %p334 = pnand %p332, %p333
      %p335 = pneg %p334
      // Predicated region
      $region37: #{attention_forward.6} parent=5 // pred_check
        _
      $region38: #{attention_forward.6} parent=5 // pred_check_branch
        %337 = sbr.rel (%p334) target = $region40
      $region39: #{attention_forward.6} parent=5 // pred_region
        %s338 = ssub.s32 %s23, 1
        %s339 = sand.u32 %s57, 1
        %s340 = scalar_lea.sflag [#allocation6], %s339
        %s341 = sand.u32 %s57, 1
        %s342 = smul.addr %s341, 32
        %s343 = scalar_lea.vmem [#allocation5], %s342
        // Predicated region
        $region41: #{attention_forward.6} parent=39 // pred_check
          %p344 = pneg %p70
        $region42: #{attention_forward.6} parent=39 // pred_check_branch
          %346 = sbr.rel (%p344) target = $region44
        $region43: #{attention_forward.6} parent=39 // pred_region
          %347 = dma.done %s340, 512
        $region44: #{attention_forward.6} parent=39 // pred_fallthru
          _
        %s348 = sand.u32 %s28, 1
        %s349 = scalar_lea.sflag [#allocation9], %s348
        %s350 = sand.u32 %s85, 1
        %s351 = smul.addr %s350, 128
        %s352 = scalar_lea.vmem [#allocation8], %s351
        // Predicated region
        $region45: #{attention_forward.6} parent=39 // pred_check
          %p353 = pneg %p98
        $region46: #{attention_forward.6} parent=39 // pred_check_branch
          %355 = sbr.rel (%p353) target = $region48
        $region47: #{attention_forward.6} parent=39 // pred_region
          %356 = dma.done %s349, 2048
        $region48: #{attention_forward.6} parent=39 // pred_fallthru
          _
        %s357 = sand.u32 %s28, 1
        %s358 = scalar_lea.sflag [#allocation9], %s357
        %s359 = sand.u32 %s113, 1
        %s360 = smul.addr %s359, 40
        %s361 = scalar_lea.vmem [#allocation10], %s360
        // Predicated region
        $region49: #{attention_forward.6} parent=39 // pred_check
          %p362 = pneg %p126
        $region50: #{attention_forward.6} parent=39 // pred_check_branch
          %364 = sbr.rel (%p362) target = $region52
        $region51: #{attention_forward.6} parent=39 // pred_region
          %365 = dma.done %s358, 640
        $region52: #{attention_forward.6} parent=39 // pred_fallthru
          _
        %s366 = sand.u32 %s28, 1
        %s367 = scalar_lea.sflag [#allocation12], %s366
        %s368 = sand.u32 %s139, 1
        %s369 = smul.addr %s368, 16
        %s370 = scalar_lea.vmem [#allocation11], %s369
        // Predicated region
        $region53: #{attention_forward.6} parent=39 // pred_check
          %p371 = pneg %p152
        $region54: #{attention_forward.6} parent=39 // pred_check_branch
          %373 = sbr.rel (%p371) target = $region56
        $region55: #{attention_forward.6} parent=39 // pred_region
          %374 = dma.done %s367, 256
        $region56: #{attention_forward.6} parent=39 // pred_fallthru
          _
        %s375 = sand.u32 %s28, 1
        %s376 = scalar_lea.sflag [#allocation12], %s375
        %s377 = sand.u32 %s165, 1
        %s378 = smul.addr %s377, 16
        %s379 = scalar_lea.vmem [#allocation13], %s378
        // Predicated region
        $region57: #{attention_forward.6} parent=39 // pred_check
          %p380 = pneg %p178
        $region58: #{attention_forward.6} parent=39 // pred_check_branch
          %382 = sbr.rel (%p380) target = $region60
        $region59: #{attention_forward.6} parent=39 // pred_region
          %383 = dma.done %s376, 256
        $region60: #{attention_forward.6} parent=39 // pred_fallthru
          _
        %s384 = sand.u32 %s57, 1
        %s385 = scalar_lea.sflag [#allocation6], %s384
        %s386 = sand.u32 %s57, 1
        %s387 = smul.addr %s386, 32
        %s388 = scalar_lea.vmem [#allocation5], %s387
        %p389 = pneg %p70
        %p390 = pneg %p67
        %s391 = sand.u32 %s28, 1
        %s392 = scalar_lea.sflag [#allocation9], %s391
        %s393 = sand.u32 %s85, 1
        %s394 = smul.addr %s393, 128
        %s395 = scalar_lea.vmem [#allocation8], %s394
        %p396 = pneg %p98
        %p397 = pneg %p95
        %s398 = sand.u32 %s28, 1
        %s399 = scalar_lea.sflag [#allocation9], %s398
        %s400 = sand.u32 %s113, 1
        %s401 = smul.addr %s400, 40
        %s402 = scalar_lea.vmem [#allocation10], %s401
        %p403 = pneg %p126
        %p404 = pneg %p123
        %s405 = sand.u32 %s28, 1
        %s406 = scalar_lea.sflag [#allocation12], %s405
        %s407 = sand.u32 %s139, 1
        %s408 = smul.addr %s407, 16
        %s409 = scalar_lea.vmem [#allocation11], %s408
        %p410 = pneg %p152
        %p411 = pneg %p149
        %s412 = sand.u32 %s28, 1
        %s413 = scalar_lea.sflag [#allocation12], %s412
        %s414 = sand.u32 %s165, 1
        %s415 = smul.addr %s414, 16
        %s416 = scalar_lea.vmem [#allocation13], %s415
        %p417 = pneg %p178
        %p418 = pneg %p175
        %p419 = pneg %p206
        %p420 = pneg %p203
        %s421 = sand.u32 %s193, 1
        %s422 = scalar_lea.sflag [#allocation7], %s421
        %s423 = sand.u32 %s193, 1
        %s424 = smul.addr %s423, 32
        %s425 = scalar_lea.vmem [#allocation14], %s424
        %s426 = smul.u32 2, %s34
        %s427 = smul.u32 32, %s35
        %s428 = smul.u32 2, %s35
        %s429 = smul.u32 2, %s34
        %s430 = smul.u32 2, %s34
        %s431 = smul.u32 2, %s34
        %p433 = scmp.eq.s32.totalorder %s35, 0
        // Predicated region
        $region61: #{attention_forward.6} parent=39 // pred_check
          %p434 = pneg %p433
        $region62: #{attention_forward.6} parent=39 // pred_check_branch
          %436 = sbr.rel (%p434) target = $region64
        $region63: #{attention_forward.6} parent=39 // pred_region
          %v437 = vld [vmem:[%s343] sm:$0xff]
          %v438 = vld [vmem:[%s343 + $0x8] sm:$0xff]
          %v439 = vld [vmem:[%s343 + $0x10] sm:$0xff]
          %v440 = vld [vmem:[%s343 + $0x18] sm:$0xff]
          %v441 = vunpack.c.l.bf16 %v437
          %v442 = vunpack.c.h.bf16 %v437
          %v443 = vunpack.c.l.bf16 %v438
          %v444 = vunpack.c.h.bf16 %v438
          %v445 = vld [vmem:[%s370] sm:$0xff]
          %v446 = vld [vmem:[%s370 + $0x8] sm:$0xff]
          %v447 = vld [vmem:[%s379] sm:$0xff]
          %v448 = vld [vmem:[%s379 + $0x8] sm:$0xff]
          %v449 = vmul.f32 %v441, %v445
          %v450 = vmul.f32 %v442, %v446
          %v451 = vmul.f32 %v443, %v447
          %v452 = vmul.f32 %v444, %v448
          %v453 = vsub.f32 %v449, %v451
          %v454 = vsub.f32 %v450, %v452
          %v455 = vpack.c.bf16 %v453, %v453
          %v456 = vpack.c.bf16 %v454, %v454
          %v457 = vmul.f32 %v441, %v447
          %v458 = vmul.f32 %v442, %v448
          %v459 = vmul.f32 %v443, %v445
          %v460 = vmul.f32 %v444, %v446
          %v461 = vadd.f32 %v457, %v459
          %v462 = vadd.f32 %v458, %v460
          %v463 = vpack.c.bf16 %v461, %v461
          %v464 = vpack.c.bf16 %v462, %v462
          %v467 = vrot.slane %v463, 4
          %v468 = vrot.slane %v464, 4
          %v471 = vunpack.c.l.b16 %v439
          %v472 = vunpack.c.h.b16 %v439
          %v473 = vunpack.c.l.b16 %v440
          %v474 = vunpack.c.h.b16 %v440
          %v475 = vpack.c.b16 %v473, %v471
          %v476 = vpack.c.b16 %v474, %v472
          %vm479 = vcmask 1043456
          %v482 = vsel %vm479, %v455, %v467
          %v486 = vsel %vm479, %v456, %v468
          %488 = vst [vmem:[#allocation2] sm:$0xff] %v482
          %489 = vst [vmem:[#allocation2 + $0x8] sm:$0xff] %v486
          %490 = vst [vmem:[#allocation2 + $0x10] sm:$0xff] %v475
          %491 = vst [vmem:[#allocation2 + $0x18] sm:$0xff] %v476
          %v492 = vlaneseq
          %vm493 = vcmp.ge.s32.totalorder %v492, 0
          %vm494 = vcmp.lt.s32.totalorder %v492, 256
          %vm495 = vmand %vm493, %vm494
          %496 = vst.msk [vmem:[#allocation3] sm:$0x3] %vm495, -inf
          %497 = vst [vmem:[#allocation4] sm:$0xff] 0.0
          %498 = vst [vmem:[#allocation4 + $0x8] sm:$0xff] 0.0
          %499 = vst [vmem:[#allocation4 + $0x10] sm:$0xff] 0.0
          %500 = vst [vmem:[#allocation4 + $0x18] sm:$0xff] 0.0
          %501 = vst [vmem:[#allocation4 + $0x20] sm:$0xff] 0.0
          %502 = vst [vmem:[#allocation4 + $0x28] sm:$0xff] 0.0
          %503 = vst [vmem:[#allocation4 + $0x30] sm:$0xff] 0.0
          %504 = vst [vmem:[#allocation4 + $0x38] sm:$0xff] 0.0
          %505 = vst [vmem:[#allocation4 + $0x40] sm:$0x1] 0.0
          %506 = vst [vmem:[#allocation4 + $0x48] sm:$0x1] 0.0
        $region64: #{attention_forward.6} parent=39 // pred_fallthru
          _
        %v507 = vld [vmem:[%s352] sm:$0xf]
        %v508 = vld [vmem:[%s352 + $0x4] sm:$0xf]
        %v509 = vld [vmem:[%s352 + $0x8] sm:$0xf]
        %v510 = vld [vmem:[%s352 + $0xc] sm:$0xf]
        %v511 = vld [vmem:[%s352 + $0x10] sm:$0xf]
        %v512 = vld [vmem:[%s352 + $0x14] sm:$0xf]
        %v513 = vld [vmem:[%s352 + $0x18] sm:$0xf]
        %v514 = vld [vmem:[%s352 + $0x1c] sm:$0xf]
        %v515 = vld [vmem:[%s352 + $0x20] sm:$0xf]
        %v516 = vld [vmem:[%s352 + $0x24] sm:$0xf]
        %v517 = vld [vmem:[%s352 + $0x28] sm:$0xf]
        %v518 = vld [vmem:[%s352 + $0x2c] sm:$0xf]
        %v519 = vld [vmem:[%s352 + $0x30] sm:$0xf]
        %v520 = vld [vmem:[%s352 + $0x34] sm:$0xf]
        %v521 = vld [vmem:[%s352 + $0x38] sm:$0xf]
        %v522 = vld [vmem:[%s352 + $0x3c] sm:$0xf]
        %v523 = vld [vmem:[%s352 + $0x40] sm:$0xf]
        %v524 = vld [vmem:[%s352 + $0x44] sm:$0xf]
        %v525 = vld [vmem:[%s352 + $0x48] sm:$0xf]
        %v526 = vld [vmem:[%s352 + $0x4c] sm:$0xf]
        %v527 = vld [vmem:[%s352 + $0x50] sm:$0xf]
        %v528 = vld [vmem:[%s352 + $0x54] sm:$0xf]
        %v529 = vld [vmem:[%s352 + $0x58] sm:$0xf]
        %v530 = vld [vmem:[%s352 + $0x5c] sm:$0xf]
        %v531 = vld [vmem:[%s352 + $0x60] sm:$0xf]
        %v532 = vld [vmem:[%s352 + $0x64] sm:$0xf]
        %v533 = vld [vmem:[%s352 + $0x68] sm:$0xf]
        %v534 = vld [vmem:[%s352 + $0x6c] sm:$0xf]
        %v535 = vld [vmem:[%s352 + $0x70] sm:$0xf]
        %v536 = vld [vmem:[%s352 + $0x74] sm:$0xf]
        %v537 = vld [vmem:[%s352 + $0x78] sm:$0xf]
        %v538 = vld [vmem:[%s352 + $0x7c] sm:$0xf]
        %v539 = vld [vmem:[#allocation2] sm:$0xff]
        %v540 = vld [vmem:[#allocation2 + $0x8] sm:$0xff]
        %v541 = vld [vmem:[#allocation2 + $0x10] sm:$0xff]
        %v542 = vld [vmem:[#allocation2 + $0x18] sm:$0xff]
        %v575 = vunpack.c.l.b16 %v507
        %v576 = vunpack.c.l.b16 %v508
        %v577 = vunpack.c.l.b16 %v509
        %v578 = vunpack.c.l.b16 %v510
        %v579 = vunpack.c.l.b16 %v511
        %v580 = vunpack.c.l.b16 %v512
        %v581 = vunpack.c.l.b16 %v513
        %v582 = vunpack.c.l.b16 %v514
        %v583 = vunpack.c.l.b16 %v515
        %v584 = vunpack.c.l.b16 %v516
        %v585 = vunpack.c.l.b16 %v517
        %v586 = vunpack.c.l.b16 %v518
        %v587 = vunpack.c.l.b16 %v519
        %v588 = vunpack.c.l.b16 %v520
        %v589 = vunpack.c.l.b16 %v521
        %v590 = vunpack.c.l.b16 %v522
        %v591 = vunpack.c.l.b16 %v523
        %v592 = vunpack.c.l.b16 %v524
        %v593 = vunpack.c.l.b16 %v525
        %v594 = vunpack.c.l.b16 %v526
        %v595 = vunpack.c.l.b16 %v527
        %v596 = vunpack.c.l.b16 %v528
        %v597 = vunpack.c.l.b16 %v529
        %v598 = vunpack.c.l.b16 %v530
        %v599 = vunpack.c.l.b16 %v531
        %v600 = vunpack.c.l.b16 %v532
        %v601 = vunpack.c.l.b16 %v533
        %v602 = vunpack.c.l.b16 %v534
        %v603 = vunpack.c.l.b16 %v535
        %v604 = vunpack.c.l.b16 %v536
        %v605 = vunpack.c.l.b16 %v537
        %v606 = vunpack.c.l.b16 %v538
        %v607 = vpack.c.b16 %v576, %v575
        %v608 = vpack.c.b16 %v578, %v577
        %v609 = vpack.c.b16 %v580, %v579
        %v610 = vpack.c.b16 %v582, %v581
        %v611 = vpack.c.b16 %v584, %v583
        %v612 = vpack.c.b16 %v586, %v585
        %v613 = vpack.c.b16 %v588, %v587
        %v614 = vpack.c.b16 %v590, %v589
        %v615 = vpack.c.b16 %v592, %v591
        %v616 = vpack.c.b16 %v594, %v593
        %v617 = vpack.c.b16 %v596, %v595
        %v618 = vpack.c.b16 %v598, %v597
        %v619 = vpack.c.b16 %v600, %v599
        %v620 = vpack.c.b16 %v602, %v601
        %v621 = vpack.c.b16 %v604, %v603
        %v622 = vpack.c.b16 %v606, %v605
        %vm623 = vcmask 261120
        %v625 = vsel %vm623, %v607, 0
        %v628 = vsel %vm623, %v608, 0
        %v631 = vsel %vm623, %v609, 0
        %v634 = vsel %vm623, %v610, 0
        %v637 = vsel %vm623, %v611, 0
        %v640 = vsel %vm623, %v612, 0
        %v643 = vsel %vm623, %v613, 0
        %v646 = vsel %vm623, %v614, 0
        %v649 = vsel %vm623, %v615, 0
        %v652 = vsel %vm623, %v616, 0
        %v655 = vsel %vm623, %v617, 0
        %v658 = vsel %vm623, %v618, 0
        %v661 = vsel %vm623, %v619, 0
        %v664 = vsel %vm623, %v620, 0
        %v667 = vsel %vm623, %v621, 0
        %v670 = vsel %vm623, %v622, 0
        %672 = vmatprep.subr.bf16.mxu0 %v540
        %673 = vmatpush1.bf16.msra.mxu0 %v539
        %674 = vmatprep.subr.bf16.mxu0 %v542
        %675 = vmatpush1.bf16.msra.mxu0 %v541
        %676 = vmatprep.subr.bf16.mxu0 0
        %677 = vmatpush1.bf16.msra.mxu0 0
        %678 = vmatprep.subr.bf16.mxu0 0
        %679 = vmatpush1.bf16.msra.mxu0 0
        %680 = vmatprep.subr.bf16.mxu0 0
        %681 = vmatpush1.bf16.msra.mxu0 0
        %682 = vmatprep.subr.bf16.mxu0 0
        %683 = vmatpush1.bf16.msra.mxu0 0
        %684 = vmatprep.subr.bf16.mxu0 0
        %685 = vmatpush1.bf16.msra.mxu0 0
        %686 = vmatprep.subr.bf16.mxu0 0
        %687 = vmatpush1.bf16.msra.mxu0 0
        %688 = vmatprep.subr.bf16.mxu0 0
        %689 = vmatpush1.bf16.msra.mxu0 0
        %690 = vmatprep.subr.bf16.mxu0 0
        %691 = vmatpush1.bf16.msra.mxu0 0
        %692 = vmatprep.subr.bf16.mxu0 0
        %693 = vmatpush1.bf16.msra.mxu0 0
        %694 = vmatprep.subr.bf16.mxu0 0
        %695 = vmatpush1.bf16.msra.mxu0 0
        %696 = vmatprep.subr.bf16.mxu0 0
        %697 = vmatpush1.bf16.msra.mxu0 0
        %698 = vmatprep.subr.bf16.mxu0 0
        %699 = vmatpush1.bf16.msra.mxu0 0
        %700 = vmatprep.subr.bf16.mxu0 0
        %701 = vmatpush1.bf16.msra.mxu0 0
        %702 = vmatprep.subr.bf16.mxu0 0
        %703 = vmatpush1.bf16.msra.mxu0 0
        %704 = vmatprep.mubr.bf16.mxu0 0
        %705 = vmatmul.mubr.bf16.gmra.mrb[0].mxu0 %v625
        %v706 = vpop.f32.mrb[0].mxu0
        %v707 = vadd.f32 0.0, %v706
        %v708 = vpop.f32.mrb[0].mxu0
        %v709 = vadd.f32 0.0, %v708
        %v710 = vpop.f32.mrb[0].mxu0
        %v711 = vadd.f32 0.0, %v710
        %v712 = vpop.f32.mrb[0].mxu0
        %v713 = vadd.f32 0.0, %v712
        %714 = vmatprep.mubr.bf16.mxu0 0
        %715 = vmatmul.mubr.bf16.gmra.mrb[0].mxu0 %v628
        %v716 = vpop.f32.mrb[0].mxu0
        %v717 = vadd.f32 0.0, %v716
        %v718 = vpop.f32.mrb[0].mxu0
        %v719 = vadd.f32 0.0, %v718
        %v720 = vpop.f32.mrb[0].mxu0
        %v721 = vadd.f32 0.0, %v720
        %v722 = vpop.f32.mrb[0].mxu0
        %v723 = vadd.f32 0.0, %v722
        %724 = vmatprep.mubr.bf16.mxu0 0
        %725 = vmatmul.mubr.bf16.gmra.mrb[0].mxu0 %v631
        %v726 = vpop.f32.mrb[0].mxu0
        %v727 = vadd.f32 0.0, %v726
        %v728 = vpop.f32.mrb[0].mxu0
        %v729 = vadd.f32 0.0, %v728
        %v730 = vpop.f32.mrb[0].mxu0
        %v731 = vadd.f32 0.0, %v730
        %v732 = vpop.f32.mrb[0].mxu0
        %v733 = vadd.f32 0.0, %v732
        %734 = vmatprep.mubr.bf16.mxu0 0
        %735 = vmatmul.mubr.bf16.gmra.mrb[0].mxu0 %v634
        %v736 = vpop.f32.mrb[0].mxu0
        %v737 = vadd.f32 0.0, %v736
        %v738 = vpop.f32.mrb[0].mxu0
        %v739 = vadd.f32 0.0, %v738
        %v740 = vpop.f32.mrb[0].mxu0
        %v741 = vadd.f32 0.0, %v740
        %v742 = vpop.f32.mrb[0].mxu0
        %v743 = vadd.f32 0.0, %v742
        %744 = vmatprep.mubr.bf16.mxu0 0
        %745 = vmatmul.mubr.bf16.gmra.mrb[0].mxu0 %v637
        %v746 = vpop.f32.mrb[0].mxu0
        %v747 = vadd.f32 0.0, %v746
        %v748 = vpop.f32.mrb[0].mxu0
        %v749 = vadd.f32 0.0, %v748
        %v750 = vpop.f32.mrb[0].mxu0
        %v751 = vadd.f32 0.0, %v750
        %v752 = vpop.f32.mrb[0].mxu0
        %v753 = vadd.f32 0.0, %v752
        %754 = vmatprep.mubr.bf16.mxu0 0
        %755 = vmatmul.mubr.bf16.gmra.mrb[0].mxu0 %v640
        %v756 = vpop.f32.mrb[0].mxu0
        %v757 = vadd.f32 0.0, %v756
        %v758 = vpop.f32.mrb[0].mxu0
        %v759 = vadd.f32 0.0, %v758
        %v760 = vpop.f32.mrb[0].mxu0
        %v761 = vadd.f32 0.0, %v760
        %v762 = vpop.f32.mrb[0].mxu0
        %v763 = vadd.f32 0.0, %v762
        %764 = vmatprep.mubr.bf16.mxu0 0
        %765 = vmatmul.mubr.bf16.gmra.mrb[0].mxu0 %v643
        %v766 = vpop.f32.mrb[0].mxu0
        %v767 = vadd.f32 0.0, %v766
        %v768 = vpop.f32.mrb[0].mxu0
        %v769 = vadd.f32 0.0, %v768
        %v770 = vpop.f32.mrb[0].mxu0
        %v771 = vadd.f32 0.0, %v770
        %v772 = vpop.f32.mrb[0].mxu0
        %v773 = vadd.f32 0.0, %v772
        %774 = vmatprep.mubr.bf16.mxu0 0
        %775 = vmatmul.mubr.bf16.gmra.mrb[0].mxu0 %v646
        %v776 = vpop.f32.mrb[0].mxu0
        %v777 = vadd.f32 0.0, %v776
        %v778 = vpop.f32.mrb[0].mxu0
        %v779 = vadd.f32 0.0, %v778
        %v780 = vpop.f32.mrb[0].mxu0
        %v781 = vadd.f32 0.0, %v780
        %v782 = vpop.f32.mrb[0].mxu0
        %v783 = vadd.f32 0.0, %v782
        %784 = vmatprep.mubr.bf16.mxu0 0
        %785 = vmatmul.mubr.bf16.gmra.mrb[0].mxu0 %v649
        %v786 = vpop.f32.mrb[0].mxu0
        %v787 = vadd.f32 0.0, %v786
        %v788 = vpop.f32.mrb[0].mxu0
        %v789 = vadd.f32 0.0, %v788
        %v790 = vpop.f32.mrb[0].mxu0
        %v791 = vadd.f32 0.0, %v790
        %v792 = vpop.f32.mrb[0].mxu0
        %v793 = vadd.f32 0.0, %v792
        %794 = vmatprep.mubr.bf16.mxu0 0
        %795 = vmatmul.mubr.bf16.gmra.mrb[0].mxu0 %v652
        %v796 = vpop.f32.mrb[0].mxu0
        %v797 = vadd.f32 0.0, %v796
        %v798 = vpop.f32.mrb[0].mxu0
        %v799 = vadd.f32 0.0, %v798
        %v800 = vpop.f32.mrb[0].mxu0
        %v801 = vadd.f32 0.0, %v800
        %v802 = vpop.f32.mrb[0].mxu0
        %v803 = vadd.f32 0.0, %v802
        %804 = vmatprep.mubr.bf16.mxu0 0
        %805 = vmatmul.mubr.bf16.gmra.mrb[0].mxu0 %v655
        %v806 = vpop.f32.mrb[0].mxu0
        %v807 = vadd.f32 0.0, %v806
        %v808 = vpop.f32.mrb[0].mxu0
        %v809 = vadd.f32 0.0, %v808
        %v810 = vpop.f32.mrb[0].mxu0
        %v811 = vadd.f32 0.0, %v810
        %v812 = vpop.f32.mrb[0].mxu0
        %v813 = vadd.f32 0.0, %v812
        %814 = vmatprep.mubr.bf16.mxu0 0
        %815 = vmatmul.mubr.bf16.gmra.mrb[0].mxu0 %v658
        %v816 = vpop.f32.mrb[0].mxu0
        %v817 = vadd.f32 0.0, %v816
        %v818 = vpop.f32.mrb[0].mxu0
        %v819 = vadd.f32 0.0, %v818
        %v820 = vpop.f32.mrb[0].mxu0
        %v821 = vadd.f32 0.0, %v820
        %v822 = vpop.f32.mrb[0].mxu0
        %v823 = vadd.f32 0.0, %v822
        %824 = vmatprep.mubr.bf16.mxu0 0
        %825 = vmatmul.mubr.bf16.gmra.mrb[0].mxu0 %v661
        %v826 = vpop.f32.mrb[0].mxu0
        %v827 = vadd.f32 0.0, %v826
        %v828 = vpop.f32.mrb[0].mxu0
        %v829 = vadd.f32 0.0, %v828
        %v830 = vpop.f32.mrb[0].mxu0
        %v831 = vadd.f32 0.0, %v830
        %v832 = vpop.f32.mrb[0].mxu0
        %v833 = vadd.f32 0.0, %v832
        %834 = vmatprep.mubr.bf16.mxu0 0
        %835 = vmatmul.mubr.bf16.gmra.mrb[0].mxu0 %v664
        %v836 = vpop.f32.mrb[0].mxu0
        %v837 = vadd.f32 0.0, %v836
        %v838 = vpop.f32.mrb[0].mxu0
        %v839 = vadd.f32 0.0, %v838
        %v840 = vpop.f32.mrb[0].mxu0
        %v841 = vadd.f32 0.0, %v840
        %v842 = vpop.f32.mrb[0].mxu0
        %v843 = vadd.f32 0.0, %v842
        %844 = vmatprep.mubr.bf16.mxu0 0
        %845 = vmatmul.mubr.bf16.gmra.mrb[0].mxu0 %v667
        %v846 = vpop.f32.mrb[0].mxu0
        %v847 = vadd.f32 0.0, %v846
        %v848 = vpop.f32.mrb[0].mxu0
        %v849 = vadd.f32 0.0, %v848
        %v850 = vpop.f32.mrb[0].mxu0
        %v851 = vadd.f32 0.0, %v850
        %v852 = vpop.f32.mrb[0].mxu0
        %v853 = vadd.f32 0.0, %v852
        %854 = vmatprep.mubr.bf16.mxu0 0
        %855 = vmatmul.mubr.bf16.gmra.mrb[0].mxu0 %v670
        %v856 = vpop.f32.mrb[0].mxu0
        %v857 = vadd.f32 0.0, %v856
        %v858 = vpop.f32.mrb[0].mxu0
        %v859 = vadd.f32 0.0, %v858
        %v860 = vpop.f32.mrb[0].mxu0
        %v861 = vadd.f32 0.0, %v860
        %v862 = vpop.f32.mrb[0].mxu0
        %v863 = vadd.f32 0.0, %v862
        %864 = vdwg.mxu0
        %v865 = vld [vmem:[#allocation3] sm:$0x3]
        %v866 = vmax.f32 %v707, %v717
        %v867 = vmax.f32 %v711, %v721
        %v868 = vmax.f32 %v866, %v727
        %v869 = vmax.f32 %v867, %v731
        %v870 = vmax.f32 %v868, %v737
        %v871 = vmax.f32 %v869, %v741
        %v872 = vmax.f32 %v870, %v747
        %v873 = vmax.f32 %v871, %v751
        %v874 = vmax.f32 %v872, %v757
        %v875 = vmax.f32 %v873, %v761
        %v876 = vmax.f32 %v874, %v767
        %v877 = vmax.f32 %v875, %v771
        %v878 = vmax.f32 %v876, %v777
        %v879 = vmax.f32 %v877, %v781
        %v880 = vmax.f32 %v878, %v787
        %v881 = vmax.f32 %v879, %v791
        %v882 = vmax.f32 %v880, %v797
        %v883 = vmax.f32 %v881, %v801
        %v884 = vmax.f32 %v882, %v807
        %v885 = vmax.f32 %v883, %v811
        %v886 = vmax.f32 %v884, %v817
        %v887 = vmax.f32 %v885, %v821
        %v888 = vmax.f32 %v886, %v827
        %v889 = vmax.f32 %v887, %v831
        %v890 = vmax.f32 %v888, %v837
        %v891 = vmax.f32 %v889, %v841
        %v892 = vmax.f32 %v890, %v847
        %v893 = vmax.f32 %v891, %v851
        %v894 = vmax.f32 %v892, %v857
        %v895 = vmax.f32 %v893, %v861
        %v896 = vmax.f32 %v894, %v895
        %v897 = vrot.slane %v896, 4
        %v898 = vmax.f32 %v896, %v897
        %v899 = vrot.slane %v898, 2
        %v900 = vmax.f32 %v898, %v899
        %v901 = vrot.slane %v900, 1
        %v902 = vmax.f32 %v900, %v901
        %v903 = vmax.f32 %v709, %v719
        %v904 = vmax.f32 %v713, %v723
        %v905 = vmax.f32 %v903, %v729
        %v906 = vmax.f32 %v904, %v733
        %v907 = vmax.f32 %v905, %v739
        %v908 = vmax.f32 %v906, %v743
        %v909 = vmax.f32 %v907, %v749
        %v910 = vmax.f32 %v908, %v753
        %v911 = vmax.f32 %v909, %v759
        %v912 = vmax.f32 %v910, %v763
        %v913 = vmax.f32 %v911, %v769
        %v914 = vmax.f32 %v912, %v773
        %v915 = vmax.f32 %v913, %v779
        %v916 = vmax.f32 %v914, %v783
        %v917 = vmax.f32 %v915, %v789
        %v918 = vmax.f32 %v916, %v793
        %v919 = vmax.f32 %v917, %v799
        %v920 = vmax.f32 %v918, %v803
        %v921 = vmax.f32 %v919, %v809
        %v922 = vmax.f32 %v920, %v813
        %v923 = vmax.f32 %v921, %v819
        %v924 = vmax.f32 %v922, %v823
        %v925 = vmax.f32 %v923, %v829
        %v926 = vmax.f32 %v924, %v833
        %v927 = vmax.f32 %v925, %v839
        %v928 = vmax.f32 %v926, %v843
        %v929 = vmax.f32 %v927, %v849
        %v930 = vmax.f32 %v928, %v853
        %v931 = vmax.f32 %v929, %v859
        %v932 = vmax.f32 %v930, %v863
        %v933 = vmax.f32 %v931, %v932
        %v934 = vrot.slane %v933, 4
        %v935 = vmax.f32 %v933, %v934
        %v936 = vrot.slane %v935, 2
        %v937 = vmax.f32 %v935, %v936
        %v938 = vrot.slane %v937, 1
        %v939 = vmax.f32 %v937, %v938
        %v942 = vcombine.low %v902, %v939
        %v944 = vunpack.c.l.s4 1966171168
        %v945 = vunpack.c.0.s8 %v944
        %v946 = vlaneseq
        %v947 = vshrl.u32 %v946, 7
        %v948 = vsub.s32 %v945, %v947
        %v949 = vrot.slane %v942, %v948
        %v951 = vunpack.c.l.s4 1966171168
        %v952 = vunpack.c.0.s8 %v951
        %v953 = vlaneseq
        %v954 = vshrl.u32 %v953, 7
        %v955 = vsub.s32 %v952, %v954
        %v956 = vrot.slane %v949, %v955
        %v958 = vmax.f32 %v865, %v956
        %v959 = vsub.f32 %v865, %v958
        %v960 = vmul.f32 %v959, 1.442695
        %v961 = vpow.pop %v960
        %v963 = vlaneseq
        %v964 = vshrl.u32 %v963, 7
        %v965 = vsub.s32 0, %v964
        %v966 = vrot.slane %v958, %v965
        %v967 = vlaneseq
        %v968 = vshrl.u32 %v967, 7
        %v969 = vsub.s32 1, %v968
        %v970 = vrot.slane %v958, %v969
        %v973 = vsub.f32 %v707, %v966
        %v974 = vsub.f32 %v709, %v970
        %v975 = vsub.f32 %v711, %v966
        %v976 = vsub.f32 %v713, %v970
        %v977 = vsub.f32 %v717, %v966
        %v978 = vsub.f32 %v719, %v970
        %v979 = vsub.f32 %v721, %v966
        %v980 = vsub.f32 %v723, %v970
        %v981 = vsub.f32 %v727, %v966
        %v982 = vsub.f32 %v729, %v970
        %v983 = vsub.f32 %v731, %v966
        %v984 = vsub.f32 %v733, %v970
        %v985 = vsub.f32 %v737, %v966
        %v986 = vsub.f32 %v739, %v970
        %v987 = vsub.f32 %v741, %v966
        %v988 = vsub.f32 %v743, %v970
        %v989 = vsub.f32 %v747, %v966
        %v990 = vsub.f32 %v749, %v970
        %v991 = vsub.f32 %v751, %v966
        %v992 = vsub.f32 %v753, %v970
        %v993 = vsub.f32 %v757, %v966
        %v994 = vsub.f32 %v759, %v970
        %v995 = vsub.f32 %v761, %v966
        %v996 = vsub.f32 %v763, %v970
        %v997 = vsub.f32 %v767, %v966
        %v998 = vsub.f32 %v769, %v970
        %v999 = vsub.f32 %v771, %v966
        %v1000 = vsub.f32 %v773, %v970
        %v1001 = vsub.f32 %v777, %v966
        %v1002 = vsub.f32 %v779, %v970
        %v1003 = vsub.f32 %v781, %v966
        %v1004 = vsub.f32 %v783, %v970
        %v1005 = vsub.f32 %v787, %v966
        %v1006 = vsub.f32 %v789, %v970
        %v1007 = vsub.f32 %v791, %v966
        %v1008 = vsub.f32 %v793, %v970
        %v1009 = vsub.f32 %v797, %v966
        %v1010 = vsub.f32 %v799, %v970
        %v1011 = vsub.f32 %v801, %v966
        %v1012 = vsub.f32 %v803, %v970
        %v1013 = vsub.f32 %v807, %v966
        %v1014 = vsub.f32 %v809, %v970
        %v1015 = vsub.f32 %v811, %v966
        %v1016 = vsub.f32 %v813, %v970
        %v1017 = vsub.f32 %v817, %v966
        %v1018 = vsub.f32 %v819, %v970
        %v1019 = vsub.f32 %v821, %v966
        %v1020 = vsub.f32 %v823, %v970
        %v1021 = vsub.f32 %v827, %v966
        %v1022 = vsub.f32 %v829, %v970
        %v1023 = vsub.f32 %v831, %v966
        %v1024 = vsub.f32 %v833, %v970
        %v1025 = vsub.f32 %v837, %v966
        %v1026 = vsub.f32 %v839, %v970
        %v1027 = vsub.f32 %v841, %v966
        %v1028 = vsub.f32 %v843, %v970
        %v1029 = vsub.f32 %v847, %v966
        %v1030 = vsub.f32 %v849, %v970
        %v1031 = vsub.f32 %v851, %v966
        %v1032 = vsub.f32 %v853, %v970
        %v1033 = vsub.f32 %v857, %v966
        %v1034 = vsub.f32 %v859, %v970
        %v1035 = vsub.f32 %v861, %v966
        %v1036 = vsub.f32 %v863, %v970
        %v1037 = vpack.c.bf16 %v975, %v973
        %v1038 = vpack.c.bf16 %v976, %v974
        %v1039 = vpack.c.bf16 %v979, %v977
        %v1040 = vpack.c.bf16 %v980, %v978
        %v1041 = vpack.c.bf16 %v983, %v981
        %v1042 = vpack.c.bf16 %v984, %v982
        %v1043 = vpack.c.bf16 %v987, %v985
        %v1044 = vpack.c.bf16 %v988, %v986
        %v1045 = vpack.c.bf16 %v991, %v989
        %v1046 = vpack.c.bf16 %v992, %v990
        %v1047 = vpack.c.bf16 %v995, %v993
        %v1048 = vpack.c.bf16 %v996, %v994
        %v1049 = vpack.c.bf16 %v999, %v997
        %v1050 = vpack.c.bf16 %v1000, %v998
        %v1051 = vpack.c.bf16 %v1003, %v1001
        %v1052 = vpack.c.bf16 %v1004, %v1002
        %v1053 = vpack.c.bf16 %v1007, %v1005
        %v1054 = vpack.c.bf16 %v1008, %v1006
        %v1055 = vpack.c.bf16 %v1011, %v1009
        %v1056 = vpack.c.bf16 %v1012, %v1010
        %v1057 = vpack.c.bf16 %v1015, %v1013
        %v1058 = vpack.c.bf16 %v1016, %v1014
        %v1059 = vpack.c.bf16 %v1019, %v1017
        %v1060 = vpack.c.bf16 %v1020, %v1018
        %v1061 = vpack.c.bf16 %v1023, %v1021
        %v1062 = vpack.c.bf16 %v1024, %v1022
        %v1063 = vpack.c.bf16 %v1027, %v1025
        %v1064 = vpack.c.bf16 %v1028, %v1026
        %v1065 = vpack.c.bf16 %v1031, %v1029
        %v1066 = vpack.c.bf16 %v1032, %v1030
        %v1067 = vpack.c.bf16 %v1035, %v1033
        %v1068 = vpack.c.bf16 %v1036, %v1034
        %v1070 = vmul.bf16 %v1037, 1069105081
        %v1071 = vpow.bf16.pop %v1070
        %v1073 = vmul.bf16 %v1038, 1069105081
        %v1074 = vpow.bf16.pop %v1073
        %v1076 = vmul.bf16 %v1039, 1069105081
        %v1077 = vpow.bf16.pop %v1076
        %v1079 = vmul.bf16 %v1040, 1069105081
        %v1080 = vpow.bf16.pop %v1079
        %v1082 = vmul.bf16 %v1041, 1069105081
        %v1083 = vpow.bf16.pop %v1082
        %v1085 = vmul.bf16 %v1042, 1069105081
        %v1086 = vpow.bf16.pop %v1085
        %v1088 = vmul.bf16 %v1043, 1069105081
        %v1089 = vpow.bf16.pop %v1088
        %v1091 = vmul.bf16 %v1044, 1069105081
        %v1092 = vpow.bf16.pop %v1091
        %v1094 = vmul.bf16 %v1045, 1069105081
        %v1095 = vpow.bf16.pop %v1094
        %v1097 = vmul.bf16 %v1046, 1069105081
        %v1098 = vpow.bf16.pop %v1097
        %v1100 = vmul.bf16 %v1047, 1069105081
        %v1101 = vpow.bf16.pop %v1100
        %v1103 = vmul.bf16 %v1048, 1069105081
        %v1104 = vpow.bf16.pop %v1103
        %v1106 = vmul.bf16 %v1049, 1069105081
        %v1107 = vpow.bf16.pop %v1106
        %v1109 = vmul.bf16 %v1050, 1069105081
        %v1110 = vpow.bf16.pop %v1109
        %v1112 = vmul.bf16 %v1051, 1069105081
        %v1113 = vpow.bf16.pop %v1112
        %v1115 = vmul.bf16 %v1052, 1069105081
        %v1116 = vpow.bf16.pop %v1115
        %v1118 = vmul.bf16 %v1053, 1069105081
        %v1119 = vpow.bf16.pop %v1118
        %v1121 = vmul.bf16 %v1054, 1069105081
        %v1122 = vpow.bf16.pop %v1121
        %v1124 = vmul.bf16 %v1055, 1069105081
        %v1125 = vpow.bf16.pop %v1124
        %v1127 = vmul.bf16 %v1056, 1069105081
        %v1128 = vpow.bf16.pop %v1127
        %v1130 = vmul.bf16 %v1057, 1069105081
        %v1131 = vpow.bf16.pop %v1130
        %v1133 = vmul.bf16 %v1058, 1069105081
        %v1134 = vpow.bf16.pop %v1133
        %v1136 = vmul.bf16 %v1059, 1069105081
        %v1137 = vpow.bf16.pop %v1136
        %v1139 = vmul.bf16 %v1060, 1069105081
        %v1140 = vpow.bf16.pop %v1139
        %v1142 = vmul.bf16 %v1061, 1069105081
        %v1143 = vpow.bf16.pop %v1142
        %v1145 = vmul.bf16 %v1062, 1069105081
        %v1146 = vpow.bf16.pop %v1145
        %v1148 = vmul.bf16 %v1063, 1069105081
        %v1149 = vpow.bf16.pop %v1148
        %v1151 = vmul.bf16 %v1064, 1069105081
        %v1152 = vpow.bf16.pop %v1151
        %v1154 = vmul.bf16 %v1065, 1069105081
        %v1155 = vpow.bf16.pop %v1154
        %v1157 = vmul.bf16 %v1066, 1069105081
        %v1158 = vpow.bf16.pop %v1157
        %v1160 = vmul.bf16 %v1067, 1069105081
        %v1161 = vpow.bf16.pop %v1160
        %v1163 = vmul.bf16 %v1068, 1069105081
        %v1164 = vpow.bf16.pop %v1163
        %v1165 = vld [vmem:[%s361] sm:$0xff]
        %v1166 = vld [vmem:[%s361 + $0x8] sm:$0xff]
        %v1167 = vld [vmem:[%s361 + $0x10] sm:$0xff]
        %v1168 = vld [vmem:[%s361 + $0x18] sm:$0xff]
        %v1169 = vld [vmem:[%s361 + $0x20] sm:$0x11]
        %v1175 = vunpack.c.l.b16 %v1165
        %v1176 = vunpack.c.h.b16 %v1165
        %v1177 = vunpack.c.l.b16 %v1166
        %v1178 = vunpack.c.h.b16 %v1166
        %v1179 = vunpack.c.l.b16 %v1167
        %v1180 = vunpack.c.h.b16 %v1167
        %v1181 = vunpack.c.l.b16 %v1168
        %v1182 = vunpack.c.h.b16 %v1168
        %v1183 = vunpack.c.l.b16 %v1169
        %v1184 = vunpack.c.h.b16 %v1169
        %v1185 = vpack.c.b16 %v1177, %v1175
        %v1186 = vpack.c.b16 %v1178, %v1176
        %v1187 = vpack.c.b16 %v1181, %v1179
        %v1188 = vpack.c.b16 %v1182, %v1180
        %v1189 = vpack.c.b16 %v1183, %v1183
        %v1190 = vpack.c.b16 %v1184, %v1184
        %1197 = vmatprep.subr.bf16.mxu0 %v1074
        %1198 = vmatpush1.bf16.msra.mxu0 %v1071
        %1199 = vmatprep.subr.bf16.mxu0 %v1080
        %1200 = vmatpush1.bf16.msra.mxu0 %v1077
        %1201 = vmatprep.subr.bf16.mxu0 %v1086
        %1202 = vmatpush1.bf16.msra.mxu0 %v1083
        %1203 = vmatprep.subr.bf16.mxu0 %v1092
        %1204 = vmatpush1.bf16.msra.mxu0 %v1089
        %1205 = vmatprep.subr.bf16.mxu0 %v1098
        %1206 = vmatpush1.bf16.msra.mxu0 %v1095
        %1207 = vmatprep.subr.bf16.mxu0 %v1104
        %1208 = vmatpush1.bf16.msra.mxu0 %v1101
        %1209 = vmatprep.subr.bf16.mxu0 %v1110
        %1210 = vmatpush1.bf16.msra.mxu0 %v1107
        %1211 = vmatprep.subr.bf16.mxu0 %v1116
        %1212 = vmatpush1.bf16.msra.mxu0 %v1113
        %1213 = vmatprep.subr.bf16.mxu0 %v1122
        %1214 = vmatpush1.bf16.msra.mxu0 %v1119
        %1215 = vmatprep.subr.bf16.mxu0 %v1128
        %1216 = vmatpush1.bf16.msra.mxu0 %v1125
        %1217 = vmatprep.subr.bf16.mxu0 %v1134
        %1218 = vmatpush1.bf16.msra.mxu0 %v1131
        %1219 = vmatprep.subr.bf16.mxu0 %v1140
        %1220 = vmatpush1.bf16.msra.mxu0 %v1137
        %1221 = vmatprep.subr.bf16.mxu0 %v1146
        %1222 = vmatpush1.bf16.msra.mxu0 %v1143
        %1223 = vmatprep.subr.bf16.mxu0 %v1152
        %1224 = vmatpush1.bf16.msra.mxu0 %v1149
        %1225 = vmatprep.subr.bf16.mxu0 %v1158
        %1226 = vmatpush1.bf16.msra.mxu0 %v1155
        %1227 = vmatprep.subr.bf16.mxu0 %v1164
        %1228 = vmatpush1.bf16.msra.mxu0 %v1161
        %1229 = vmatprep.mubr.bf16.mxu0 %v1186
        %1230 = vmatmul.mubr.bf16.gmra.mrb[0].mxu0 %v1185
        %v1231 = vpop.f32.mrb[0].mxu0
        %v1232 = vadd.f32 0.0, %v1231
        %v1233 = vpop.f32.mrb[0].mxu0
        %v1234 = vadd.f32 0.0, %v1233
        %v1235 = vpop.f32.mrb[0].mxu0
        %v1236 = vadd.f32 0.0, %v1235
        %v1237 = vpop.f32.mrb[0].mxu0
        %v1238 = vadd.f32 0.0, %v1237
        %1239 = vmatprep.mubr.bf16.mxu0 %v1188
        %1240 = vmatmul.mubr.bf16.gmra.mrb[0].mxu0 %v1187
        %v1241 = vpop.f32.mrb[0].mxu0
        %v1242 = vadd.f32 0.0, %v1241
        %v1243 = vpop.f32.mrb[0].mxu0
        %v1244 = vadd.f32 0.0, %v1243
        %v1245 = vpop.f32.mrb[0].mxu0
        %v1246 = vadd.f32 0.0, %v1245
        %v1247 = vpop.f32.mrb[0].mxu0
        %v1248 = vadd.f32 0.0, %v1247
        %1249 = vmatprep.mubr.bf16.mxu0 %v1190
        %1250 = vmatmul.mubr.bf16.gmra.mrb[0].mxu0 %v1189
        %v1251 = vpop.f32.mrb[0].mxu0
        %v1252 = vadd.f32 0.0, %v1251
        %v1253 = vpop.f32.mrb[0].mxu0
        %v1254 = vadd.f32 0.0, %v1253
        %v1255 = vpop.f32.mrb[0].mxu0
        %v1256 = vpop.f32.mrb[0].mxu0
        %1257 = vdwg.mxu0
        %v1258 = vld [vmem:[#allocation4] sm:$0xff]
        %v1259 = vld [vmem:[#allocation4 + $0x8] sm:$0xff]
        %v1260 = vld [vmem:[#allocation4 + $0x10] sm:$0xff]
        %v1261 = vld [vmem:[#allocation4 + $0x18] sm:$0xff]
        %v1262 = vld [vmem:[#allocation4 + $0x20] sm:$0xff]
        %v1263 = vld [vmem:[#allocation4 + $0x28] sm:$0xff]
        %v1264 = vld [vmem:[#allocation4 + $0x30] sm:$0xff]
        %v1265 = vld [vmem:[#allocation4 + $0x38] sm:$0xff]
        %v1266 = vld [vmem:[#allocation4 + $0x40] sm:$0x1]
        %v1267 = vld [vmem:[#allocation4 + $0x48] sm:$0x1]
        %v1269 = vlaneseq
        %v1270 = vshrl.u32 %v1269, 7
        %v1271 = vsub.s32 0, %v1270
        %v1272 = vrot.slane %v961, %v1271
        %v1273 = vlaneseq
        %v1274 = vshrl.u32 %v1273, 7
        %v1275 = vsub.s32 1, %v1274
        %v1276 = vrot.slane %v961, %v1275
        %v1279 = vmul.f32 %v1272, %v1258
        %v1280 = vmul.f32 %v1276, %v1259
        %v1281 = vmul.f32 %v1272, %v1260
        %v1282 = vmul.f32 %v1276, %v1261
        %v1283 = vmul.f32 %v1272, %v1262
        %v1284 = vmul.f32 %v1276, %v1263
        %v1285 = vmul.f32 %v1272, %v1264
        %v1286 = vmul.f32 %v1276, %v1265
        %v1287 = vmul.f32 %v1272, %v1266
        %v1288 = vmul.f32 %v1276, %v1267
        %v1289 = vadd.f32 %v1279, %v1232
        %v1290 = vadd.f32 %v1280, %v1234
        %v1291 = vadd.f32 %v1281, %v1236
        %v1292 = vadd.f32 %v1282, %v1238
        %v1293 = vadd.f32 %v1283, %v1242
        %v1294 = vadd.f32 %v1284, %v1244
        %v1295 = vadd.f32 %v1285, %v1246
        %v1296 = vadd.f32 %v1286, %v1248
        %v1297 = vadd.f32 %v1287, %v1252
        %v1298 = vadd.f32 %v1288, %v1254
        %1299 = vst [vmem:[#allocation4] sm:$0xff] %v1289
        %1300 = vst [vmem:[#allocation4 + $0x8] sm:$0xff] %v1290
        %1301 = vst [vmem:[#allocation4 + $0x10] sm:$0xff] %v1291
        %1302 = vst [vmem:[#allocation4 + $0x18] sm:$0xff] %v1292
        %1303 = vst [vmem:[#allocation4 + $0x20] sm:$0xff] %v1293
        %1304 = vst [vmem:[#allocation4 + $0x28] sm:$0xff] %v1294
        %1305 = vst [vmem:[#allocation4 + $0x30] sm:$0xff] %v1295
        %1306 = vst [vmem:[#allocation4 + $0x38] sm:$0xff] %v1296
        %1307 = vst [vmem:[#allocation4 + $0x40] sm:$0x1] %v1297
        %1308 = vst [vmem:[#allocation4 + $0x48] sm:$0x1] %v1298
        %v1309 = vlaneseq
        %vm1310 = vcmp.ge.s32.totalorder %v1309, 0
        %vm1311 = vcmp.lt.s32.totalorder %v1309, 256
        %vm1312 = vmand %vm1310, %vm1311
        %1313 = vst.msk [vmem:[#allocation3] sm:$0x3] %vm1312, %v958
        %p1314 = scmp.eq.s32.totalorder %s35, 1
        // Predicated region
        $region65: #{attention_forward.6} parent=39 // pred_check
          %p1315 = pneg %p1314
        $region66: #{attention_forward.6} parent=39 // pred_check_branch
          %1317 = sbr.rel (%p1315) target = $region68
        $region67: #{attention_forward.6} parent=39 // pred_region
          %v1318 = vld [vmem:[#allocation4] sm:$0xff]
          %v1319 = vld [vmem:[#allocation4 + $0x8] sm:$0xff]
          %v1320 = vld [vmem:[#allocation4 + $0x10] sm:$0xff]
          %v1321 = vld [vmem:[#allocation4 + $0x18] sm:$0xff]
          %v1322 = vld [vmem:[#allocation4 + $0x20] sm:$0xff]
          %v1323 = vld [vmem:[#allocation4 + $0x28] sm:$0xff]
          %v1324 = vld [vmem:[#allocation4 + $0x30] sm:$0xff]
          %v1325 = vld [vmem:[#allocation4 + $0x38] sm:$0xff]
          %v1326 = vld [vmem:[#allocation4 + $0x40] sm:$0x1]
          %v1327 = vld [vmem:[#allocation4 + $0x48] sm:$0x1]
          %v1328 = vrcp.pop %v1326
          %v1329 = vrcp.pop %v1327
          %v1330 = vlaneseq
          %v1331 = vshrl.u32 %v1330, 7
          %v1332 = vsub.s32 0, %v1331
          %v1333 = vrot.slane %v1328, %v1332
          %v1334 = vlaneseq
          %v1335 = vshrl.u32 %v1334, 7
          %v1336 = vsub.s32 0, %v1335
          %v1337 = vrot.slane %v1329, %v1336
          %v1338 = vmul.f32 %v1318, %v1333
          %v1339 = vmul.f32 %v1319, %v1337
          %v1340 = vmul.f32 %v1320, %v1333
          %v1341 = vmul.f32 %v1321, %v1337
          %v1342 = vmul.f32 %v1322, %v1333
          %v1343 = vmul.f32 %v1323, %v1337
          %v1344 = vmul.f32 %v1324, %v1333
          %v1345 = vmul.f32 %v1325, %v1337
          %v1346 = vpack.c.bf16 %v1340, %v1338
          %v1347 = vpack.c.bf16 %v1341, %v1339
          %v1348 = vpack.c.bf16 %v1344, %v1342
          %v1349 = vpack.c.bf16 %v1345, %v1343
          %v1354 = vunpack.c.l.b16 %v1346
          %v1355 = vunpack.c.l.b16 %v1347
          %v1356 = vunpack.c.h.b16 %v1346
          %v1357 = vunpack.c.h.b16 %v1347
          %v1358 = vunpack.c.l.b16 %v1348
          %v1359 = vunpack.c.l.b16 %v1349
          %v1360 = vunpack.c.h.b16 %v1348
          %v1361 = vunpack.c.h.b16 %v1349
          %v1362 = vpack.c.b16 %v1355, %v1354
          %v1363 = vpack.c.b16 %v1357, %v1356
          %v1364 = vpack.c.b16 %v1359, %v1358
          %v1365 = vpack.c.b16 %v1361, %v1360
          %1370 = vst [vmem:[%s425] sm:$0xff] %v1362
          %1371 = vst [vmem:[%s425 + $0x8] sm:$0xff] %v1363
          %1372 = vst [vmem:[%s425 + $0x10] sm:$0xff] %v1364
          %1373 = vst [vmem:[%s425 + $0x18] sm:$0xff] %v1365
        $region68: #{attention_forward.6} parent=39 // pred_fallthru
          _
        %s1374 = sand.u32 %s193, 1
        %s1375 = scalar_lea.sflag [#allocation7], %s1374
        %s1376 = sand.u32 %s193, 1
        %s1377 = smul.addr %s1376, 32
        %s1378 = scalar_lea.vmem [#allocation14], %s1377
        // Predicated region
        $region69: #{attention_forward.6} parent=39 // pred_check
          %p1379 = pneg %p203
        $region70: #{attention_forward.6} parent=39 // pred_check_branch
          %1381 = sbr.rel (%p1379) target = $region72
        $region71: #{attention_forward.6} parent=39 // pred_region
          %s1382 = smul.u32 2, %s34
          %s1384 = ssub.s32 512, 512
          %1385 = vsyncadd %s1375, %s1384
          %s1386 = smul.addr %s33, 16
          %s1387 = sadd.s32 %s1382, %s1386
          %s1388 = smul.addr %s1387, 64
          %s1389 = scalar_lea.hbm %s5, %s1388
          %s1390 = sshll.u32 %s1378, 4
          %s1391 = int_to_ptr.vmem [resolvable:$true] %s1390
          %1396 = dma.vmem_to_hbm [thread:$0]  %s1391, 512, %s1389, %s1375, 128, 256, 8
        $region72: #{attention_forward.6} parent=39 // pred_fallthru
          _
      $region40: #{attention_forward.6} parent=5 // pred_fallthru
        _
      %p1397 = scmp.le.s32.totalorder 2, %s23
      // Predicated region
      $region73: #{attention_forward.6} parent=5 // pred_check
        %p1398 = pneg %p1397
      $region74: #{attention_forward.6} parent=5 // pred_check_branch
        %1400 = sbr.rel (%p1398) target = $region76
      $region75: #{attention_forward.6} parent=5 // pred_region
        %s1401 = ssub.s32 %s23, 2
        // Predicated region
        $region77: #{attention_forward.6} parent=75 // pred_check
          %p1402 = pneg %p209
        $region78: #{attention_forward.6} parent=75 // pred_check_branch
          %1404 = sbr.rel (%p1402) target = $region80
        $region79: #{attention_forward.6} parent=75 // pred_region
          %s1405 = sand.u32 %s194, 1
          %s1406 = scalar_lea.sflag [#allocation7], %s1405
          %s1407 = sand.u32 %s194, 1
          %s1408 = smul.addr %s1407, 32
          %s1409 = scalar_lea.vmem [#allocation14], %s1408
          %1410 = dma.done %s1406, 512
        $region80: #{attention_forward.6} parent=75 // pred_fallthru
          _
      $region76: #{attention_forward.6} parent=5 // pred_fallthru
        _
    $region6: #{attention_forward.6} parent=1 // loop_footer
      %s27 = sadd.s32 1, %s23
    $region7: #{attention_forward.6} parent=1 // loop_footer_branch
      %22 = sbr.rel target = $region3
    $region8: #{attention_forward.6} parent=1 // loop_exit
      _
    %1411 = vsyncpa [#allocation6], 1
    %s1412 = scalar_lea.sflag [#allocation6], 1
    %1413 = vsyncpa %s1412, 1
    %1414 = vsyncpa [#allocation9], 1
    %s1415 = scalar_lea.sflag [#allocation9], 1
    %1416 = vsyncpa %s1415, 1
    %1417 = vsyncpa [#allocation12], 1
    %s1418 = scalar_lea.sflag [#allocation12], 1
    %1419 = vsyncpa %s1418, 1
    %1420 = vsyncpa [#allocation7], 1
    %s1421 = scalar_lea.sflag [#allocation7], 1
    %1422 = vsyncpa %s1421, 1

</llo_original>
